<compile_context>
chip_gen: v6e
topology: v6e:2x2x1
jax: 0.10.0
libtpu: 0.0.40
codegen_flags: <defaults>
</compile_context>

<pallas_src>
import math

import jax
import jax.numpy as jnp
from jax.experimental import pallas as pl
from jax.experimental.pallas import tpu as pltpu

COMPUTE_DTYPE = jnp.bfloat16   # MXU operand dtype; accumulation / epilogue in f32
SCRATCH_DTYPE = jnp.float32    # activation scratch dtype

_MEMSPACE = getattr(pltpu, "MemorySpace", None)
if _MEMSPACE is None:  # older pltpu spelling
    _MEMSPACE = getattr(pltpu, "TPUMemorySpace")
_VMEM_SPACE = _MEMSPACE.VMEM


def _round_up(x, m):
    return ((x + m - 1) // m) * m


def _selection(out_len, in_len, stride, offset):
    """M[o, i] = 1 iff i == stride*o + offset and 0 <= i < in_len."""
    idx = stride * jnp.arange(out_len) + offset
    return (idx[:, None] == jnp.arange(in_len)[None, :]).astype(jnp.float32)


# ----------------------------------------------------------------------------
# Parameter preparation: BN folding, kw-folded tap matrices, selection blobs
# ----------------------------------------------------------------------------
class _PlanBuilder:
    """Collects the fused-kernel constants and the static execution plan."""

    def __init__(self, batch, height, width, in_ch):
        self.batch = batch
        self.x_rows = height + 2                       # 1 zero pad row top/bottom
        self.x_width_real = batch * width * in_ch
        self.x_width = _round_up(self.x_width_real, 128)
        self.buffers = []                              # list of (rows, lanes)
        self.tap_blobs = {}                            # (K, Nout) -> [slabs]
        self.r_slabs = []                              # 0/1 row-selection matrices
        self.shift_parts = []
        self.shift_off = 0

    # -- bookkeeping -----------------------------------------------------------
    def src_shape(self, src):
        if src == -1:
            return self.x_rows, self.x_width
        return self.buffers[src]

    def new_buffer(self, ho, lanes):
        self.buffers.append((ho + 2, lanes))           # 1 zero pad row each side
        return len(self.buffers) - 1

    def add_taps(self, key, slabs):
        lst = self.tap_blobs.setdefault(key, [])
        start = len(lst)
        lst.extend(slabs)
        return start

    def add_r(self, r):
        self.r_slabs.append(r)
        return len(self.r_slabs) - 1

    def add_shift(self, vec):
        off = self.shift_off
        self.shift_parts.append(vec.astype(jnp.float32))
        self.shift_off += int(vec.shape[0])
        return off, int(vec.shape[0])

    # -- one conv + folded BN ----------------------------------------------------
    def conv(self, w, bn_scale, bn_shift, *, src, h_in, w_in, stride, pad, relu):
        batch = self.batch
        kh, kw, cin, cout = (int(d) for d in w.shape)
        ho = (h_in + 2 * pad - kh) // stride + 1
        wo = (w_in + 2 * pad - kw) // stride + 1
        n_out = batch * wo * cout
        src_hp, src_lanes = self.src_shape(src)
        k_real = batch * w_in * cin
        assert k_real <= src_lanes

        # Horizontal shift/stride/pad + conv weight + BN scale folded into ONE
        # (kw-summed) tap matrix per kernel row.  Exact: disjoint non-zero entries.
        w_scaled = (w.astype(jnp.float32)
                    * bn_scale.reshape(1, 1, 1, cout).astype(jnp.float32))
        eye_n = jnp.eye(batch, dtype=jnp.float32)
        slabs = []
        for i in range(kh):
            t = jnp.zeros((w_in * cin, wo * cout), jnp.float32)
            for j in range(kw):
                cj = _selection(wo, w_in, stride, j - pad)          # (wo, w_in)
                t = t + jnp.kron(cj.T, w_scaled[i, j])
            slab = jnp.kron(eye_n, t)                               # batch block-diag
            if src_lanes > k_real:
                slab = jnp.pad(slab, ((0, src_lanes - k_real), (0, 0)))
            slabs.append(slab)
        blob_key = (src_lanes, n_out)
        tap_start = self.add_taps(blob_key, slabs)

        shift = self.add_shift(jnp.tile(bn_shift.astype(jnp.float32), batch * wo))

        # Vertical shift for stride>1 convs: one stacked 0/1 selection matrix
        # operating on the zero-padded buffer (conv padding comes for free).
        r_idx = None
        if stride != 1:
            rows = [_selection(ho, src_hp, stride, i - pad + 1) for i in range(kh)]
            r_idx = self.add_r(jnp.concatenate(rows, axis=0))       # (kh*ho, src_hp)

        desc = dict(src=src, dst=None, blob=blob_key, tap_start=tap_start,
                    kh=kh, stride=stride, pad=pad, ho=ho, hp_in=src_hp,
                    n_out=n_out, shift=shift, r_idx=r_idx, relu=relu)
        return desc, (ho, wo, cout)


def _build_plan(params, *, batch, height, width):
    b = _PlanBuilder(batch, height, width, in_ch=3)
    plan = {}

    # Stem: conv1 (3x3, stride 2, pad 1) + bn1 + relu.
    d, (h, w, c) = b.conv(params["conv1_w"], params["bn1_scale"], params["bn1_shift"],
                          src=-1, h_in=height, w_in=width, stride=2, pad=1, relu=True)
    d["dst"] = b.new_buffer(h, d["n_out"])
    plan["stem"] = d
    cur_buf = d["dst"]

    # Residual BasicBlocks (expansion == 1).
    blocks = []
    for layer_name in ("layer1", "layer2"):
        h_buf = p_buf = None
        for blk in params[layer_name]:
            h_in, w_in = h, w
            d1, (h, w, c) = b.conv(blk["conv1_w"], blk["bn1_scale"], blk["bn1_shift"],
                                   src=cur_buf, h_in=h_in, w_in=w_in,
                                   stride=blk["stride"], pad=1, relu=True)
            if h_buf is None:
                h_buf = b.new_buffer(h, d1["n_out"])
                p_buf = b.new_buffer(h, d1["n_out"])
            d1["dst"] = h_buf
            d_sc = None
            if blk["downsample"]:
                d_sc, _ = b.conv(blk["sc_w"], blk["sc_scale"], blk["sc_shift"],
                                 src=cur_buf, h_in=h_in, w_in=w_in,
                                 stride=blk["stride"], pad=0, relu=False)
            d2, (h, w, c) = b.conv(blk["conv2_w"], blk["bn2_scale"], blk["bn2_shift"],
                                   src=h_buf, h_in=h, w_in=w, stride=1, pad=1, relu=True)
            d2["dst"] = p_buf
            blocks.append(dict(conv1=d1, conv2=d2, shortcut=d_sc))
            cur_buf = p_buf
    blocks[-1]["conv2"]["dst"] = None    # final activation is consumed as a value
    plan["blocks"] = blocks

    # Head: AvgPool2d(4) over the final h x w map (== global mean here) + Linear.
    # The W/C sums, the 1/(h*w) factor and the Linear weights are folded into one
    # projection slab; the bias lives in the shift blob.
    linear_w = params["linear_w"].astype(jnp.float32)           # (C, K)
    linear_b = params["linear_b"].reshape(-1).astype(jnp.float32)
    num_classes = int(linear_w.shape[1])
    l_final = batch * w * c
    n_logits = batch * num_classes
    assert n_logits <= l_final
    proj = jnp.kron(jnp.eye(batch, dtype=jnp.float32),
                    jnp.kron(jnp.ones((w, 1), jnp.float32), linear_w)) / float(h * w)
    proj = jnp.pad(proj, ((0, 0), (0, l_final - n_logits)))     # (l_final, l_final)
    head_key = (l_final, l_final)
    plan["head"] = dict(blob=head_key, tap_idx=b.add_taps(head_key, [proj]),
                        bias=b.add_shift(jnp.tile(linear_b, batch)),
                        n_logits=n_logits, h_final=h)

    # ---- Pack constants into a handful of large operands ----
    blob_order = list(b.tap_blobs.keys())
    tap_arrays = [jnp.stack(b.tap_blobs[k]).astype(COMPUTE_DTYPE) for k in blob_order]

    def _resolve(desc):
        desc["blob_id"] = blob_order.index(desc["blob"])

    _resolve(plan["stem"])
    for blk in blocks:
        _resolve(blk["conv1"])
        _resolve(blk["conv2"])
        if blk["shortcut"] is not None:
            _resolve(blk["shortcut"])
    _resolve(plan["head"])

    if b.r_slabs:
        max_r = max(int(a.shape[0]) for a in b.r_slabs)
        max_c = max(int(a.shape[1]) for a in b.r_slabs)
        r_blob = jnp.stack(
            [jnp.pad(a, ((0, max_r - int(a.shape[0])), (0, max_c - int(a.shape[1]))))
             for a in b.r_slabs]).astype(COMPUTE_DTYPE)
    else:
        r_blob = jnp.zeros((1, 8, 128), COMPUTE_DTYPE)

    shift_blob = jnp.concatenate(b.shift_parts).reshape(1, -1).astype(jnp.float32)

    consts = [r_blob] + tap_arrays + [shift_blob]
    meta = dict(n_blobs=len(tap_arrays), buffers=list(b.buffers),
                x_width=b.x_width, x_width_real=b.x_width_real,
                num_classes=num_classes)
    return plan, consts, meta


# ----------------------------------------------------------------------------
# Fused whole-network Pallas kernel
# ----------------------------------------------------------------------------
def _make_kernel(plan, meta):
    n_blobs = meta["n_blobs"]

    def kernel(*refs):
        x_ref, r_ref = refs[0], refs[1]
        tap_refs = refs[2:2 + n_blobs]
        shift_ref = refs[2 + n_blobs]
        out_ref = refs[3 + n_blobs]
        buf_refs = refs[4 + n_blobs:]

        # Zero the scratch once: the never-written pad rows implement the conv
        # zero padding along H for every subsequent layer.
        for buf in buf_refs:
            buf[...] = jnp.zeros_like(buf)

        def run_conv(d, residual=None):
            src = x_ref if d["src"] == -1 else buf_refs[d["src"]]
            taps = tap_refs[d["blob_id"]]
            acc = None
            if d["stride"] == 1:
                # Vertical shift = static sublane slice of the padded buffer.
                for i in range(d["kh"]):
                    start = i - d["pad"] + 1
                    y = src[start:start + d["ho"], :].astype(COMPUTE_DTYPE)
                    z = jnp.dot(y, taps[d["tap_start"] + i],
                                preferred_element_type=jnp.float32)
                    acc = z if acc is None else acc + z
            else:
                # Stride-2 convs: one tiny 0/1 selection matmul produces all kh
                # shifted/strided row sets at once (exact in bf16).
                x_full = src[...].astype(COMPUTE_DTYPE)
                r = r_ref[d["r_idx"]][0:d["kh"] * d["ho"], 0:d["hp_in"]]
                y_all = jnp.dot(r, x_full, preferred_element_type=jnp.float32)
                y_all = y_all.astype(COMPUTE_DTYPE)
                for i in range(d["kh"]):
                    y = y_all[i * d["ho"]:(i + 1) * d["ho"], :]
                    z = jnp.dot(y, taps[d["tap_start"] + i],
                                preferred_element_type=jnp.float32)
                    acc = z if acc is None else acc + z
            off, ln = d["shift"]
            acc = acc + shift_ref[:, off:off + ln]      # folded BN shift (f32)
            if residual is not None:
                acc = acc + residual
            if d["relu"]:
                acc = jnp.maximum(acc, 0.0)
            if d["dst"] is not None:
                buf_refs[d["dst"]][1:1 + d["ho"], :] = acc.astype(SCRATCH_DTYPE)
            return acc

        # Stem.
        prev = run_conv(plan["stem"])

        # Residual blocks; `prev` carries the f32 block output for identity adds.
        for blk in plan["blocks"]:
            shortcut = run_conv(blk["shortcut"]) if blk["shortcut"] is not None else prev
            run_conv(blk["conv1"])
            prev = run_conv(blk["conv2"], residual=shortcut)

        # Head: H-sum via a ones-row matmul; W/C sum + 1/(h*w) + Linear weights are
        # folded into the projection slab; bias comes from the shift blob.
        hd = plan["head"]
        ones_row = jnp.ones((1, hd["h_final"]), COMPUTE_DTYPE)
        pooled = jnp.dot(ones_row, prev.astype(COMPUTE_DTYPE),
                         preferred_element_type=jnp.float32)
        logits = jnp.dot(pooled.astype(COMPUTE_DTYPE),
                         tap_refs[hd["blob_id"]][hd["tap_idx"]],
                         preferred_element_type=jnp.float32)
        off, ln = hd["bias"]
        logits = logits[:, 0:hd["n_logits"]] + shift_ref[:, off:off + ln]
        out_ref[...] = logits.astype(out_ref.dtype)

    return kernel


def build_cresnet7_forward(params, *, batch, height, width):
    plan, consts, meta = _build_plan(params, batch=batch, height=height, width=width)
    kernel = _make_kernel(plan, meta)

    n_inputs = 1 + len(consts)
    call = pl.pallas_call(
        kernel,
        out_shape=jax.ShapeDtypeStruct((1, batch * meta["num_classes"]), jnp.float32),
        in_specs=[pl.BlockSpec(memory_space=_VMEM_SPACE)] * n_inputs,
        out_specs=pl.BlockSpec(memory_space=_VMEM_SPACE),
        scratch_shapes=[pltpu.VMEM(shape, SCRATCH_DTYPE) for shape in meta["buffers"]],
        compiler_params=pltpu.CompilerParams(vmem_limit_bytes=12 * 1024 * 1024),
    )

    num_classes = meta["num_classes"]
    x_width, x_real = meta["x_width"], meta["x_width_real"]

    @jax.jit
    def forward(x_nchw):
        assert x_nchw.shape == (batch, 3, height, width)
        x = x_nchw.astype(jnp.float32)
        x = jnp.transpose(x, (2, 0, 3, 1))               # NCHW -> (H, N, W, C)
        x = x.reshape(height, batch * width * 3)         # batch/width/chan in lanes
        x = jnp.pad(x, ((1, 1), (0, x_width - x_real)))  # H pad rows + lane pad
        x = x.astype(COMPUTE_DTYPE)                      # bf16 input DMA
        logits_row = call(x, *consts)                    # (1, batch * num_classes)
        return logits_row.reshape(batch, num_classes)

    return forward


# ----------------------------------------------------------------------------
# Plain-XLA reference (for a loose numerical self-check)
# ----------------------------------------------------------------------------
def _reference_forward(x_nchw, params):
    def conv_bn(x, w, scale, shift, stride, pad, relu, residual=None):
        out = jax.lax.conv_general_dilated(
            x, w, (stride, stride), [(pad, pad), (pad, pad)],
            dimension_numbers=("NHWC", "HWIO", "NHWC"))
        out = out * scale + shift
        if residual is not None:
            out = out + residual
        return jnp.maximum(out, 0.0) if relu else out

    x = jnp.transpose(x_nchw, (0, 2, 3, 1)).astype(jnp.float32)
    out = conv_bn(x, params["conv1_w"], params["bn1_scale"], params["bn1_shift"],
                  2, 1, True)
    for layer in ("layer1", "layer2"):
        for blk in params[layer]:
            if blk["downsample"]:
                sc = conv_bn(out, blk["sc_w"], blk["sc_scale"], blk["sc_shift"],
                             blk["stride"], 0, False)
            else:
                sc = out
            h = conv_bn(out, blk["conv1_w"], blk["bn1_scale"], blk["bn1_shift"],
                        blk["stride"], 1, True)
            out = conv_bn(h, blk["conv2_w"], blk["bn2_scale"], blk["bn2_shift"],
                          1, 1, True, residual=sc)
    pooled = jnp.mean(out, axis=(1, 2))
    return pooled @ params["linear_w"] + params["linear_b"]


# ----------------------------------------------------------------------------
# Deterministic parameter construction (synthetic; no checkpoint)
# ----------------------------------------------------------------------------
def _conv_weight(key, kh, kw, cin, cout):
    bound = 1.0 / math.sqrt(cin * kh * kw)
    return jax.random.uniform(key, (kh, kw, cin, cout), jnp.float32, -bound, bound)


def _bn_affine(key, c, eps=1e-5):
    k1, k2, k3, k4 = jax.random.split(key, 4)
    gamma = jax.random.uniform(k1, (c,), jnp.float32, 0.5, 1.5)
    beta = 0.1 * jax.random.normal(k2, (c,), jnp.float32)
    mean = 0.1 * jax.random.normal(k3, (c,), jnp.float32)
    var = jax.random.uniform(k4, (c,), jnp.float32, 0.5, 1.5)
    scale = gamma / jnp.sqrt(var + eps)
    shift = beta - mean * scale
    return scale, shift


def make_block_params(key, cin, cout, stride, kernel=3):
    keys = jax.random.split(key, 6)
    downsample = (stride != 1) or (cin != cout)   # BasicBlock.expansion == 1
    p = {
        "stride": stride,
        "downsample": downsample,
        "conv1_w": _conv_weight(keys[0], kernel, kernel, cin, cout),
        "conv2_w": _conv_weight(keys[1], kernel, kernel, cout, cout),
    }
    p["bn1_scale"], p["bn1_shift"] = _bn_affine(keys[2], cout)
    p["bn2_scale"], p["bn2_shift"] = _bn_affine(keys[3], cout)
    if downsample:
        p["sc_w"] = _conv_weight(keys[4], 1, 1, cin, cout)
        p["sc_scale"], p["sc_shift"] = _bn_affine(keys[5], cout)
    return p


def make_cresnet7_params(key, in_planes=8, num_blocks=2, num_classes=10):
    keys = jax.random.split(key, 16)
    params = {}
    params["conv1_w"] = _conv_weight(keys[0], 3, 3, 3, in_planes)
    params["bn1_scale"], params["bn1_shift"] = _bn_affine(keys[1], in_planes)

    cin = in_planes
    planes = in_planes * 2
    layer1 = []
    for bi, s in enumerate([2] + [1] * (num_blocks - 1)):
        layer1.append(make_block_params(keys[2 + bi], cin, planes, s))
        cin = planes
    params["layer1"] = layer1

    layer2 = []
    for bi, s in enumerate([2] + [1] * (num_blocks - 1)):
        layer2.append(make_block_params(keys[6 + bi], cin, planes, s))
        cin = planes
    params["layer2"] = layer2

    bound = 1.0 / math.sqrt(planes)
    params["linear_w"] = jax.random.uniform(
        keys[10], (planes, num_classes), jnp.float32, -bound, bound)
    params["linear_b"] = jax.random.uniform(
        keys[11], (1, num_classes), jnp.float32, -bound, bound)
    return params


if __name__ == "__main__":
    key = jax.random.PRNGKey(0)
    kx, kp = jax.random.split(key)
    # Small CIFAR-like input (NCHW, matching the PyTorch module's convention).
    x = jax.random.normal(kx, (2, 3, 32, 32), jnp.float32)
    params = make_cresnet7_params(kp, in_planes=8, num_blocks=2, num_classes=10)

    forward = build_cresnet7_forward(params, batch=2, height=32, width=32)
    logits = forward(x)
    jax.block_until_ready(logits)
    assert logits.shape == (2, 10) and logits.dtype == jnp.float32

    # Loose self-check vs an XLA f32 reference (kernel uses bf16 MXU operands).
    ref = _reference_forward(x, params)
    err = float(jnp.max(jnp.abs(logits - ref)))
    tol = 0.1 * float(jnp.max(jnp.abs(ref))) + 0.1
    assert err <= tol, f"mismatch: max|diff|={err} tol={tol}"

    print("KERNEL_OK")
</pallas_src>

<mosaic_0001>
module attributes {stable_mosaic.version = 11 : i64} {
  func.func @kernel(%arg0: memref<34x256xbf16, #tpu.memory_space<vmem>>, %arg1: memref<5x48x34xbf16, #tpu.memory_space<vmem>>, %arg2: memref<16x256x256xbf16, #tpu.memory_space<vmem>>, %arg3: memref<4x256x128xbf16, #tpu.memory_space<vmem>>, %arg4: memref<10x128x128xbf16, #tpu.memory_space<vmem>>, %arg5: memref<1x2196xf32, #tpu.memory_space<vmem>>, %arg6: memref<1x20xf32, #tpu.memory_space<vmem>>, %arg7: memref<18x256xf32, #tpu.memory_space<vmem>>, %arg8: memref<10x256xf32, #tpu.memory_space<vmem>>, %arg9: memref<10x256xf32, #tpu.memory_space<vmem>>, %arg10: memref<6x128xf32, #tpu.memory_space<vmem>>, %arg11: memref<6x128xf32, #tpu.memory_space<vmem>>) attributes {dimension_semantics = [], scalar_prefetch = 0 : i64, scratch_operands = 5 : i64, tpu.core_type = #tpu.core_type<tc>} {
    %cst = arith.constant 0.000000e+00 : f32
    %0 = vector.broadcast %cst : f32 to vector<18x256xf32>
    %c0 = arith.constant 0 : index
    %c0_0 = arith.constant 0 : index
    %1 = vector.load %arg7[%c0, %c0_0] : memref<18x256xf32, #tpu.memory_space<vmem>>, vector<18x256xf32>
    tpu.vector_store %arg7[%c0, %c0_0], %0 {strides = array<i32>} : memref<18x256xf32, #tpu.memory_space<vmem>>, vector<18x256xf32>,
    %cst_1 = arith.constant 0.000000e+00 : f32
    %2 = vector.broadcast %cst_1 : f32 to vector<10x256xf32>
    %c0_2 = arith.constant 0 : index
    %c0_3 = arith.constant 0 : index
    %3 = vector.load %arg8[%c0_2, %c0_3] : memref<10x256xf32, #tpu.memory_space<vmem>>, vector<10x256xf32>
    tpu.vector_store %arg8[%c0_2, %c0_3], %2 {strides = array<i32>} : memref<10x256xf32, #tpu.memory_space<vmem>>, vector<10x256xf32>,
    %cst_4 = arith.constant 0.000000e+00 : f32
    %4 = vector.broadcast %cst_4 : f32 to vector<10x256xf32>
    %c0_5 = arith.constant 0 : index
    %c0_6 = arith.constant 0 : index
    %5 = vector.load %arg9[%c0_5, %c0_6] : memref<10x256xf32, #tpu.memory_space<vmem>>, vector<10x256xf32>
    tpu.vector_store %arg9[%c0_5, %c0_6], %4 {strides = array<i32>} : memref<10x256xf32, #tpu.memory_space<vmem>>, vector<10x256xf32>,
    %cst_7 = arith.constant 0.000000e+00 : f32
    %6 = vector.broadcast %cst_7 : f32 to vector<6x128xf32>
    %c0_8 = arith.constant 0 : index
    %c0_9 = arith.constant 0 : index
    %7 = vector.load %arg10[%c0_8, %c0_9] : memref<6x128xf32, #tpu.memory_space<vmem>>, vector<6x128xf32>
    tpu.vector_store %arg10[%c0_8, %c0_9], %6 {strides = array<i32>} : memref<6x128xf32, #tpu.memory_space<vmem>>, vector<6x128xf32>,
    %cst_10 = arith.constant 0.000000e+00 : f32
    %8 = vector.broadcast %cst_10 : f32 to vector<6x128xf32>
    %c0_11 = arith.constant 0 : index
    %c0_12 = arith.constant 0 : index
    %9 = vector.load %arg11[%c0_11, %c0_12] : memref<6x128xf32, #tpu.memory_space<vmem>>, vector<6x128xf32>
    tpu.vector_store %arg11[%c0_11, %c0_12], %8 {strides = array<i32>} : memref<6x128xf32, #tpu.memory_space<vmem>>, vector<6x128xf32>,
    %c0_13 = arith.constant 0 : index
    %c0_14 = arith.constant 0 : index
    %10 = vector.load %arg0[%c0_13, %c0_14] : memref<34x256xbf16, #tpu.memory_space<vmem>>, vector<34x256xbf16>
    %c0_15 = arith.constant 0 : index
    %c0_16 = arith.constant 0 : index
    %c0_17 = arith.constant 0 : index
    %11 = vector.load %arg1[%c0_15, %c0_16, %c0_17] : memref<5x48x34xbf16, #tpu.memory_space<vmem>>, vector<1x48x34xbf16>
    %12 = vector.shape_cast %11 : vector<1x48x34xbf16> to vector<48x34xbf16>
    %cst_18 = arith.constant dense<0.000000e+00> : vector<48x256xf32>
    %13 = tpu.matmul %12, %10, %cst_18 {dimension_numbers = #tpu.dot_dimension_numbers<[1], [0], [0], [1], [0, 0, 1, 1], [], []>} : vector<48x34xbf16>, vector<34x256xbf16>, vector<48x256xf32> -> vector<48x256xf32>
    %14 = arith.truncf %13 : vector<48x256xf32> to vector<48x256xbf16>
    %15 = vector.extract_strided_slice %14 {offsets = [0, 0], sizes = [16, 256], strides = [1, 1]} : vector<48x256xbf16> to vector<16x256xbf16>
    %c0_19 = arith.constant 0 : index
    %c0_20 = arith.constant 0 : index
    %c0_21 = arith.constant 0 : index
    %16 = vector.load %arg2[%c0_19, %c0_20, %c0_21] : memref<16x256x256xbf16, #tpu.memory_space<vmem>>, vector<1x256x256xbf16>
    %17 = vector.shape_cast %16 : vector<1x256x256xbf16> to vector<256x256xbf16>
    %cst_22 = arith.constant dense<0.000000e+00> : vector<16x256xf32>
    %18 = tpu.matmul %15, %17, %cst_22 {dimension_numbers = #tpu.dot_dimension_numbers<[1], [0], [0], [1], [0, 0, 1, 1], [], []>} : vector<16x256xbf16>, vector<256x256xbf16>, vector<16x256xf32> -> vector<16x256xf32>
    %19 = vector.extract_strided_slice %14 {offsets = [16, 0], sizes = [16, 256], strides = [1, 1]} : vector<48x256xbf16> to vector<16x256xbf16>
    %c1 = arith.constant 1 : index
    %c0_23 = arith.constant 0 : index
    %c0_24 = arith.constant 0 : index
    %20 = vector.load %arg2[%c1, %c0_23, %c0_24] : memref<16x256x256xbf16, #tpu.memory_space<vmem>>, vector<1x256x256xbf16>
    %21 = vector.shape_cast %20 : vector<1x256x256xbf16> to vector<256x256xbf16>
    %cst_25 = arith.constant dense<0.000000e+00> : vector<16x256xf32>
    %22 = tpu.matmul %19, %21, %cst_25 {dimension_numbers = #tpu.dot_dimension_numbers<[1], [0], [0], [1], [0, 0, 1, 1], [], []>} : vector<16x256xbf16>, vector<256x256xbf16>, vector<16x256xf32> -> vector<16x256xf32>
    %23 = arith.addf %18, %22 : vector<16x256xf32>
    %24 = vector.extract_strided_slice %14 {offsets = [32, 0], sizes = [16, 256], strides = [1, 1]} : vector<48x256xbf16> to vector<16x256xbf16>
    %c2 = arith.constant 2 : index
    %c0_26 = arith.constant 0 : index
    %c0_27 = arith.constant 0 : index
    %25 = vector.load %arg2[%c2, %c0_26, %c0_27] : memref<16x256x256xbf16, #tpu.memory_space<vmem>>, vector<1x256x256xbf16>
    %26 = vector.shape_cast %25 : vector<1x256x256xbf16> to vector<256x256xbf16>
    %cst_28 = arith.constant dense<0.000000e+00> : vector<16x256xf32>
    %27 = tpu.matmul %24, %26, %cst_28 {dimension_numbers = #tpu.dot_dimension_numbers<[1], [0], [0], [1], [0, 0, 1, 1], [], []>} : vector<16x256xbf16>, vector<256x256xbf16>, vector<16x256xf32> -> vector<16x256xf32>
    %28 = arith.addf %23, %27 : vector<16x256xf32>
    %c0_29 = arith.constant 0 : index
    %c0_30 = arith.constant 0 : index
    %29 = vector.load %arg5[%c0_29, %c0_30] : memref<1x2196xf32, #tpu.memory_space<vmem>>, vector<1x256xf32>
    %30 = vector.broadcast %29 : vector<1x256xf32> to vector<16x256xf32>
    %31 = arith.addf %28, %30 : vector<16x256xf32>
    %cst_31 = arith.constant 0.000000e+00 : f32
    %32 = vector.broadcast %cst_31 : f32 to vector<16x256xf32>
    %33 = arith.maximumf %31, %32 : vector<16x256xf32>
    %c1_32 = arith.constant 1 : index
    %c0_33 = arith.constant 0 : index
    %34 = vector.load %arg7[%c1_32, %c0_33] : memref<18x256xf32, #tpu.memory_space<vmem>>, vector<16x256xf32>
    tpu.vector_store %arg7[%c1_32, %c0_33], %33 {strides = array<i32>} : memref<18x256xf32, #tpu.memory_space<vmem>>, vector<16x256xf32>,
    %c0_34 = arith.constant 0 : index
    %c0_35 = arith.constant 0 : index
    %35 = vector.load %arg7[%c0_34, %c0_35] : memref<18x256xf32, #tpu.memory_space<vmem>>, vector<18x256xf32>
    %36 = arith.truncf %35 : vector<18x256xf32> to vector<18x256xbf16>
    %c2_36 = arith.constant 2 : index
    %c0_37 = arith.constant 0 : index
    %c0_38 = arith.constant 0 : index
    %37 = vector.load %arg1[%c2_36, %c0_37, %c0_38] : memref<5x48x34xbf16, #tpu.memory_space<vmem>>, vector<1x48x34xbf16>
    %38 = vector.shape_cast %37 : vector<1x48x34xbf16> to vector<48x34xbf16>
    %39 = vector.extract_strided_slice %38 {offsets = [0, 0], sizes = [8, 18], strides = [1, 1]} : vector<48x34xbf16> to vector<8x18xbf16>
    %cst_39 = arith.constant dense<0.000000e+00> : vector<8x256xf32>
    %40 = tpu.matmul %39, %36, %cst_39 {dimension_numbers = #tpu.dot_dimension_numbers<[1], [0], [0], [1], [0, 0, 1, 1], [], []>} : vector<8x18xbf16>, vector<18x256xbf16>, vector<8x256xf32> -> vector<8x256xf32>
    %41 = arith.truncf %40 : vector<8x256xf32> to vector<8x256xbf16>
    %c6 = arith.constant 6 : index
    %c0_40 = arith.constant 0 : index
    %c0_41 = arith.constant 0 : index
    %42 = vector.load %arg2[%c6, %c0_40, %c0_41] : memref<16x256x256xbf16, #tpu.memory_space<vmem>>, vector<1x256x256xbf16>
    %43 = vector.shape_cast %42 : vector<1x256x256xbf16> to vector<256x256xbf16>
    %cst_42 = arith.constant dense<0.000000e+00> : vector<8x256xf32>
    %44 = tpu.matmul %41, %43, %cst_42 {dimension_numbers = #tpu.dot_dimension_numbers<[1], [0], [0], [1], [0, 0, 1, 1], [], []>} : vector<8x256xbf16>, vector<256x256xbf16>, vector<8x256xf32> -> vector<8x256xf32>
    %c0_43 = arith.constant 0 : index
    %c512 = arith.constant 512 : index
    %45 = vector.load %arg5[%c0_43, %c512] : memref<1x2196xf32, #tpu.memory_space<vmem>>, vector<1x256xf32>
    %46 = vector.broadcast %45 : vector<1x256xf32> to vector<8x256xf32>
    %47 = arith.addf %44, %46 : vector<8x256xf32>
    %c0_44 = arith.constant 0 : index
    %c0_45 = arith.constant 0 : index
    %48 = vector.load %arg7[%c0_44, %c0_45] : memref<18x256xf32, #tpu.memory_space<vmem>>, vector<18x256xf32>
    %49 = arith.truncf %48 : vector<18x256xf32> to vector<18x256xbf16>
    %c1_46 = arith.constant 1 : index
    %c0_47 = arith.constant 0 : index
    %c0_48 = arith.constant 0 : index
    %50 = vector.load %arg1[%c1_46, %c0_47, %c0_48] : memref<5x48x34xbf16, #tpu.memory_space<vmem>>, vector<1x48x34xbf16>
    %51 = vector.shape_cast %50 : vector<1x48x34xbf16> to vector<48x34xbf16>
    %52 = vector.extract_strided_slice %51 {offsets = [0, 0], sizes = [24, 18], strides = [1, 1]} : vector<48x34xbf16> to vector<24x18xbf16>
    %cst_49 = arith.constant dense<0.000000e+00> : vector<24x256xf32>
    %53 = tpu.matmul %52, %49, %cst_49 {dimension_numbers = #tpu.dot_dimension_numbers<[1], [0], [0], [1], [0, 0, 1, 1], [], []>} : vector<24x18xbf16>, vector<18x256xbf16>, vector<24x256xf32> -> vector<24x256xf32>
    %54 = arith.truncf %53 : vector<24x256xf32> to vector<24x256xbf16>
    %55 = vector.extract_strided_slice %54 {offsets = [0, 0], sizes = [8, 256], strides = [1, 1]} : vector<24x256xbf16> to vector<8x256xbf16>
    %c3 = arith.constant 3 : index
    %c0_50 = arith.constant 0 : index
    %c0_51 = arith.constant 0 : index
    %56 = vector.load %arg2[%c3, %c0_50, %c0_51] : memref<16x256x256xbf16, #tpu.memory_space<vmem>>, vector<1x256x256xbf16>
    %57 = vector.shape_cast %56 : vector<1x256x256xbf16> to vector<256x256xbf16>
    %cst_52 = arith.constant dense<0.000000e+00> : vector<8x256xf32>
    %58 = tpu.matmul %55, %57, %cst_52 {dimension_numbers = #tpu.dot_dimension_numbers<[1], [0], [0], [1], [0, 0, 1, 1], [], []>} : vector<8x256xbf16>, vector<256x256xbf16>, vector<8x256xf32> -> vector<8x256xf32>
    %59 = vector.extract_strided_slice %54 {offsets = [8, 0], sizes = [8, 256], strides = [1, 1]} : vector<24x256xbf16> to vector<8x256xbf16>
    %c4 = arith.constant 4 : index
    %c0_53 = arith.constant 0 : index
    %c0_54 = arith.constant 0 : index
    %60 = vector.load %arg2[%c4, %c0_53, %c0_54] : memref<16x256x256xbf16, #tpu.memory_space<vmem>>, vector<1x256x256xbf16>
    %61 = vector.shape_cast %60 : vector<1x256x256xbf16> to vector<256x256xbf16>
    %cst_55 = arith.constant dense<0.000000e+00> : vector<8x256xf32>
    %62 = tpu.matmul %59, %61, %cst_55 {dimension_numbers = #tpu.dot_dimension_numbers<[1], [0], [0], [1], [0, 0, 1, 1], [], []>} : vector<8x256xbf16>, vector<256x256xbf16>, vector<8x256xf32> -> vector<8x256xf32>
    %63 = arith.addf %58, %62 : vector<8x256xf32>
    %64 = vector.extract_strided_slice %54 {offsets = [16, 0], sizes = [8, 256], strides = [1, 1]} : vector<24x256xbf16> to vector<8x256xbf16>
    %c5 = arith.constant 5 : index
    %c0_56 = arith.constant 0 : index
    %c0_57 = arith.constant 0 : index
    %65 = vector.load %arg2[%c5, %c0_56, %c0_57] : memref<16x256x256xbf16, #tpu.memory_space<vmem>>, vector<1x256x256xbf16>
    %66 = vector.shape_cast %65 : vector<1x256x256xbf16> to vector<256x256xbf16>
    %cst_58 = arith.constant dense<0.000000e+00> : vector<8x256xf32>
    %67 = tpu.matmul %64, %66, %cst_58 {dimension_numbers = #tpu.dot_dimension_numbers<[1], [0], [0], [1], [0, 0, 1, 1], [], []>} : vector<8x256xbf16>, vector<256x256xbf16>, vector<8x256xf32> -> vector<8x256xf32>
    %68 = arith.addf %63, %67 : vector<8x256xf32>
    %c0_59 = arith.constant 0 : index
    %c256 = arith.constant 256 : index
    %69 = vector.load %arg5[%c0_59, %c256] : memref<1x2196xf32, #tpu.memory_space<vmem>>, vector<1x256xf32>
    %70 = vector.broadcast %69 : vector<1x256xf32> to vector<8x256xf32>
    %71 = arith.addf %68, %70 : vector<8x256xf32>
    %cst_60 = arith.constant 0.000000e+00 : f32
    %72 = vector.broadcast %cst_60 : f32 to vector<8x256xf32>
    %73 = arith.maximumf %71, %72 : vector<8x256xf32>
    %c1_61 = arith.constant 1 : index
    %c0_62 = arith.constant 0 : index
    %74 = vector.load %arg8[%c1_61, %c0_62] : memref<10x256xf32, #tpu.memory_space<vmem>>, vector<8x256xf32>
    tpu.vector_store %arg8[%c1_61, %c0_62], %73 {strides = array<i32>} : memref<10x256xf32, #tpu.memory_space<vmem>>, vector<8x256xf32>,
    %c0_63 = arith.constant 0 : index
    %c0_64 = arith.constant 0 : index
    %75 = vector.load %arg8[%c0_63, %c0_64] : memref<10x256xf32, #tpu.memory_space<vmem>>, vector<8x256xf32>
    %76 = arith.truncf %75 : vector<8x256xf32> to vector<8x256xbf16>
    %c7 = arith.constant 7 : index
    %c0_65 = arith.constant 0 : index
    %c0_66 = arith.constant 0 : index
    %77 = vector.load %arg2[%c7, %c0_65, %c0_66] : memref<16x256x256xbf16, #tpu.memory_space<vmem>>, vector<1x256x256xbf16>
    %78 = vector.shape_cast %77 : vector<1x256x256xbf16> to vector<256x256xbf16>
    %cst_67 = arith.constant dense<0.000000e+00> : vector<8x256xf32>
    %79 = tpu.matmul %76, %78, %cst_67 {dimension_numbers = #tpu.dot_dimension_numbers<[1], [0], [0], [1], [0, 0, 1, 1], [], []>} : vector<8x256xbf16>, vector<256x256xbf16>, vector<8x256xf32> -> vector<8x256xf32>
    %c1_68 = arith.constant 1 : index
    %c0_69 = arith.constant 0 : index
    %80 = vector.load %arg8[%c1_68, %c0_69] : memref<10x256xf32, #tpu.memory_space<vmem>>, vector<8x256xf32>
    %81 = arith.truncf %80 : vector<8x256xf32> to vector<8x256xbf16>
    %c8 = arith.constant 8 : index
    %c0_70 = arith.constant 0 : index
    %c0_71 = arith.constant 0 : index
    %82 = vector.load %arg2[%c8, %c0_70, %c0_71] : memref<16x256x256xbf16, #tpu.memory_space<vmem>>, vector<1x256x256xbf16>
    %83 = vector.shape_cast %82 : vector<1x256x256xbf16> to vector<256x256xbf16>
    %cst_72 = arith.constant dense<0.000000e+00> : vector<8x256xf32>
    %84 = tpu.matmul %81, %83, %cst_72 {dimension_numbers = #tpu.dot_dimension_numbers<[1], [0], [0], [1], [0, 0, 1, 1], [], []>} : vector<8x256xbf16>, vector<256x256xbf16>, vector<8x256xf32> -> vector<8x256xf32>
    %85 = arith.addf %79, %84 : vector<8x256xf32>
    %c2_73 = arith.constant 2 : index
    %c0_74 = arith.constant 0 : index
    %86 = vector.load %arg8[%c2_73, %c0_74] : memref<10x256xf32, #tpu.memory_space<vmem>>, vector<8x256xf32>
    %87 = arith.truncf %86 : vector<8x256xf32> to vector<8x256xbf16>
    %c9 = arith.constant 9 : index
    %c0_75 = arith.constant 0 : index
    %c0_76 = arith.constant 0 : index
    %88 = vector.load %arg2[%c9, %c0_75, %c0_76] : memref<16x256x256xbf16, #tpu.memory_space<vmem>>, vector<1x256x256xbf16>
    %89 = vector.shape_cast %88 : vector<1x256x256xbf16> to vector<256x256xbf16>
    %cst_77 = arith.constant dense<0.000000e+00> : vector<8x256xf32>
    %90 = tpu.matmul %87, %89, %cst_77 {dimension_numbers = #tpu.dot_dimension_numbers<[1], [0], [0], [1], [0, 0, 1, 1], [], []>} : vector<8x256xbf16>, vector<256x256xbf16>, vector<8x256xf32> -> vector<8x256xf32>
    %91 = arith.addf %85, %90 : vector<8x256xf32>
    %c0_78 = arith.constant 0 : index
    %c768 = arith.constant 768 : index
    %92 = vector.load %arg5[%c0_78, %c768] : memref<1x2196xf32, #tpu.memory_space<vmem>>, vector<1x256xf32>
    %93 = vector.broadcast %92 : vector<1x256xf32> to vector<8x256xf32>
    %94 = arith.addf %91, %93 : vector<8x256xf32>
    %95 = arith.addf %94, %47 : vector<8x256xf32>
    %cst_79 = arith.constant 0.000000e+00 : f32
    %96 = vector.broadcast %cst_79 : f32 to vector<8x256xf32>
    %97 = arith.maximumf %95, %96 : vector<8x256xf32>
    %c1_80 = arith.constant 1 : index
    %c0_81 = arith.constant 0 : index
    %98 = vector.load %arg9[%c1_80, %c0_81] : memref<10x256xf32, #tpu.memory_space<vmem>>, vector<8x256xf32>
    tpu.vector_store %arg9[%c1_80, %c0_81], %97 {strides = array<i32>} : memref<10x256xf32, #tpu.memory_space<vmem>>, vector<8x256xf32>,
    %c0_82 = arith.constant 0 : index
    %c0_83 = arith.constant 0 : index
    %99 = vector.load %arg9[%c0_82, %c0_83] : memref<10x256xf32, #tpu.memory_space<vmem>>, vector<8x256xf32>
    %100 = arith.truncf %99 : vector<8x256xf32> to vector<8x256xbf16>
    %c10 = arith.constant 10 : index
    %c0_84 = arith.constant 0 : index
    %c0_85 = arith.constant 0 : index
    %101 = vector.load %arg2[%c10, %c0_84, %c0_85] : memref<16x256x256xbf16, #tpu.memory_space<vmem>>, vector<1x256x256xbf16>
    %102 = vector.shape_cast %101 : vector<1x256x256xbf16> to vector<256x256xbf16>
    %cst_86 = arith.constant dense<0.000000e+00> : vector<8x256xf32>
    %103 = tpu.matmul %100, %102, %cst_86 {dimension_numbers = #tpu.dot_dimension_numbers<[1], [0], [0], [1], [0, 0, 1, 1], [], []>} : vector<8x256xbf16>, vector<256x256xbf16>, vector<8x256xf32> -> vector<8x256xf32>
    %c1_87 = arith.constant 1 : index
    %c0_88 = arith.constant 0 : index
    %104 = vector.load %arg9[%c1_87, %c0_88] : memref<10x256xf32, #tpu.memory_space<vmem>>, vector<8x256xf32>
    %105 = arith.truncf %104 : vector<8x256xf32> to vector<8x256xbf16>
    %c11 = arith.constant 11 : index
    %c0_89 = arith.constant 0 : index
    %c0_90 = arith.constant 0 : index
    %106 = vector.load %arg2[%c11, %c0_89, %c0_90] : memref<16x256x256xbf16, #tpu.memory_space<vmem>>, vector<1x256x256xbf16>
    %107 = vector.shape_cast %106 : vector<1x256x256xbf16> to vector<256x256xbf16>
    %cst_91 = arith.constant dense<0.000000e+00> : vector<8x256xf32>
    %108 = tpu.matmul %105, %107, %cst_91 {dimension_numbers = #tpu.dot_dimension_numbers<[1], [0], [0], [1], [0, 0, 1, 1], [], []>} : vector<8x256xbf16>, vector<256x256xbf16>, vector<8x256xf32> -> vector<8x256xf32>
    %109 = arith.addf %103, %108 : vector<8x256xf32>
    %c2_92 = arith.constant 2 : index
    %c0_93 = arith.constant 0 : index
    %110 = vector.load %arg9[%c2_92, %c0_93] : memref<10x256xf32, #tpu.memory_space<vmem>>, vector<8x256xf32>
    %111 = arith.truncf %110 : vector<8x256xf32> to vector<8x256xbf16>
    %c12 = arith.constant 12 : index
    %c0_94 = arith.constant 0 : index
    %c0_95 = arith.constant 0 : index
    %112 = vector.load %arg2[%c12, %c0_94, %c0_95] : memref<16x256x256xbf16, #tpu.memory_space<vmem>>, vector<1x256x256xbf16>
    %113 = vector.shape_cast %112 : vector<1x256x256xbf16> to vector<256x256xbf16>
    %cst_96 = arith.constant dense<0.000000e+00> : vector<8x256xf32>
    %114 = tpu.matmul %111, %113, %cst_96 {dimension_numbers = #tpu.dot_dimension_numbers<[1], [0], [0], [1], [0, 0, 1, 1], [], []>} : vector<8x256xbf16>, vector<256x256xbf16>, vector<8x256xf32> -> vector<8x256xf32>
    %115 = arith.addf %109, %114 : vector<8x256xf32>
    %c0_97 = arith.constant 0 : index
    %c1024 = arith.constant 1024 : index
    %116 = vector.load %arg5[%c0_97, %c1024] : memref<1x2196xf32, #tpu.memory_space<vmem>>, vector<1x256xf32>
    %117 = vector.broadcast %116 : vector<1x256xf32> to vector<8x256xf32>
    %118 = arith.addf %115, %117 : vector<8x256xf32>
    %cst_98 = arith.constant 0.000000e+00 : f32
    %119 = vector.broadcast %cst_98 : f32 to vector<8x256xf32>
    %120 = arith.maximumf %118, %119 : vector<8x256xf32>
    %c1_99 = arith.constant 1 : index
    %c0_100 = arith.constant 0 : index
    %121 = vector.load %arg8[%c1_99, %c0_100] : memref<10x256xf32, #tpu.memory_space<vmem>>, vector<8x256xf32>
    tpu.vector_store %arg8[%c1_99, %c0_100], %120 {strides = array<i32>} : memref<10x256xf32, #tpu.memory_space<vmem>>, vector<8x256xf32>,
    %c0_101 = arith.constant 0 : index
    %c0_102 = arith.constant 0 : index
    %122 = vector.load %arg8[%c0_101, %c0_102] : memref<10x256xf32, #tpu.memory_space<vmem>>, vector<8x256xf32>
    %123 = arith.truncf %122 : vector<8x256xf32> to vector<8x256xbf16>
    %c13 = arith.constant 13 : index
    %c0_103 = arith.constant 0 : index
    %c0_104 = arith.constant 0 : index
    %124 = vector.load %arg2[%c13, %c0_103, %c0_104] : memref<16x256x256xbf16, #tpu.memory_space<vmem>>, vector<1x256x256xbf16>
    %125 = vector.shape_cast %124 : vector<1x256x256xbf16> to vector<256x256xbf16>
    %cst_105 = arith.constant dense<0.000000e+00> : vector<8x256xf32>
    %126 = tpu.matmul %123, %125, %cst_105 {dimension_numbers = #tpu.dot_dimension_numbers<[1], [0], [0], [1], [0, 0, 1, 1], [], []>} : vector<8x256xbf16>, vector<256x256xbf16>, vector<8x256xf32> -> vector<8x256xf32>
    %c1_106 = arith.constant 1 : index
    %c0_107 = arith.constant 0 : index
    %127 = vector.load %arg8[%c1_106, %c0_107] : memref<10x256xf32, #tpu.memory_space<vmem>>, vector<8x256xf32>
    %128 = arith.truncf %127 : vector<8x256xf32> to vector<8x256xbf16>
    %c14 = arith.constant 14 : index
    %c0_108 = arith.constant 0 : index
    %c0_109 = arith.constant 0 : index
    %129 = vector.load %arg2[%c14, %c0_108, %c0_109] : memref<16x256x256xbf16, #tpu.memory_space<vmem>>, vector<1x256x256xbf16>
    %130 = vector.shape_cast %129 : vector<1x256x256xbf16> to vector<256x256xbf16>
    %cst_110 = arith.constant dense<0.000000e+00> : vector<8x256xf32>
    %131 = tpu.matmul %128, %130, %cst_110 {dimension_numbers = #tpu.dot_dimension_numbers<[1], [0], [0], [1], [0, 0, 1, 1], [], []>} : vector<8x256xbf16>, vector<256x256xbf16>, vector<8x256xf32> -> vector<8x256xf32>
    %132 = arith.addf %126, %131 : vector<8x256xf32>
    %c2_111 = arith.constant 2 : index
    %c0_112 = arith.constant 0 : index
    %133 = vector.load %arg8[%c2_111, %c0_112] : memref<10x256xf32, #tpu.memory_space<vmem>>, vector<8x256xf32>
    %134 = arith.truncf %133 : vector<8x256xf32> to vector<8x256xbf16>
    %c15 = arith.constant 15 : index
    %c0_113 = arith.constant 0 : index
    %c0_114 = arith.constant 0 : index
    %135 = vector.load %arg2[%c15, %c0_113, %c0_114] : memref<16x256x256xbf16, #tpu.memory_space<vmem>>, vector<1x256x256xbf16>
    %136 = vector.shape_cast %135 : vector<1x256x256xbf16> to vector<256x256xbf16>
    %cst_115 = arith.constant dense<0.000000e+00> : vector<8x256xf32>
    %137 = tpu.matmul %134, %136, %cst_115 {dimension_numbers = #tpu.dot_dimension_numbers<[1], [0], [0], [1], [0, 0, 1, 1], [], []>} : vector<8x256xbf16>, vector<256x256xbf16>, vector<8x256xf32> -> vector<8x256xf32>
    %138 = arith.addf %132, %137 : vector<8x256xf32>
    %c0_116 = arith.constant 0 : index
    %c1280 = arith.constant 1280 : index
    %139 = vector.load %arg5[%c0_116, %c1280] : memref<1x2196xf32, #tpu.memory_space<vmem>>, vector<1x256xf32>
    %140 = vector.broadcast %139 : vector<1x256xf32> to vector<8x256xf32>
    %141 = arith.addf %138, %140 : vector<8x256xf32>
    %142 = arith.addf %141, %97 : vector<8x256xf32>
    %cst_117 = arith.constant 0.000000e+00 : f32
    %143 = vector.broadcast %cst_117 : f32 to vector<8x256xf32>
    %144 = arith.maximumf %142, %143 : vector<8x256xf32>
    %c1_118 = arith.constant 1 : index
    %c0_119 = arith.constant 0 : index
    %145 = vector.load %arg9[%c1_118, %c0_119] : memref<10x256xf32, #tpu.memory_space<vmem>>, vector<8x256xf32>
    tpu.vector_store %arg9[%c1_118, %c0_119], %144 {strides = array<i32>} : memref<10x256xf32, #tpu.memory_space<vmem>>, vector<8x256xf32>,
    %c0_120 = arith.constant 0 : index
    %c0_121 = arith.constant 0 : index
    %146 = vector.load %arg9[%c0_120, %c0_121] : memref<10x256xf32, #tpu.memory_space<vmem>>, vector<10x256xf32>
    %147 = arith.truncf %146 : vector<10x256xf32> to vector<10x256xbf16>
    %c4_122 = arith.constant 4 : index
    %c0_123 = arith.constant 0 : index
    %c0_124 = arith.constant 0 : index
    %148 = vector.load %arg1[%c4_122, %c0_123, %c0_124] : memref<5x48x34xbf16, #tpu.memory_space<vmem>>, vector<1x48x34xbf16>
    %149 = vector.shape_cast %148 : vector<1x48x34xbf16> to vector<48x34xbf16>
    %150 = vector.extract_strided_slice %149 {offsets = [0, 0], sizes = [4, 10], strides = [1, 1]} : vector<48x34xbf16> to vector<4x10xbf16>
    %cst_125 = arith.constant dense<0.000000e+00> : vector<4x256xf32>
    %151 = tpu.matmul %150, %147, %cst_125 {dimension_numbers = #tpu.dot_dimension_numbers<[1], [0], [0], [1], [0, 0, 1, 1], [], []>} : vector<4x10xbf16>, vector<10x256xbf16>, vector<4x256xf32> -> vector<4x256xf32>
    %152 = arith.truncf %151 : vector<4x256xf32> to vector<4x256xbf16>
    %c3_126 = arith.constant 3 : index
    %c0_127 = arith.constant 0 : index
    %c0_128 = arith.constant 0 : index
    %153 = vector.load %arg3[%c3_126, %c0_127, %c0_128] : memref<4x256x128xbf16, #tpu.memory_space<vmem>>, vector<1x256x128xbf16>
    %154 = vector.shape_cast %153 : vector<1x256x128xbf16> to vector<256x128xbf16>
    %cst_129 = arith.constant dense<0.000000e+00> : vector<4x128xf32>
    %155 = tpu.matmul %152, %154, %cst_129 {dimension_numbers = #tpu.dot_dimension_numbers<[1], [0], [0], [1], [0, 0, 1, 1], [], []>} : vector<4x256xbf16>, vector<256x128xbf16>, vector<4x128xf32> -> vector<4x128xf32>
    %c0_130 = arith.constant 0 : index
    %c1664 = arith.constant 1664 : index
    %156 = vector.load %arg5[%c0_130, %c1664] : memref<1x2196xf32, #tpu.memory_space<vmem>>, vector<1x128xf32>
    %157 = vector.broadcast %156 : vector<1x128xf32> to vector<4x128xf32>
    %158 = arith.addf %155, %157 : vector<4x128xf32>
    %c0_131 = arith.constant 0 : index
    %c0_132 = arith.constant 0 : index
    %159 = vector.load %arg9[%c0_131, %c0_132] : memref<10x256xf32, #tpu.memory_space<vmem>>, vector<10x256xf32>
    %160 = arith.truncf %159 : vector<10x256xf32> to vector<10x256xbf16>
    %c3_133 = arith.constant 3 : index
    %c0_134 = arith.constant 0 : index
    %c0_135 = arith.constant 0 : index
    %161 = vector.load %arg1[%c3_133, %c0_134, %c0_135] : memref<5x48x34xbf16, #tpu.memory_space<vmem>>, vector<1x48x34xbf16>
    %162 = vector.shape_cast %161 : vector<1x48x34xbf16> to vector<48x34xbf16>
    %163 = vector.extract_strided_slice %162 {offsets = [0, 0], sizes = [12, 10], strides = [1, 1]} : vector<48x34xbf16> to vector<12x10xbf16>
    %cst_136 = arith.constant dense<0.000000e+00> : vector<12x256xf32>
    %164 = tpu.matmul %163, %160, %cst_136 {dimension_numbers = #tpu.dot_dimension_numbers<[1], [0], [0], [1], [0, 0, 1, 1], [], []>} : vector<12x10xbf16>, vector<10x256xbf16>, vector<12x256xf32> -> vector<12x256xf32>
    %165 = arith.truncf %164 : vector<12x256xf32> to vector<12x256xbf16>
    %166 = vector.extract_strided_slice %165 {offsets = [0, 0], sizes = [4, 256], strides = [1, 1]} : vector<12x256xbf16> to vector<4x256xbf16>
    %c0_137 = arith.constant 0 : index
    %c0_138 = arith.constant 0 : index
    %c0_139 = arith.constant 0 : index
    %167 = vector.load %arg3[%c0_137, %c0_138, %c0_139] : memref<4x256x128xbf16, #tpu.memory_space<vmem>>, vector<1x256x128xbf16>
    %168 = vector.shape_cast %167 : vector<1x256x128xbf16> to vector<256x128xbf16>
    %cst_140 = arith.constant dense<0.000000e+00> : vector<4x128xf32>
    %169 = tpu.matmul %166, %168, %cst_140 {dimension_numbers = #tpu.dot_dimension_numbers<[1], [0], [0], [1], [0, 0, 1, 1], [], []>} : vector<4x256xbf16>, vector<256x128xbf16>, vector<4x128xf32> -> vector<4x128xf32>
    %170 = vector.extract_strided_slice %165 {offsets = [4, 0], sizes = [4, 256], strides = [1, 1]} : vector<12x256xbf16> to vector<4x256xbf16>
    %c1_141 = arith.constant 1 : index
    %c0_142 = arith.constant 0 : index
    %c0_143 = arith.constant 0 : index
    %171 = vector.load %arg3[%c1_141, %c0_142, %c0_143] : memref<4x256x128xbf16, #tpu.memory_space<vmem>>, vector<1x256x128xbf16>
    %172 = vector.shape_cast %171 : vector<1x256x128xbf16> to vector<256x128xbf16>
    %cst_144 = arith.constant dense<0.000000e+00> : vector<4x128xf32>
    %173 = tpu.matmul %170, %172, %cst_144 {dimension_numbers = #tpu.dot_dimension_numbers<[1], [0], [0], [1], [0, 0, 1, 1], [], []>} : vector<4x256xbf16>, vector<256x128xbf16>, vector<4x128xf32> -> vector<4x128xf32>
    %174 = arith.addf %169, %173 : vector<4x128xf32>
    %175 = vector.extract_strided_slice %165 {offsets = [8, 0], sizes = [4, 256], strides = [1, 1]} : vector<12x256xbf16> to vector<4x256xbf16>
    %c2_145 = arith.constant 2 : index
    %c0_146 = arith.constant 0 : index
    %c0_147 = arith.constant 0 : index
    %176 = vector.load %arg3[%c2_145, %c0_146, %c0_147] : memref<4x256x128xbf16, #tpu.memory_space<vmem>>, vector<1x256x128xbf16>
    %177 = vector.shape_cast %176 : vector<1x256x128xbf16> to vector<256x128xbf16>
    %cst_148 = arith.constant dense<0.000000e+00> : vector<4x128xf32>
    %178 = tpu.matmul %175, %177, %cst_148 {dimension_numbers = #tpu.dot_dimension_numbers<[1], [0], [0], [1], [0, 0, 1, 1], [], []>} : vector<4x256xbf16>, vector<256x128xbf16>, vector<4x128xf32> -> vector<4x128xf32>
    %179 = arith.addf %174, %178 : vector<4x128xf32>
    %c0_149 = arith.constant 0 : index
    %c1536 = arith.constant 1536 : index
    %180 = vector.load %arg5[%c0_149, %c1536] : memref<1x2196xf32, #tpu.memory_space<vmem>>, vector<1x128xf32>
    %181 = vector.broadcast %180 : vector<1x128xf32> to vector<4x128xf32>
    %182 = arith.addf %179, %181 : vector<4x128xf32>
    %cst_150 = arith.constant 0.000000e+00 : f32
    %183 = vector.broadcast %cst_150 : f32 to vector<4x128xf32>
    %184 = arith.maximumf %182, %183 : vector<4x128xf32>
    %c1_151 = arith.constant 1 : index
    %c0_152 = arith.constant 0 : index
    %185 = vector.load %arg10[%c1_151, %c0_152] : memref<6x128xf32, #tpu.memory_space<vmem>>, vector<4x128xf32>
    tpu.vector_store %arg10[%c1_151, %c0_152], %184 {strides = array<i32>} : memref<6x128xf32, #tpu.memory_space<vmem>>, vector<4x128xf32>,
    %c0_153 = arith.constant 0 : index
    %c0_154 = arith.constant 0 : index
    %186 = vector.load %arg10[%c0_153, %c0_154] : memref<6x128xf32, #tpu.memory_space<vmem>>, vector<4x128xf32>
    %187 = arith.truncf %186 : vector<4x128xf32> to vector<4x128xbf16>
    %c0_155 = arith.constant 0 : index
    %c0_156 = arith.constant 0 : index
    %c0_157 = arith.constant 0 : index
    %188 = vector.load %arg4[%c0_155, %c0_156, %c0_157] : memref<10x128x128xbf16, #tpu.memory_space<vmem>>, vector<1x128x128xbf16>
    %189 = vector.shape_cast %188 : vector<1x128x128xbf16> to vector<128x128xbf16>
    %cst_158 = arith.constant dense<0.000000e+00> : vector<4x128xf32>
    %190 = tpu.matmul %187, %189, %cst_158 {dimension_numbers = #tpu.dot_dimension_numbers<[1], [0], [0], [1], [0, 0, 1, 1], [], []>} : vector<4x128xbf16>, vector<128x128xbf16>, vector<4x128xf32> -> vector<4x128xf32>
    %c1_159 = arith.constant 1 : index
    %c0_160 = arith.constant 0 : index
    %191 = vector.load %arg10[%c1_159, %c0_160] : memref<6x128xf32, #tpu.memory_space<vmem>>, vector<4x128xf32>
    %192 = arith.truncf %191 : vector<4x128xf32> to vector<4x128xbf16>
    %c1_161 = arith.constant 1 : index
    %c0_162 = arith.constant 0 : index
    %c0_163 = arith.constant 0 : index
    %193 = vector.load %arg4[%c1_161, %c0_162, %c0_163] : memref<10x128x128xbf16, #tpu.memory_space<vmem>>, vector<1x128x128xbf16>
    %194 = vector.shape_cast %193 : vector<1x128x128xbf16> to vector<128x128xbf16>
    %cst_164 = arith.constant dense<0.000000e+00> : vector<4x128xf32>
    %195 = tpu.matmul %192, %194, %cst_164 {dimension_numbers = #tpu.dot_dimension_numbers<[1], [0], [0], [1], [0, 0, 1, 1], [], []>} : vector<4x128xbf16>, vector<128x128xbf16>, vector<4x128xf32> -> vector<4x128xf32>
    %196 = arith.addf %190, %195 : vector<4x128xf32>
    %c2_165 = arith.constant 2 : index
    %c0_166 = arith.constant 0 : index
    %197 = vector.load %arg10[%c2_165, %c0_166] : memref<6x128xf32, #tpu.memory_space<vmem>>, vector<4x128xf32>
    %198 = arith.truncf %197 : vector<4x128xf32> to vector<4x128xbf16>
    %c2_167 = arith.constant 2 : index
    %c0_168 = arith.constant 0 : index
    %c0_169 = arith.constant 0 : index
    %199 = vector.load %arg4[%c2_167, %c0_168, %c0_169] : memref<10x128x128xbf16, #tpu.memory_space<vmem>>, vector<1x128x128xbf16>
    %200 = vector.shape_cast %199 : vector<1x128x128xbf16> to vector<128x128xbf16>
    %cst_170 = arith.constant dense<0.000000e+00> : vector<4x128xf32>
    %201 = tpu.matmul %198, %200, %cst_170 {dimension_numbers = #tpu.dot_dimension_numbers<[1], [0], [0], [1], [0, 0, 1, 1], [], []>} : vector<4x128xbf16>, vector<128x128xbf16>, vector<4x128xf32> -> vector<4x128xf32>
    %202 = arith.addf %196, %201 : vector<4x128xf32>
    %c0_171 = arith.constant 0 : index
    %c1792 = arith.constant 1792 : index
    %203 = vector.load %arg5[%c0_171, %c1792] : memref<1x2196xf32, #tpu.memory_space<vmem>>, vector<1x128xf32>
    %204 = vector.broadcast %203 : vector<1x128xf32> to vector<4x128xf32>
    %205 = arith.addf %202, %204 : vector<4x128xf32>
    %206 = arith.addf %205, %158 : vector<4x128xf32>
    %cst_172 = arith.constant 0.000000e+00 : f32
    %207 = vector.broadcast %cst_172 : f32 to vector<4x128xf32>
    %208 = arith.maximumf %206, %207 : vector<4x128xf32>
    %c1_173 = arith.constant 1 : index
    %c0_174 = arith.constant 0 : index
    %209 = vector.load %arg11[%c1_173, %c0_174] : memref<6x128xf32, #tpu.memory_space<vmem>>, vector<4x128xf32>
    tpu.vector_store %arg11[%c1_173, %c0_174], %208 {strides = array<i32>} : memref<6x128xf32, #tpu.memory_space<vmem>>, vector<4x128xf32>,
    %c0_175 = arith.constant 0 : index
    %c0_176 = arith.constant 0 : index
    %210 = vector.load %arg11[%c0_175, %c0_176] : memref<6x128xf32, #tpu.memory_space<vmem>>, vector<4x128xf32>
    %211 = arith.truncf %210 : vector<4x128xf32> to vector<4x128xbf16>
    %c3_177 = arith.constant 3 : index
    %c0_178 = arith.constant 0 : index
    %c0_179 = arith.constant 0 : index
    %212 = vector.load %arg4[%c3_177, %c0_178, %c0_179] : memref<10x128x128xbf16, #tpu.memory_space<vmem>>, vector<1x128x128xbf16>
    %213 = vector.shape_cast %212 : vector<1x128x128xbf16> to vector<128x128xbf16>
    %cst_180 = arith.constant dense<0.000000e+00> : vector<4x128xf32>
    %214 = tpu.matmul %211, %213, %cst_180 {dimension_numbers = #tpu.dot_dimension_numbers<[1], [0], [0], [1], [0, 0, 1, 1], [], []>} : vector<4x128xbf16>, vector<128x128xbf16>, vector<4x128xf32> -> vector<4x128xf32>
    %c1_181 = arith.constant 1 : index
    %c0_182 = arith.constant 0 : index
    %215 = vector.load %arg11[%c1_181, %c0_182] : memref<6x128xf32, #tpu.memory_space<vmem>>, vector<4x128xf32>
    %216 = arith.truncf %215 : vector<4x128xf32> to vector<4x128xbf16>
    %c4_183 = arith.constant 4 : index
    %c0_184 = arith.constant 0 : index
    %c0_185 = arith.constant 0 : index
    %217 = vector.load %arg4[%c4_183, %c0_184, %c0_185] : memref<10x128x128xbf16, #tpu.memory_space<vmem>>, vector<1x128x128xbf16>
    %218 = vector.shape_cast %217 : vector<1x128x128xbf16> to vector<128x128xbf16>
    %cst_186 = arith.constant dense<0.000000e+00> : vector<4x128xf32>
    %219 = tpu.matmul %216, %218, %cst_186 {dimension_numbers = #tpu.dot_dimension_numbers<[1], [0], [0], [1], [0, 0, 1, 1], [], []>} : vector<4x128xbf16>, vector<128x128xbf16>, vector<4x128xf32> -> vector<4x128xf32>
    %220 = arith.addf %214, %219 : vector<4x128xf32>
    %c2_187 = arith.constant 2 : index
    %c0_188 = arith.constant 0 : index
    %221 = vector.load %arg11[%c2_187, %c0_188] : memref<6x128xf32, #tpu.memory_space<vmem>>, vector<4x128xf32>
    %222 = arith.truncf %221 : vector<4x128xf32> to vector<4x128xbf16>
    %c5_189 = arith.constant 5 : index
    %c0_190 = arith.constant 0 : index
    %c0_191 = arith.constant 0 : index
    %223 = vector.load %arg4[%c5_189, %c0_190, %c0_191] : memref<10x128x128xbf16, #tpu.memory_space<vmem>>, vector<1x128x128xbf16>
    %224 = vector.shape_cast %223 : vector<1x128x128xbf16> to vector<128x128xbf16>
    %cst_192 = arith.constant dense<0.000000e+00> : vector<4x128xf32>
    %225 = tpu.matmul %222, %224, %cst_192 {dimension_numbers = #tpu.dot_dimension_numbers<[1], [0], [0], [1], [0, 0, 1, 1], [], []>} : vector<4x128xbf16>, vector<128x128xbf16>, vector<4x128xf32> -> vector<4x128xf32>
    %226 = arith.addf %220, %225 : vector<4x128xf32>
    %c0_193 = arith.constant 0 : index
    %c1920 = arith.constant 1920 : index
    %227 = vector.load %arg5[%c0_193, %c1920] : memref<1x2196xf32, #tpu.memory_space<vmem>>, vector<1x128xf32>
    %228 = vector.broadcast %227 : vector<1x128xf32> to vector<4x128xf32>
    %229 = arith.addf %226, %228 : vector<4x128xf32>
    %cst_194 = arith.constant 0.000000e+00 : f32
    %230 = vector.broadcast %cst_194 : f32 to vector<4x128xf32>
    %231 = arith.maximumf %229, %230 : vector<4x128xf32>
    %c1_195 = arith.constant 1 : index
    %c0_196 = arith.constant 0 : index
    %232 = vector.load %arg10[%c1_195, %c0_196] : memref<6x128xf32, #tpu.memory_space<vmem>>, vector<4x128xf32>
    tpu.vector_store %arg10[%c1_195, %c0_196], %231 {strides = array<i32>} : memref<6x128xf32, #tpu.memory_space<vmem>>, vector<4x128xf32>,
    %c0_197 = arith.constant 0 : index
    %c0_198 = arith.constant 0 : index
    %233 = vector.load %arg10[%c0_197, %c0_198] : memref<6x128xf32, #tpu.memory_space<vmem>>, vector<4x128xf32>
    %234 = arith.truncf %233 : vector<4x128xf32> to vector<4x128xbf16>
    %c6_199 = arith.constant 6 : index
    %c0_200 = arith.constant 0 : index
    %c0_201 = arith.constant 0 : index
    %235 = vector.load %arg4[%c6_199, %c0_200, %c0_201] : memref<10x128x128xbf16, #tpu.memory_space<vmem>>, vector<1x128x128xbf16>
    %236 = vector.shape_cast %235 : vector<1x128x128xbf16> to vector<128x128xbf16>
    %cst_202 = arith.constant dense<0.000000e+00> : vector<4x128xf32>
    %237 = tpu.matmul %234, %236, %cst_202 {dimension_numbers = #tpu.dot_dimension_numbers<[1], [0], [0], [1], [0, 0, 1, 1], [], []>} : vector<4x128xbf16>, vector<128x128xbf16>, vector<4x128xf32> -> vector<4x128xf32>
    %c1_203 = arith.constant 1 : index
    %c0_204 = arith.constant 0 : index
    %238 = vector.load %arg10[%c1_203, %c0_204] : memref<6x128xf32, #tpu.memory_space<vmem>>, vector<4x128xf32>
    %239 = arith.truncf %238 : vector<4x128xf32> to vector<4x128xbf16>
    %c7_205 = arith.constant 7 : index
    %c0_206 = arith.constant 0 : index
    %c0_207 = arith.constant 0 : index
    %240 = vector.load %arg4[%c7_205, %c0_206, %c0_207] : memref<10x128x128xbf16, #tpu.memory_space<vmem>>, vector<1x128x128xbf16>
    %241 = vector.shape_cast %240 : vector<1x128x128xbf16> to vector<128x128xbf16>
    %cst_208 = arith.constant dense<0.000000e+00> : vector<4x128xf32>
    %242 = tpu.matmul %239, %241, %cst_208 {dimension_numbers = #tpu.dot_dimension_numbers<[1], [0], [0], [1], [0, 0, 1, 1], [], []>} : vector<4x128xbf16>, vector<128x128xbf16>, vector<4x128xf32> -> vector<4x128xf32>
    %243 = arith.addf %237, %242 : vector<4x128xf32>
    %c2_209 = arith.constant 2 : index
    %c0_210 = arith.constant 0 : index
    %244 = vector.load %arg10[%c2_209, %c0_210] : memref<6x128xf32, #tpu.memory_space<vmem>>, vector<4x128xf32>
    %245 = arith.truncf %244 : vector<4x128xf32> to vector<4x128xbf16>
    %c8_211 = arith.constant 8 : index
    %c0_212 = arith.constant 0 : index
    %c0_213 = arith.constant 0 : index
    %246 = vector.load %arg4[%c8_211, %c0_212, %c0_213] : memref<10x128x128xbf16, #tpu.memory_space<vmem>>, vector<1x128x128xbf16>
    %247 = vector.shape_cast %246 : vector<1x128x128xbf16> to vector<128x128xbf16>
    %cst_214 = arith.constant dense<0.000000e+00> : vector<4x128xf32>
    %248 = tpu.matmul %245, %247, %cst_214 {dimension_numbers = #tpu.dot_dimension_numbers<[1], [0], [0], [1], [0, 0, 1, 1], [], []>} : vector<4x128xbf16>, vector<128x128xbf16>, vector<4x128xf32> -> vector<4x128xf32>
    %249 = arith.addf %243, %248 : vector<4x128xf32>
    %c0_215 = arith.constant 0 : index
    %c2048 = arith.constant 2048 : index
    %250 = vector.load %arg5[%c0_215, %c2048] : memref<1x2196xf32, #tpu.memory_space<vmem>>, vector<1x128xf32>
    %251 = vector.broadcast %250 : vector<1x128xf32> to vector<4x128xf32>
    %252 = arith.addf %249, %251 : vector<4x128xf32>
    %253 = arith.addf %252, %208 : vector<4x128xf32>
    %cst_216 = arith.constant 0.000000e+00 : f32
    %254 = vector.broadcast %cst_216 : f32 to vector<4x128xf32>
    %255 = arith.maximumf %253, %254 : vector<4x128xf32>
    %cst_217 = arith.constant 1.000000e+00 : bf16
    %256 = vector.broadcast %cst_217 : bf16 to vector<1x4xbf16>
    %257 = arith.truncf %255 : vector<4x128xf32> to vector<4x128xbf16>
    %cst_218 = arith.constant dense<0.000000e+00> : vector<1x128xf32>
    %258 = tpu.matmul %256, %257, %cst_218 {dimension_numbers = #tpu.dot_dimension_numbers<[1], [0], [0], [1], [0, 0, 1, 1], [], []>} : vector<1x4xbf16>, vector<4x128xbf16>, vector<1x128xf32> -> vector<1x128xf32>
    %259 = arith.truncf %258 : vector<1x128xf32> to vector<1x128xbf16>
    %c9_219 = arith.constant 9 : index
    %c0_220 = arith.constant 0 : index
    %c0_221 = arith.constant 0 : index
    %260 = vector.load %arg4[%c9_219, %c0_220, %c0_221] : memref<10x128x128xbf16, #tpu.memory_space<vmem>>, vector<1x128x128xbf16>
    %261 = vector.shape_cast %260 : vector<1x128x128xbf16> to vector<128x128xbf16>
    %cst_222 = arith.constant dense<0.000000e+00> : vector<1x128xf32>
    %262 = tpu.matmul %259, %261, %cst_222 {dimension_numbers = #tpu.dot_dimension_numbers<[1], [0], [0], [1], [0, 0, 1, 1], [], []>} : vector<1x128xbf16>, vector<128x128xbf16>, vector<1x128xf32> -> vector<1x128xf32>
    %263 = vector.extract_strided_slice %262 {offsets = [0, 0], sizes = [1, 20], strides = [1, 1]} : vector<1x128xf32> to vector<1x20xf32>
    %c0_223 = arith.constant 0 : index
    %c2176 = arith.constant 2176 : index
    %264 = vector.load %arg5[%c0_223, %c2176] : memref<1x2196xf32, #tpu.memory_space<vmem>>, vector<1x20xf32>
    %265 = arith.addf %263, %264 : vector<1x20xf32>
    %c0_224 = arith.constant 0 : index
    %c0_225 = arith.constant 0 : index
    %266 = vector.load %arg6[%c0_224, %c0_225] : memref<1x20xf32, #tpu.memory_space<vmem>>, vector<1x20xf32>
    tpu.vector_store %arg6[%c0_224, %c0_225], %265 {strides = array<i32>} : memref<1x20xf32, #tpu.memory_space<vmem>>, vector<1x20xf32>,
    return
  }
}

</mosaic_0001>

<llo_original>
// kernel: forward.1
$region0: #{forward.1}
  #allocation0 [shape = 'u32[]', space=smem, size = 0x4, offset = 0x4, fixed_abs, tag = 'smem constant byte address 0x4 - core index']
  #allocation1 [shape = 'u32[144,128]{1,0:T(1,128)}', space=vmem, size = 0x12000, scoped, tag = 'internal scratch']
  #allocation2 [shape = 'f32[18,256]{1,0:T(8,128)}', space=vmem, size = 0x6000, scoped, tag = 'scratch operand']
  #allocation3 [shape = 'f32[10,256]{1,0:T(8,128)}', space=vmem, size = 0x4000, scoped, tag = 'scratch operand']
  #allocation4 [shape = 'f32[10,256]{1,0:T(8,128)}', space=vmem, size = 0x4000, scoped, tag = 'scratch operand']
  #allocation5 [shape = 'f32[6,128]{1,0:T(8,128)}', space=vmem, size = 0x1000, scoped, tag = 'scratch operand']
  #allocation6 [shape = 'f32[6,128]{1,0:T(8,128)}', space=vmem, size = 0x1000, scoped, tag = 'scratch operand']
  %s0 = inlined_call_operand.vmem [shape: bf16[34,256], index: 0, kind: input, shape index: {}]
  %s1 = inlined_call_operand.hbm [shape: bf16[5,48,34], index: 1, kind: input, shape index: {}]
  %s2 = inlined_call_operand.hbm [shape: bf16[16,256,256], index: 2, kind: input, shape index: {}]
  %s3 = inlined_call_operand.hbm [shape: bf16[4,256,128], index: 3, kind: input, shape index: {}]
  %s4 = inlined_call_operand.hbm [shape: bf16[10,128,128], index: 4, kind: input, shape index: {}]
  %s5 = inlined_call_operand.hbm [shape: f32[1,2196], index: 5, kind: input, shape index: {}]
  %s6 = inlined_call_operand.vmem [shape: f32[1,20], index: 6, kind: output, shape index: {}]
  %s7 = sld [smem:[#allocation0]]
  $region54: #{forward.1} parent=0
    _
  %s9 = ssub.s32 1, %s7
  %s10 = scalar_select 0, %s9, %s7
  $region1: #{forward.1} parent=0
    #allocation7 [shape = 'u8[61440]{0}', space=vmem, size = 0xf000, scoped, tag = 'input window, operand 1, single buffered']
    #allocation8 [shape = 's32[1]{0}', space=sflag, size = 0x4, scoped, tag = 'scoped memory for forward.1']
    #allocation9 [shape = 'u8[2097152]{0}', space=vmem, size = 0x200000, scoped, tag = 'input window, operand 2, single buffered']
    #allocation10 [shape = 's32[1]{0}', space=sflag, size = 0x4, scoped, tag = 'scoped memory for forward.1']
    #allocation11 [shape = 'u8[262144]{0}', space=vmem, size = 0x40000, scoped, tag = 'input window, operand 3, single buffered']
    #allocation12 [shape = 'u8[327680]{0}', space=vmem, size = 0x50000, scoped, tag = 'input window, operand 4, single buffered']
    #allocation13 [shape = 's32[1]{0}', space=sflag, size = 0x4, scoped, tag = 'scoped memory for forward.1']
    #allocation14 [shape = 'u8[9216]{0}', space=vmem, size = 0x2400, scoped, tag = 'input window, operand 5, single buffered']
    %11 = vsyncpa [#allocation8], 0
    %12 = vsyncpa [#allocation10], 0
    %13 = vsyncpa [#allocation13], 0
    // Predicated region
    $region2: #{forward.1} parent=1 // pred_check
      _
    $region3: #{forward.1} parent=1 // pred_check_branch
      %15 = sbr.rel (0) target = $region5
    $region4: #{forward.1} parent=1 // pred_region
      _
    $region5: #{forward.1} parent=1 // pred_fallthru
      _
    // Predicated region
    $region6: #{forward.1} parent=1 // pred_check
      _
    $region7: #{forward.1} parent=1 // pred_check_branch
      %17 = sbr.rel (0) target = $region9
    $region8: #{forward.1} parent=1 // pred_region
      %s19 = ssub.s32 1920, 1920
      %20 = vsyncadd [#allocation8], %s19
      %s21 = sshll.u32 [#allocation7], 4
      %s22 = int_to_ptr.vmem [resolvable:$true] %s21
      %27 = dma.hbm_to_vmem [thread:$0]  %s1, 1920, %s22, [#allocation8], 64, 64, 4
    $region9: #{forward.1} parent=1 // pred_fallthru
      _
    // Predicated region
    $region10: #{forward.1} parent=1 // pred_check
      _
    $region11: #{forward.1} parent=1 // pred_check_branch
      %29 = sbr.rel (0) target = $region13
    $region12: #{forward.1} parent=1 // pred_region
      %s31 = ssub.s32 65536, 65536
      %32 = vsyncadd [#allocation10], %s31
      %s33 = sshll.u32 [#allocation9], 4
      %s34 = int_to_ptr.vmem [resolvable:$true] %s33
      %39 = dma.hbm_to_vmem [thread:$0]  %s2, 65536, %s34, [#allocation10], 128, 128, 8
    $region13: #{forward.1} parent=1 // pred_fallthru
      _
    // Predicated region
    $region14: #{forward.1} parent=1 // pred_check
      _
    $region15: #{forward.1} parent=1 // pred_check_branch
      %41 = sbr.rel (0) target = $region17
    $region16: #{forward.1} parent=1 // pred_region
      %s43 = ssub.s32 8192, 8192
      %44 = vsyncadd [#allocation10], %s43
      %s45 = sshll.u32 [#allocation11], 4
      %s46 = int_to_ptr.vmem [resolvable:$true] %s45
      %51 = dma.hbm_to_vmem [thread:$0]  %s3, 8192, %s46, [#allocation10], 64, 64, 4
    $region17: #{forward.1} parent=1 // pred_fallthru
      _
    // Predicated region
    $region18: #{forward.1} parent=1 // pred_check
      _
    $region19: #{forward.1} parent=1 // pred_check_branch
      %53 = sbr.rel (0) target = $region21
    $region20: #{forward.1} parent=1 // pred_region
      %s55 = ssub.s32 10240, 10240
      %56 = vsyncadd [#allocation13], %s55
      %s57 = sshll.u32 [#allocation12], 4
      %s58 = int_to_ptr.vmem [resolvable:$true] %s57
      %63 = dma.hbm_to_vmem [thread:$0]  %s4, 10240, %s58, [#allocation13], 64, 64, 4
    $region21: #{forward.1} parent=1 // pred_fallthru
      _
    // Predicated region
    $region22: #{forward.1} parent=1 // pred_check
      _
    $region23: #{forward.1} parent=1 // pred_check_branch
      %65 = sbr.rel (0) target = $region25
    $region24: #{forward.1} parent=1 // pred_region
      %s67 = ssub.s32 288, 288
      %68 = vsyncadd [#allocation13], %s67
      %s70 = sshll.u32 [#allocation14], 4
      %s71 = int_to_ptr.vmem [resolvable:$true] %s70
      %73 = dma.hbm_to_vmem [thread:$0]  %s5, 288, %s71, [#allocation13]
    $region25: #{forward.1} parent=1 // pred_fallthru
      _
    // Predicated region
    $region26: #{forward.1} parent=1 // pred_check
      _
    $region27: #{forward.1} parent=1 // pred_check_branch
      %75 = sbr.rel (0) target = $region29
    $region28: #{forward.1} parent=1 // pred_region
      %76 = dma.done [#allocation8], 1920
    $region29: #{forward.1} parent=1 // pred_fallthru
      _
    // Predicated region
    $region30: #{forward.1} parent=1 // pred_check
      _
    $region31: #{forward.1} parent=1 // pred_check_branch
      %78 = sbr.rel (0) target = $region33
    $region32: #{forward.1} parent=1 // pred_region
      %79 = dma.done [#allocation10], 65536
    $region33: #{forward.1} parent=1 // pred_fallthru
      _
    // Predicated region
    $region34: #{forward.1} parent=1 // pred_check
      _
    $region35: #{forward.1} parent=1 // pred_check_branch
      %81 = sbr.rel (0) target = $region37
    $region36: #{forward.1} parent=1 // pred_region
      %82 = dma.done [#allocation10], 8192
    $region37: #{forward.1} parent=1 // pred_fallthru
      _
    // Predicated region
    $region38: #{forward.1} parent=1 // pred_check
      _
    $region39: #{forward.1} parent=1 // pred_check_branch
      %84 = sbr.rel (0) target = $region41
    $region40: #{forward.1} parent=1 // pred_region
      %85 = dma.done [#allocation13], 10240
    $region41: #{forward.1} parent=1 // pred_fallthru
      _
    // Predicated region
    $region42: #{forward.1} parent=1 // pred_check
      _
    $region43: #{forward.1} parent=1 // pred_check_branch
      %87 = sbr.rel (0) target = $region45
    $region44: #{forward.1} parent=1 // pred_region
      %88 = dma.done [#allocation13], 288
    $region45: #{forward.1} parent=1 // pred_fallthru
      _
    %91 = vst [vmem:[#allocation2] sm:$0xff] 0.0
    %92 = vst [vmem:[#allocation2 + $0x8] sm:$0xff] 0.0
    %93 = vst [vmem:[#allocation2 + $0x10] sm:$0xff] 0.0
    %94 = vst [vmem:[#allocation2 + $0x18] sm:$0xff] 0.0
    %95 = vst [vmem:[#allocation2 + $0x20] sm:$0x3] 0.0
    %96 = vst [vmem:[#allocation2 + $0x28] sm:$0x3] 0.0
    %97 = vst [vmem:[#allocation3] sm:$0xff] 0.0
    %98 = vst [vmem:[#allocation3 + $0x8] sm:$0xff] 0.0
    %99 = vst [vmem:[#allocation3 + $0x10] sm:$0x3] 0.0
    %100 = vst [vmem:[#allocation3 + $0x18] sm:$0x3] 0.0
    %101 = vst [vmem:[#allocation4] sm:$0xff] 0.0
    %102 = vst [vmem:[#allocation4 + $0x8] sm:$0xff] 0.0
    %103 = vst [vmem:[#allocation4 + $0x10] sm:$0x3] 0.0
    %104 = vst [vmem:[#allocation4 + $0x18] sm:$0x3] 0.0
    %105 = vst [vmem:[#allocation5] sm:$0x3f] 0.0
    %106 = vst [vmem:[#allocation6] sm:$0x3f] 0.0
    %v107 = vld [vmem:[%s0] sm:$0xff]
    %v108 = vld [vmem:[%s0 + $0x8] sm:$0xff]
    %v109 = vld [vmem:[%s0 + $0x10] sm:$0xff]
    %v110 = vld [vmem:[%s0 + $0x18] sm:$0xff]
    %v111 = vld [vmem:[%s0 + $0x20] sm:$0x11]
    %v112 = vld [vmem:[#allocation7] sm:$0xf]
    %v113 = vld [vmem:[#allocation7 + $0x4] sm:$0xf]
    %v114 = vld [vmem:[#allocation7 + $0x8] sm:$0xf]
    %v115 = vld [vmem:[#allocation7 + $0xc] sm:$0xf]
    %v116 = vld [vmem:[#allocation7 + $0x10] sm:$0xf]
    %v117 = vld [vmem:[#allocation7 + $0x14] sm:$0xf]
    %v124 = vunpack.c.l.b16 %v112
    %v125 = vunpack.c.l.b16 %v113
    %v126 = vunpack.c.l.b16 %v114
    %v127 = vunpack.c.l.b16 %v115
    %v128 = vunpack.c.l.b16 %v116
    %v129 = vunpack.c.l.b16 %v117
    %v130 = vpack.c.b16 %v125, %v124
    %v131 = vpack.c.b16 %v127, %v126
    %v132 = vpack.c.b16 %v129, %v128
    %v138 = vunpack.c.l.b16 %v107
    %v139 = vunpack.c.h.b16 %v107
    %v140 = vunpack.c.l.b16 %v108
    %v141 = vunpack.c.h.b16 %v108
    %v142 = vunpack.c.l.b16 %v109
    %v143 = vunpack.c.h.b16 %v109
    %v144 = vunpack.c.l.b16 %v110
    %v145 = vunpack.c.h.b16 %v110
    %v146 = vunpack.c.l.b16 %v111
    %v147 = vunpack.c.h.b16 %v111
    %v148 = vpack.c.b16 %v140, %v138
    %v149 = vpack.c.b16 %v141, %v139
    %v150 = vpack.c.b16 %v144, %v142
    %v151 = vpack.c.b16 %v145, %v143
    %v152 = vpack.c.b16 %v146, %v146
    %v153 = vpack.c.b16 %v147, %v147
    %vm158 = vcmask 277504
    %v160 = vsel %vm158, %v130, 0
    %v163 = vsel %vm158, %v131, 0
    %v166 = vsel %vm158, %v132, 0
    %vm168 = vcmask 1040384
    %v170 = vsel %vm168, %v152, 0
    %v173 = vsel %vm168, %v153, 0
    %175 = vmatprep.subr.bf16.mxu0 0
    %176 = vmatpush1.bf16.msra.mxu0 0
    %177 = vmatprep.subr.bf16.mxu0 0
    %178 = vmatpush1.bf16.msra.mxu0 0
    %179 = vmatprep.subr.bf16.mxu0 0
    %180 = vmatpush1.bf16.msra.mxu0 0
    %181 = vmatprep.subr.bf16.mxu0 0
    %182 = vmatpush1.bf16.msra.mxu0 0
    %183 = vmatprep.subr.bf16.mxu0 0
    %184 = vmatpush1.bf16.msra.mxu0 0
    %185 = vmatprep.subr.bf16.mxu0 %v173
    %186 = vmatpush1.bf16.msra.mxu0 %v170
    %187 = vmatprep.subr.bf16.mxu0 %v151
    %188 = vmatpush1.bf16.msra.mxu0 %v150
    %189 = vmatprep.subr.bf16.mxu0 %v149
    %190 = vmatpush1.bf16.msra.mxu0 %v148
    %191 = vmatprep.subr.bf16.mxu0 0
    %192 = vmatpush2.bf16.msra.mxu0 0
    %193 = vmatprep.subr.bf16.mxu0 0
    %194 = vmatpush2.bf16.msra.mxu0 0
    %195 = vmatprep.subr.bf16.mxu0 0
    %196 = vmatpush2.bf16.msra.mxu0 0
    %197 = vmatprep.subr.bf16.mxu0 0
    %198 = vmatpush2.bf16.msra.mxu0 0
    %199 = vmatprep.subr.bf16.mxu0 0
    %200 = vmatpush2.bf16.msra.mxu0 0
    %201 = vmatprep.subr.bf16.mxu0 0
    %202 = vmatpush2.bf16.msra.mxu0 0
    %203 = vmatprep.subr.bf16.mxu0 0
    %204 = vmatpush2.bf16.msra.mxu0 0
    %205 = vmatprep.subr.bf16.mxu0 0
    %206 = vmatpush2.bf16.msra.mxu0 0
    %207 = vmatprep.mubr.bf16.mxu0 0
    %208 = vmatmul.mubr.bf16.gmra.mxu0 %v160
    %v209 = vpop.f32.mrf.mxu0
    %v210 = vadd.f32 0.0, %v209
    %v211 = vpop.f32.mrf.mxu0
    %v212 = vadd.f32 0.0, %v211
    %v213 = vpop.f32.mrf.mxu0
    %v214 = vadd.f32 0.0, %v213
    %v215 = vpop.f32.mrf.mxu0
    %v216 = vadd.f32 0.0, %v215
    %217 = vmatprep.mubr.bf16.mxu0 0
    %218 = vmatmul.mubr.bf16.gmra.mxu0 %v163
    %v219 = vpop.f32.mrf.mxu0
    %v220 = vadd.f32 0.0, %v219
    %v221 = vpop.f32.mrf.mxu0
    %v222 = vadd.f32 0.0, %v221
    %v223 = vpop.f32.mrf.mxu0
    %v224 = vadd.f32 0.0, %v223
    %v225 = vpop.f32.mrf.mxu0
    %v226 = vadd.f32 0.0, %v225
    %227 = vmatprep.mubr.bf16.mxu0 0
    %228 = vmatmul.mubr.bf16.gmra.mxu0 %v166
    %v229 = vpop.f32.mrf.mxu0
    %v230 = vadd.f32 0.0, %v229
    %v231 = vpop.f32.mrf.mxu0
    %v232 = vadd.f32 0.0, %v231
    %v233 = vpop.f32.mrf.mxu0
    %v234 = vadd.f32 0.0, %v233
    %v235 = vpop.f32.mrf.mxu0
    %v236 = vadd.f32 0.0, %v235
    %237 = vdwg.mxu0
    %v238 = vpack.c.bf16 %v214, %v210
    %v239 = vpack.c.bf16 %v216, %v212
    %v240 = vpack.c.bf16 %v224, %v220
    %v241 = vpack.c.bf16 %v226, %v222
    %v242 = vpack.c.bf16 %v234, %v230
    %v243 = vpack.c.bf16 %v236, %v232
    %v244 = vld [vmem:[#allocation9] sm:$0xff]
    %v245 = vld [vmem:[#allocation9 + $0x8] sm:$0xff]
    %v246 = vld [vmem:[#allocation9 + $0x10] sm:$0xff]
    %v247 = vld [vmem:[#allocation9 + $0x18] sm:$0xff]
    %v248 = vld [vmem:[#allocation9 + $0x20] sm:$0xff]
    %v249 = vld [vmem:[#allocation9 + $0x28] sm:$0xff]
    %v250 = vld [vmem:[#allocation9 + $0x30] sm:$0xff]
    %v251 = vld [vmem:[#allocation9 + $0x38] sm:$0xff]
    %v252 = vld [vmem:[#allocation9 + $0x40] sm:$0xff]
    %v253 = vld [vmem:[#allocation9 + $0x48] sm:$0xff]
    %v254 = vld [vmem:[#allocation9 + $0x50] sm:$0xff]
    %v255 = vld [vmem:[#allocation9 + $0x58] sm:$0xff]
    %v256 = vld [vmem:[#allocation9 + $0x60] sm:$0xff]
    %v257 = vld [vmem:[#allocation9 + $0x68] sm:$0xff]
    %v258 = vld [vmem:[#allocation9 + $0x70] sm:$0xff]
    %v259 = vld [vmem:[#allocation9 + $0x78] sm:$0xff]
    %v260 = vld [vmem:[#allocation9 + $0x80] sm:$0xff]
    %v261 = vld [vmem:[#allocation9 + $0x88] sm:$0xff]
    %v262 = vld [vmem:[#allocation9 + $0x90] sm:$0xff]
    %v263 = vld [vmem:[#allocation9 + $0x98] sm:$0xff]
    %v264 = vld [vmem:[#allocation9 + $0xa0] sm:$0xff]
    %v265 = vld [vmem:[#allocation9 + $0xa8] sm:$0xff]
    %v266 = vld [vmem:[#allocation9 + $0xb0] sm:$0xff]
    %v267 = vld [vmem:[#allocation9 + $0xb8] sm:$0xff]
    %v268 = vld [vmem:[#allocation9 + $0xc0] sm:$0xff]
    %v269 = vld [vmem:[#allocation9 + $0xc8] sm:$0xff]
    %v270 = vld [vmem:[#allocation9 + $0xd0] sm:$0xff]
    %v271 = vld [vmem:[#allocation9 + $0xd8] sm:$0xff]
    %v272 = vld [vmem:[#allocation9 + $0xe0] sm:$0xff]
    %v273 = vld [vmem:[#allocation9 + $0xe8] sm:$0xff]
    %v274 = vld [vmem:[#allocation9 + $0xf0] sm:$0xff]
    %v275 = vld [vmem:[#allocation9 + $0xf8] sm:$0xff]
    %s276 = scalar_lea.vmem [#allocation9], 256
    %v277 = vld [vmem:[%s276] sm:$0xff]
    %v278 = vld [vmem:[%s276 + $0x8] sm:$0xff]
    %v279 = vld [vmem:[%s276 + $0x10] sm:$0xff]
    %v280 = vld [vmem:[%s276 + $0x18] sm:$0xff]
    %v281 = vld [vmem:[%s276 + $0x20] sm:$0xff]
    %v282 = vld [vmem:[%s276 + $0x28] sm:$0xff]
    %v283 = vld [vmem:[%s276 + $0x30] sm:$0xff]
    %v284 = vld [vmem:[%s276 + $0x38] sm:$0xff]
    %v285 = vld [vmem:[%s276 + $0x40] sm:$0xff]
    %v286 = vld [vmem:[%s276 + $0x48] sm:$0xff]
    %v287 = vld [vmem:[%s276 + $0x50] sm:$0xff]
    %v288 = vld [vmem:[%s276 + $0x58] sm:$0xff]
    %v289 = vld [vmem:[%s276 + $0x60] sm:$0xff]
    %v290 = vld [vmem:[%s276 + $0x68] sm:$0xff]
    %v291 = vld [vmem:[%s276 + $0x70] sm:$0xff]
    %v292 = vld [vmem:[%s276 + $0x78] sm:$0xff]
    %v293 = vld [vmem:[%s276 + $0x80] sm:$0xff]
    %v294 = vld [vmem:[%s276 + $0x88] sm:$0xff]
    %v295 = vld [vmem:[%s276 + $0x90] sm:$0xff]
    %v296 = vld [vmem:[%s276 + $0x98] sm:$0xff]
    %v297 = vld [vmem:[%s276 + $0xa0] sm:$0xff]
    %v298 = vld [vmem:[%s276 + $0xa8] sm:$0xff]
    %v299 = vld [vmem:[%s276 + $0xb0] sm:$0xff]
    %v300 = vld [vmem:[%s276 + $0xb8] sm:$0xff]
    %v301 = vld [vmem:[%s276 + $0xc0] sm:$0xff]
    %v302 = vld [vmem:[%s276 + $0xc8] sm:$0xff]
    %v303 = vld [vmem:[%s276 + $0xd0] sm:$0xff]
    %v304 = vld [vmem:[%s276 + $0xd8] sm:$0xff]
    %v305 = vld [vmem:[%s276 + $0xe0] sm:$0xff]
    %v306 = vld [vmem:[%s276 + $0xe8] sm:$0xff]
    %v307 = vld [vmem:[%s276 + $0xf0] sm:$0xff]
    %v308 = vld [vmem:[%s276 + $0xf8] sm:$0xff]
    %v341 = vunpack.c.l.b16 %v277
    %v342 = vunpack.c.h.b16 %v277
    %v343 = vunpack.c.l.b16 %v278
    %v344 = vunpack.c.h.b16 %v278
    %v345 = vunpack.c.l.b16 %v279
    %v346 = vunpack.c.h.b16 %v279
    %v347 = vunpack.c.l.b16 %v280
    %v348 = vunpack.c.h.b16 %v280
    %v349 = vunpack.c.l.b16 %v281
    %v350 = vunpack.c.h.b16 %v281
    %v351 = vunpack.c.l.b16 %v282
    %v352 = vunpack.c.h.b16 %v282
    %v353 = vunpack.c.l.b16 %v283
    %v354 = vunpack.c.h.b16 %v283
    %v355 = vunpack.c.l.b16 %v284
    %v356 = vunpack.c.h.b16 %v284
    %v357 = vunpack.c.l.b16 %v285
    %v358 = vunpack.c.h.b16 %v285
    %v359 = vunpack.c.l.b16 %v286
    %v360 = vunpack.c.h.b16 %v286
    %v361 = vunpack.c.l.b16 %v287
    %v362 = vunpack.c.h.b16 %v287
    %v363 = vunpack.c.l.b16 %v288
    %v364 = vunpack.c.h.b16 %v288
    %v365 = vunpack.c.l.b16 %v289
    %v366 = vunpack.c.h.b16 %v289
    %v367 = vunpack.c.l.b16 %v290
    %v368 = vunpack.c.h.b16 %v290
    %v369 = vunpack.c.l.b16 %v291
    %v370 = vunpack.c.h.b16 %v291
    %v371 = vunpack.c.l.b16 %v292
    %v372 = vunpack.c.h.b16 %v292
    %v373 = vunpack.c.l.b16 %v293
    %v374 = vunpack.c.h.b16 %v293
    %v375 = vunpack.c.l.b16 %v294
    %v376 = vunpack.c.h.b16 %v294
    %v377 = vunpack.c.l.b16 %v295
    %v378 = vunpack.c.h.b16 %v295
    %v379 = vunpack.c.l.b16 %v296
    %v380 = vunpack.c.h.b16 %v296
    %v381 = vunpack.c.l.b16 %v297
    %v382 = vunpack.c.h.b16 %v297
    %v383 = vunpack.c.l.b16 %v298
    %v384 = vunpack.c.h.b16 %v298
    %v385 = vunpack.c.l.b16 %v299
    %v386 = vunpack.c.h.b16 %v299
    %v387 = vunpack.c.l.b16 %v300
    %v388 = vunpack.c.h.b16 %v300
    %v389 = vunpack.c.l.b16 %v301
    %v390 = vunpack.c.h.b16 %v301
    %v391 = vunpack.c.l.b16 %v302
    %v392 = vunpack.c.h.b16 %v302
    %v393 = vunpack.c.l.b16 %v303
    %v394 = vunpack.c.h.b16 %v303
    %v395 = vunpack.c.l.b16 %v304
    %v396 = vunpack.c.h.b16 %v304
    %v397 = vunpack.c.l.b16 %v305
    %v398 = vunpack.c.h.b16 %v305
    %v399 = vunpack.c.l.b16 %v306
    %v400 = vunpack.c.h.b16 %v306
    %v401 = vunpack.c.l.b16 %v307
    %v402 = vunpack.c.h.b16 %v307
    %v403 = vunpack.c.l.b16 %v308
    %v404 = vunpack.c.h.b16 %v308
    %v405 = vpack.c.b16 %v343, %v341
    %v406 = vpack.c.b16 %v344, %v342
    %v407 = vpack.c.b16 %v347, %v345
    %v408 = vpack.c.b16 %v348, %v346
    %v409 = vpack.c.b16 %v351, %v349
    %v410 = vpack.c.b16 %v352, %v350
    %v411 = vpack.c.b16 %v355, %v353
    %v412 = vpack.c.b16 %v356, %v354
    %v413 = vpack.c.b16 %v359, %v357
    %v414 = vpack.c.b16 %v360, %v358
    %v415 = vpack.c.b16 %v363, %v361
    %v416 = vpack.c.b16 %v364, %v362
    %v417 = vpack.c.b16 %v367, %v365
    %v418 = vpack.c.b16 %v368, %v366
    %v419 = vpack.c.b16 %v371, %v369
    %v420 = vpack.c.b16 %v372, %v370
    %v421 = vpack.c.b16 %v375, %v373
    %v422 = vpack.c.b16 %v376, %v374
    %v423 = vpack.c.b16 %v379, %v377
    %v424 = vpack.c.b16 %v380, %v378
    %v425 = vpack.c.b16 %v383, %v381
    %v426 = vpack.c.b16 %v384, %v382
    %v427 = vpack.c.b16 %v387, %v385
    %v428 = vpack.c.b16 %v388, %v386
    %v429 = vpack.c.b16 %v391, %v389
    %v430 = vpack.c.b16 %v392, %v390
    %v431 = vpack.c.b16 %v395, %v393
    %v432 = vpack.c.b16 %v396, %v394
    %v433 = vpack.c.b16 %v399, %v397
    %v434 = vpack.c.b16 %v400, %v398
    %v435 = vpack.c.b16 %v403, %v401
    %v436 = vpack.c.b16 %v404, %v402
    %469 = vmatprep.subr.bf16.mxu0 %v420
    %470 = vmatpush1.bf16.msra.mxu0 %v419
    %471 = vmatprep.subr.bf16.mxu0 %v418
    %472 = vmatpush1.bf16.msra.mxu0 %v417
    %473 = vmatprep.subr.bf16.mxu0 %v416
    %474 = vmatpush1.bf16.msra.mxu0 %v415
    %475 = vmatprep.subr.bf16.mxu0 %v414
    %476 = vmatpush1.bf16.msra.mxu0 %v413
    %477 = vmatprep.subr.bf16.mxu0 %v412
    %478 = vmatpush1.bf16.msra.mxu0 %v411
    %479 = vmatprep.subr.bf16.mxu0 %v410
    %480 = vmatpush1.bf16.msra.mxu0 %v409
    %481 = vmatprep.subr.bf16.mxu0 %v408
    %482 = vmatpush1.bf16.msra.mxu0 %v407
    %483 = vmatprep.subr.bf16.mxu0 %v406
    %484 = vmatpush1.bf16.msra.mxu0 %v405
    %485 = vmatprep.subr.bf16.mxu0 %v436
    %486 = vmatpush2.bf16.msra.mxu0 %v435
    %487 = vmatprep.subr.bf16.mxu0 %v434
    %488 = vmatpush2.bf16.msra.mxu0 %v433
    %489 = vmatprep.subr.bf16.mxu0 %v432
    %490 = vmatpush2.bf16.msra.mxu0 %v431
    %491 = vmatprep.subr.bf16.mxu0 %v430
    %492 = vmatpush2.bf16.msra.mxu0 %v429
    %493 = vmatprep.subr.bf16.mxu0 %v428
    %494 = vmatpush2.bf16.msra.mxu0 %v427
    %495 = vmatprep.subr.bf16.mxu0 %v426
    %496 = vmatpush2.bf16.msra.mxu0 %v425
    %497 = vmatprep.subr.bf16.mxu0 %v424
    %498 = vmatpush2.bf16.msra.mxu0 %v423
    %499 = vmatprep.subr.bf16.mxu0 %v422
    %500 = vmatpush2.bf16.msra.mxu0 %v421
    %501 = vmatprep.mubr.bf16.mxu0 %v241
    %502 = vmatmul.mubr.bf16.gmra.mxu0 %v240
    %v503 = vpop.f32.mrf.mxu0
    %v504 = vadd.f32 0.0, %v503
    %v505 = vpop.f32.mrf.mxu0
    %v506 = vadd.f32 0.0, %v505
    %v507 = vpop.f32.mrf.mxu0
    %v508 = vadd.f32 0.0, %v507
    %v509 = vpop.f32.mrf.mxu0
    %v510 = vadd.f32 0.0, %v509
    %511 = vdwg.mxu0
    %v544 = vunpack.c.l.b16 %v244
    %v545 = vunpack.c.h.b16 %v244
    %v546 = vunpack.c.l.b16 %v245
    %v547 = vunpack.c.h.b16 %v245
    %v548 = vunpack.c.l.b16 %v246
    %v549 = vunpack.c.h.b16 %v246
    %v550 = vunpack.c.l.b16 %v247
    %v551 = vunpack.c.h.b16 %v247
    %v552 = vunpack.c.l.b16 %v248
    %v553 = vunpack.c.h.b16 %v248
    %v554 = vunpack.c.l.b16 %v249
    %v555 = vunpack.c.h.b16 %v249
    %v556 = vunpack.c.l.b16 %v250
    %v557 = vunpack.c.h.b16 %v250
    %v558 = vunpack.c.l.b16 %v251
    %v559 = vunpack.c.h.b16 %v251
    %v560 = vunpack.c.l.b16 %v252
    %v561 = vunpack.c.h.b16 %v252
    %v562 = vunpack.c.l.b16 %v253
    %v563 = vunpack.c.h.b16 %v253
    %v564 = vunpack.c.l.b16 %v254
    %v565 = vunpack.c.h.b16 %v254
    %v566 = vunpack.c.l.b16 %v255
    %v567 = vunpack.c.h.b16 %v255
    %v568 = vunpack.c.l.b16 %v256
    %v569 = vunpack.c.h.b16 %v256
    %v570 = vunpack.c.l.b16 %v257
    %v571 = vunpack.c.h.b16 %v257
    %v572 = vunpack.c.l.b16 %v258
    %v573 = vunpack.c.h.b16 %v258
    %v574 = vunpack.c.l.b16 %v259
    %v575 = vunpack.c.h.b16 %v259
    %v576 = vunpack.c.l.b16 %v260
    %v577 = vunpack.c.h.b16 %v260
    %v578 = vunpack.c.l.b16 %v261
    %v579 = vunpack.c.h.b16 %v261
    %v580 = vunpack.c.l.b16 %v262
    %v581 = vunpack.c.h.b16 %v262
    %v582 = vunpack.c.l.b16 %v263
    %v583 = vunpack.c.h.b16 %v263
    %v584 = vunpack.c.l.b16 %v264
    %v585 = vunpack.c.h.b16 %v264
    %v586 = vunpack.c.l.b16 %v265
    %v587 = vunpack.c.h.b16 %v265
    %v588 = vunpack.c.l.b16 %v266
    %v589 = vunpack.c.h.b16 %v266
    %v590 = vunpack.c.l.b16 %v267
    %v591 = vunpack.c.h.b16 %v267
    %v592 = vunpack.c.l.b16 %v268
    %v593 = vunpack.c.h.b16 %v268
    %v594 = vunpack.c.l.b16 %v269
    %v595 = vunpack.c.h.b16 %v269
    %v596 = vunpack.c.l.b16 %v270
    %v597 = vunpack.c.h.b16 %v270
    %v598 = vunpack.c.l.b16 %v271
    %v599 = vunpack.c.h.b16 %v271
    %v600 = vunpack.c.l.b16 %v272
    %v601 = vunpack.c.h.b16 %v272
    %v602 = vunpack.c.l.b16 %v273
    %v603 = vunpack.c.h.b16 %v273
    %v604 = vunpack.c.l.b16 %v274
    %v605 = vunpack.c.h.b16 %v274
    %v606 = vunpack.c.l.b16 %v275
    %v607 = vunpack.c.h.b16 %v275
    %v608 = vpack.c.b16 %v546, %v544
    %v609 = vpack.c.b16 %v547, %v545
    %v610 = vpack.c.b16 %v550, %v548
    %v611 = vpack.c.b16 %v551, %v549
    %v612 = vpack.c.b16 %v554, %v552
    %v613 = vpack.c.b16 %v555, %v553
    %v614 = vpack.c.b16 %v558, %v556
    %v615 = vpack.c.b16 %v559, %v557
    %v616 = vpack.c.b16 %v562, %v560
    %v617 = vpack.c.b16 %v563, %v561
    %v618 = vpack.c.b16 %v566, %v564
    %v619 = vpack.c.b16 %v567, %v565
    %v620 = vpack.c.b16 %v570, %v568
    %v621 = vpack.c.b16 %v571, %v569
    %v622 = vpack.c.b16 %v574, %v572
    %v623 = vpack.c.b16 %v575, %v573
    %v624 = vpack.c.b16 %v578, %v576
    %v625 = vpack.c.b16 %v579, %v577
    %v626 = vpack.c.b16 %v582, %v580
    %v627 = vpack.c.b16 %v583, %v581
    %v628 = vpack.c.b16 %v586, %v584
    %v629 = vpack.c.b16 %v587, %v585
    %v630 = vpack.c.b16 %v590, %v588
    %v631 = vpack.c.b16 %v591, %v589
    %v632 = vpack.c.b16 %v594, %v592
    %v633 = vpack.c.b16 %v595, %v593
    %v634 = vpack.c.b16 %v598, %v596
    %v635 = vpack.c.b16 %v599, %v597
    %v636 = vpack.c.b16 %v602, %v600
    %v637 = vpack.c.b16 %v603, %v601
    %v638 = vpack.c.b16 %v606, %v604
    %v639 = vpack.c.b16 %v607, %v605
    %672 = vmatprep.subr.bf16.mxu0 %v623
    %673 = vmatpush1.bf16.msra.mxu0 %v622
    %674 = vmatprep.subr.bf16.mxu0 %v621
    %675 = vmatpush1.bf16.msra.mxu0 %v620
    %676 = vmatprep.subr.bf16.mxu0 %v619
    %677 = vmatpush1.bf16.msra.mxu0 %v618
    %678 = vmatprep.subr.bf16.mxu0 %v617
    %679 = vmatpush1.bf16.msra.mxu0 %v616
    %680 = vmatprep.subr.bf16.mxu0 %v615
    %681 = vmatpush1.bf16.msra.mxu0 %v614
    %682 = vmatprep.subr.bf16.mxu0 %v613
    %683 = vmatpush1.bf16.msra.mxu0 %v612
    %684 = vmatprep.subr.bf16.mxu0 %v611
    %685 = vmatpush1.bf16.msra.mxu0 %v610
    %686 = vmatprep.subr.bf16.mxu0 %v609
    %687 = vmatpush1.bf16.msra.mxu0 %v608
    %688 = vmatprep.subr.bf16.mxu0 %v639
    %689 = vmatpush2.bf16.msra.mxu0 %v638
    %690 = vmatprep.subr.bf16.mxu0 %v637
    %691 = vmatpush2.bf16.msra.mxu0 %v636
    %692 = vmatprep.subr.bf16.mxu0 %v635
    %693 = vmatpush2.bf16.msra.mxu0 %v634
    %694 = vmatprep.subr.bf16.mxu0 %v633
    %695 = vmatpush2.bf16.msra.mxu0 %v632
    %696 = vmatprep.subr.bf16.mxu0 %v631
    %697 = vmatpush2.bf16.msra.mxu0 %v630
    %698 = vmatprep.subr.bf16.mxu0 %v629
    %699 = vmatpush2.bf16.msra.mxu0 %v628
    %700 = vmatprep.subr.bf16.mxu0 %v627
    %701 = vmatpush2.bf16.msra.mxu0 %v626
    %702 = vmatprep.subr.bf16.mxu0 %v625
    %703 = vmatpush2.bf16.msra.mxu0 %v624
    %704 = vmatprep.mubr.bf16.mxu0 %v239
    %705 = vmatmul.mubr.bf16.gmra.mxu0 %v238
    %v706 = vpop.f32.mrf.mxu0
    %v707 = vadd.f32 %v504, %v706
    %v708 = vpop.f32.mrf.mxu0
    %v709 = vadd.f32 %v506, %v708
    %v710 = vpop.f32.mrf.mxu0
    %v711 = vadd.f32 %v508, %v710
    %v712 = vpop.f32.mrf.mxu0
    %v713 = vadd.f32 %v510, %v712
    %714 = vdwg.mxu0
    %s715 = scalar_lea.vmem [#allocation9], 512
    %v716 = vld [vmem:[%s715] sm:$0xff]
    %v717 = vld [vmem:[%s715 + $0x8] sm:$0xff]
    %v718 = vld [vmem:[%s715 + $0x10] sm:$0xff]
    %v719 = vld [vmem:[%s715 + $0x18] sm:$0xff]
    %v720 = vld [vmem:[%s715 + $0x20] sm:$0xff]
    %v721 = vld [vmem:[%s715 + $0x28] sm:$0xff]
    %v722 = vld [vmem:[%s715 + $0x30] sm:$0xff]
    %v723 = vld [vmem:[%s715 + $0x38] sm:$0xff]
    %v724 = vld [vmem:[%s715 + $0x40] sm:$0xff]
    %v725 = vld [vmem:[%s715 + $0x48] sm:$0xff]
    %v726 = vld [vmem:[%s715 + $0x50] sm:$0xff]
    %v727 = vld [vmem:[%s715 + $0x58] sm:$0xff]
    %v728 = vld [vmem:[%s715 + $0x60] sm:$0xff]
    %v729 = vld [vmem:[%s715 + $0x68] sm:$0xff]
    %v730 = vld [vmem:[%s715 + $0x70] sm:$0xff]
    %v731 = vld [vmem:[%s715 + $0x78] sm:$0xff]
    %v732 = vld [vmem:[%s715 + $0x80] sm:$0xff]
    %v733 = vld [vmem:[%s715 + $0x88] sm:$0xff]
    %v734 = vld [vmem:[%s715 + $0x90] sm:$0xff]
    %v735 = vld [vmem:[%s715 + $0x98] sm:$0xff]
    %v736 = vld [vmem:[%s715 + $0xa0] sm:$0xff]
    %v737 = vld [vmem:[%s715 + $0xa8] sm:$0xff]
    %v738 = vld [vmem:[%s715 + $0xb0] sm:$0xff]
    %v739 = vld [vmem:[%s715 + $0xb8] sm:$0xff]
    %v740 = vld [vmem:[%s715 + $0xc0] sm:$0xff]
    %v741 = vld [vmem:[%s715 + $0xc8] sm:$0xff]
    %v742 = vld [vmem:[%s715 + $0xd0] sm:$0xff]
    %v743 = vld [vmem:[%s715 + $0xd8] sm:$0xff]
    %v744 = vld [vmem:[%s715 + $0xe0] sm:$0xff]
    %v745 = vld [vmem:[%s715 + $0xe8] sm:$0xff]
    %v746 = vld [vmem:[%s715 + $0xf0] sm:$0xff]
    %v747 = vld [vmem:[%s715 + $0xf8] sm:$0xff]
    %v780 = vunpack.c.l.b16 %v716
    %v781 = vunpack.c.h.b16 %v716
    %v782 = vunpack.c.l.b16 %v717
    %v783 = vunpack.c.h.b16 %v717
    %v784 = vunpack.c.l.b16 %v718
    %v785 = vunpack.c.h.b16 %v718
    %v786 = vunpack.c.l.b16 %v719
    %v787 = vunpack.c.h.b16 %v719
    %v788 = vunpack.c.l.b16 %v720
    %v789 = vunpack.c.h.b16 %v720
    %v790 = vunpack.c.l.b16 %v721
    %v791 = vunpack.c.h.b16 %v721
    %v792 = vunpack.c.l.b16 %v722
    %v793 = vunpack.c.h.b16 %v722
    %v794 = vunpack.c.l.b16 %v723
    %v795 = vunpack.c.h.b16 %v723
    %v796 = vunpack.c.l.b16 %v724
    %v797 = vunpack.c.h.b16 %v724
    %v798 = vunpack.c.l.b16 %v725
    %v799 = vunpack.c.h.b16 %v725
    %v800 = vunpack.c.l.b16 %v726
    %v801 = vunpack.c.h.b16 %v726
    %v802 = vunpack.c.l.b16 %v727
    %v803 = vunpack.c.h.b16 %v727
    %v804 = vunpack.c.l.b16 %v728
    %v805 = vunpack.c.h.b16 %v728
    %v806 = vunpack.c.l.b16 %v729
    %v807 = vunpack.c.h.b16 %v729
    %v808 = vunpack.c.l.b16 %v730
    %v809 = vunpack.c.h.b16 %v730
    %v810 = vunpack.c.l.b16 %v731
    %v811 = vunpack.c.h.b16 %v731
    %v812 = vunpack.c.l.b16 %v732
    %v813 = vunpack.c.h.b16 %v732
    %v814 = vunpack.c.l.b16 %v733
    %v815 = vunpack.c.h.b16 %v733
    %v816 = vunpack.c.l.b16 %v734
    %v817 = vunpack.c.h.b16 %v734
    %v818 = vunpack.c.l.b16 %v735
    %v819 = vunpack.c.h.b16 %v735
    %v820 = vunpack.c.l.b16 %v736
    %v821 = vunpack.c.h.b16 %v736
    %v822 = vunpack.c.l.b16 %v737
    %v823 = vunpack.c.h.b16 %v737
    %v824 = vunpack.c.l.b16 %v738
    %v825 = vunpack.c.h.b16 %v738
    %v826 = vunpack.c.l.b16 %v739
    %v827 = vunpack.c.h.b16 %v739
    %v828 = vunpack.c.l.b16 %v740
    %v829 = vunpack.c.h.b16 %v740
    %v830 = vunpack.c.l.b16 %v741
    %v831 = vunpack.c.h.b16 %v741
    %v832 = vunpack.c.l.b16 %v742
    %v833 = vunpack.c.h.b16 %v742
    %v834 = vunpack.c.l.b16 %v743
    %v835 = vunpack.c.h.b16 %v743
    %v836 = vunpack.c.l.b16 %v744
    %v837 = vunpack.c.h.b16 %v744
    %v838 = vunpack.c.l.b16 %v745
    %v839 = vunpack.c.h.b16 %v745
    %v840 = vunpack.c.l.b16 %v746
    %v841 = vunpack.c.h.b16 %v746
    %v842 = vunpack.c.l.b16 %v747
    %v843 = vunpack.c.h.b16 %v747
    %v844 = vpack.c.b16 %v782, %v780
    %v845 = vpack.c.b16 %v783, %v781
    %v846 = vpack.c.b16 %v786, %v784
    %v847 = vpack.c.b16 %v787, %v785
    %v848 = vpack.c.b16 %v790, %v788
    %v849 = vpack.c.b16 %v791, %v789
    %v850 = vpack.c.b16 %v794, %v792
    %v851 = vpack.c.b16 %v795, %v793
    %v852 = vpack.c.b16 %v798, %v796
    %v853 = vpack.c.b16 %v799, %v797
    %v854 = vpack.c.b16 %v802, %v800
    %v855 = vpack.c.b16 %v803, %v801
    %v856 = vpack.c.b16 %v806, %v804
    %v857 = vpack.c.b16 %v807, %v805
    %v858 = vpack.c.b16 %v810, %v808
    %v859 = vpack.c.b16 %v811, %v809
    %v860 = vpack.c.b16 %v814, %v812
    %v861 = vpack.c.b16 %v815, %v813
    %v862 = vpack.c.b16 %v818, %v816
    %v863 = vpack.c.b16 %v819, %v817
    %v864 = vpack.c.b16 %v822, %v820
    %v865 = vpack.c.b16 %v823, %v821
    %v866 = vpack.c.b16 %v826, %v824
    %v867 = vpack.c.b16 %v827, %v825
    %v868 = vpack.c.b16 %v830, %v828
    %v869 = vpack.c.b16 %v831, %v829
    %v870 = vpack.c.b16 %v834, %v832
    %v871 = vpack.c.b16 %v835, %v833
    %v872 = vpack.c.b16 %v838, %v836
    %v873 = vpack.c.b16 %v839, %v837
    %v874 = vpack.c.b16 %v842, %v840
    %v875 = vpack.c.b16 %v843, %v841
    %908 = vmatprep.subr.bf16.mxu0 %v859
    %909 = vmatpush1.bf16.msra.mxu0 %v858
    %910 = vmatprep.subr.bf16.mxu0 %v857
    %911 = vmatpush1.bf16.msra.mxu0 %v856
    %912 = vmatprep.subr.bf16.mxu0 %v855
    %913 = vmatpush1.bf16.msra.mxu0 %v854
    %914 = vmatprep.subr.bf16.mxu0 %v853
    %915 = vmatpush1.bf16.msra.mxu0 %v852
    %916 = vmatprep.subr.bf16.mxu0 %v851
    %917 = vmatpush1.bf16.msra.mxu0 %v850
    %918 = vmatprep.subr.bf16.mxu0 %v849
    %919 = vmatpush1.bf16.msra.mxu0 %v848
    %920 = vmatprep.subr.bf16.mxu0 %v847
    %921 = vmatpush1.bf16.msra.mxu0 %v846
    %922 = vmatprep.subr.bf16.mxu0 %v845
    %923 = vmatpush1.bf16.msra.mxu0 %v844
    %924 = vmatprep.subr.bf16.mxu0 %v875
    %925 = vmatpush2.bf16.msra.mxu0 %v874
    %926 = vmatprep.subr.bf16.mxu0 %v873
    %927 = vmatpush2.bf16.msra.mxu0 %v872
    %928 = vmatprep.subr.bf16.mxu0 %v871
    %929 = vmatpush2.bf16.msra.mxu0 %v870
    %930 = vmatprep.subr.bf16.mxu0 %v869
    %931 = vmatpush2.bf16.msra.mxu0 %v868
    %932 = vmatprep.subr.bf16.mxu0 %v867
    %933 = vmatpush2.bf16.msra.mxu0 %v866
    %934 = vmatprep.subr.bf16.mxu0 %v865
    %935 = vmatpush2.bf16.msra.mxu0 %v864
    %936 = vmatprep.subr.bf16.mxu0 %v863
    %937 = vmatpush2.bf16.msra.mxu0 %v862
    %938 = vmatprep.subr.bf16.mxu0 %v861
    %939 = vmatpush2.bf16.msra.mxu0 %v860
    %940 = vmatprep.mubr.bf16.mxu0 %v243
    %941 = vmatmul.mubr.bf16.gmra.mxu0 %v242
    %v942 = vpop.f32.mrf.mxu0
    %v943 = vadd.f32 0.0, %v942
    %v944 = vpop.f32.mrf.mxu0
    %v945 = vadd.f32 0.0, %v944
    %v946 = vpop.f32.mrf.mxu0
    %v947 = vadd.f32 0.0, %v946
    %v948 = vpop.f32.mrf.mxu0
    %v949 = vadd.f32 0.0, %v948
    %950 = vdwg.mxu0
    %v951 = vadd.f32 %v707, %v943
    %v952 = vadd.f32 %v709, %v945
    %v953 = vadd.f32 %v711, %v947
    %v954 = vadd.f32 %v713, %v949
    %v955 = vld [vmem:[#allocation14] sm:$0x3]
    %v957 = vlaneseq
    %v958 = vshrl.u32 %v957, 7
    %v959 = vsub.s32 0, %v958
    %v960 = vrot.slane %v955, %v959
    %v961 = vlaneseq
    %v962 = vshrl.u32 %v961, 7
    %v963 = vsub.s32 1, %v962
    %v964 = vrot.slane %v955, %v963
    %v967 = vadd.f32 %v951, %v960
    %v968 = vadd.f32 %v952, %v964
    %v969 = vadd.f32 %v953, %v960
    %v970 = vadd.f32 %v954, %v964
    %v971 = vmax.f32 %v967, 0.0
    %v972 = vmax.f32 %v968, 0.0
    %v973 = vmax.f32 %v969, 0.0
    %v974 = vmax.f32 %v970, 0.0
    %v979 = vrot.slane %v971, 7
    %v980 = vrot.slane %v972, 7
    %v981 = vrot.slane %v973, 7
    %v982 = vsel %vm168, %v979, %v981
    %v983 = vrot.slane %v974, 7
    %v984 = vsel %vm168, %v980, %v983
    %991 = vst [vmem:[#allocation2] sm:$0xfe] %v979
    %992 = vst [vmem:[#allocation2 + $0x8] sm:$0xfe] %v980
    %993 = vst [vmem:[#allocation2 + $0x10] sm:$0xff] %v982
    %994 = vst [vmem:[#allocation2 + $0x18] sm:$0xff] %v984
    %995 = vst [vmem:[#allocation2 + $0x20] sm:$0x1] %v981
    %996 = vst [vmem:[#allocation2 + $0x28] sm:$0x1] %v983
    %v997 = vld [vmem:[#allocation2] sm:$0xff]
    %v998 = vld [vmem:[#allocation2 + $0x8] sm:$0xff]
    %v999 = vld [vmem:[#allocation2 + $0x10] sm:$0xff]
    %v1000 = vld [vmem:[#allocation2 + $0x18] sm:$0xff]
    %v1001 = vld [vmem:[#allocation2 + $0x20] sm:$0x3]
    %v1002 = vld [vmem:[#allocation2 + $0x28] sm:$0x3]
    %v1003 = vpack.c.bf16 %v999, %v997
    %v1004 = vpack.c.bf16 %v1000, %v998
    %v1005 = vpack.c.bf16 %v1001, %v1001
    %v1006 = vpack.c.bf16 %v1002, %v1002
    %s1007 = scalar_lea.vmem [#allocation7], 48
    %v1008 = vld [vmem:[%s1007] sm:$0xf]
    %vm1009 = vcmask 146432
    %v1011 = vsel %vm1009, %v1008, 0
    %v1014 = vsel %vm168, %v1005, 0
    %v1017 = vsel %vm168, %v1006, 0
    %1019 = vmatprep.subr.bf16.mxu0 0
    %1020 = vmatpush1.bf16.msra.mxu0 0
    %1021 = vmatprep.subr.bf16.mxu0 0
    %1022 = vmatpush1.bf16.msra.mxu0 0
    %1023 = vmatprep.subr.bf16.mxu0 0
    %1024 = vmatpush1.bf16.msra.mxu0 0
    %1025 = vmatprep.subr.bf16.mxu0 0
    %1026 = vmatpush1.bf16.msra.mxu0 0
    %1027 = vmatprep.subr.bf16.mxu0 0
    %1028 = vmatpush1.bf16.msra.mxu0 0
    %1029 = vmatprep.subr.bf16.mxu0 0
    %1030 = vmatpush1.bf16.msra.mxu0 0
    %1031 = vmatprep.subr.bf16.mxu0 %v1017
    %1032 = vmatpush1.bf16.msra.mxu0 %v1014
    %1033 = vmatprep.subr.bf16.mxu0 %v1004
    %1034 = vmatpush1.bf16.msra.mxu0 %v1003
    %1035 = vmatprep.subr.bf16.mxu0 0
    %1036 = vmatpush2.bf16.msra.mxu0 0
    %1037 = vmatprep.subr.bf16.mxu0 0
    %1038 = vmatpush2.bf16.msra.mxu0 0
    %1039 = vmatprep.subr.bf16.mxu0 0
    %1040 = vmatpush2.bf16.msra.mxu0 0
    %1041 = vmatprep.subr.bf16.mxu0 0
    %1042 = vmatpush2.bf16.msra.mxu0 0
    %1043 = vmatprep.subr.bf16.mxu0 0
    %1044 = vmatpush2.bf16.msra.mxu0 0
    %1045 = vmatprep.subr.bf16.mxu0 0
    %1046 = vmatpush2.bf16.msra.mxu0 0
    %1047 = vmatprep.subr.bf16.mxu0 0
    %1048 = vmatpush2.bf16.msra.mxu0 0
    %1049 = vmatprep.subr.bf16.mxu0 0
    %1050 = vmatpush2.bf16.msra.mxu0 0
    %1051 = vmatprep.mubr.bf16.mxu0 0
    %1052 = vmatmul.mubr.bf16.gmra.mxu0 %v1011
    %v1053 = vpop.f32.mrf.mxu0
    %v1054 = vadd.f32 0.0, %v1053
    %v1055 = vpop.f32.mrf.mxu0
    %v1056 = vadd.f32 0.0, %v1055
    %v1057 = vpop.f32.mrf.mxu0
    %v1058 = vpop.f32.mrf.mxu0
    %1059 = vdwg.mxu0
    %v1060 = vpack.c.bf16 %v1054, %v1054
    %v1061 = vpack.c.bf16 %v1056, %v1056
    %s1062 = scalar_lea.vmem [#allocation9], 1536
    %v1063 = vld [vmem:[%s1062] sm:$0xff]
    %v1064 = vld [vmem:[%s1062 + $0x8] sm:$0xff]
    %v1065 = vld [vmem:[%s1062 + $0x10] sm:$0xff]
    %v1066 = vld [vmem:[%s1062 + $0x18] sm:$0xff]
    %v1067 = vld [vmem:[%s1062 + $0x20] sm:$0xff]
    %v1068 = vld [vmem:[%s1062 + $0x28] sm:$0xff]
    %v1069 = vld [vmem:[%s1062 + $0x30] sm:$0xff]
    %v1070 = vld [vmem:[%s1062 + $0x38] sm:$0xff]
    %v1071 = vld [vmem:[%s1062 + $0x40] sm:$0xff]
    %v1072 = vld [vmem:[%s1062 + $0x48] sm:$0xff]
    %v1073 = vld [vmem:[%s1062 + $0x50] sm:$0xff]
    %v1074 = vld [vmem:[%s1062 + $0x58] sm:$0xff]
    %v1075 = vld [vmem:[%s1062 + $0x60] sm:$0xff]
    %v1076 = vld [vmem:[%s1062 + $0x68] sm:$0xff]
    %v1077 = vld [vmem:[%s1062 + $0x70] sm:$0xff]
    %v1078 = vld [vmem:[%s1062 + $0x78] sm:$0xff]
    %v1079 = vld [vmem:[%s1062 + $0x80] sm:$0xff]
    %v1080 = vld [vmem:[%s1062 + $0x88] sm:$0xff]
    %v1081 = vld [vmem:[%s1062 + $0x90] sm:$0xff]
    %v1082 = vld [vmem:[%s1062 + $0x98] sm:$0xff]
    %v1083 = vld [vmem:[%s1062 + $0xa0] sm:$0xff]
    %v1084 = vld [vmem:[%s1062 + $0xa8] sm:$0xff]
    %v1085 = vld [vmem:[%s1062 + $0xb0] sm:$0xff]
    %v1086 = vld [vmem:[%s1062 + $0xb8] sm:$0xff]
    %v1087 = vld [vmem:[%s1062 + $0xc0] sm:$0xff]
    %v1088 = vld [vmem:[%s1062 + $0xc8] sm:$0xff]
    %v1089 = vld [vmem:[%s1062 + $0xd0] sm:$0xff]
    %v1090 = vld [vmem:[%s1062 + $0xd8] sm:$0xff]
    %v1091 = vld [vmem:[%s1062 + $0xe0] sm:$0xff]
    %v1092 = vld [vmem:[%s1062 + $0xe8] sm:$0xff]
    %v1093 = vld [vmem:[%s1062 + $0xf0] sm:$0xff]
    %v1094 = vld [vmem:[%s1062 + $0xf8] sm:$0xff]
    %v1095 = vld [vmem:[#allocation14 + $0x4] sm:$0x3]
    %v1097 = vlaneseq
    %v1098 = vshrl.u32 %v1097, 7
    %v1099 = vsub.s32 0, %v1098
    %v1100 = vrot.slane %v1095, %v1099
    %v1101 = vlaneseq
    %v1102 = vshrl.u32 %v1101, 7
    %v1103 = vsub.s32 1, %v1102
    %v1104 = vrot.slane %v1095, %v1103
    %v1139 = vunpack.c.l.b16 %v1063
    %v1140 = vunpack.c.h.b16 %v1063
    %v1141 = vunpack.c.l.b16 %v1064
    %v1142 = vunpack.c.h.b16 %v1064
    %v1143 = vunpack.c.l.b16 %v1065
    %v1144 = vunpack.c.h.b16 %v1065
    %v1145 = vunpack.c.l.b16 %v1066
    %v1146 = vunpack.c.h.b16 %v1066
    %v1147 = vunpack.c.l.b16 %v1067
    %v1148 = vunpack.c.h.b16 %v1067
    %v1149 = vunpack.c.l.b16 %v1068
    %v1150 = vunpack.c.h.b16 %v1068
    %v1151 = vunpack.c.l.b16 %v1069
    %v1152 = vunpack.c.h.b16 %v1069
    %v1153 = vunpack.c.l.b16 %v1070
    %v1154 = vunpack.c.h.b16 %v1070
    %v1155 = vunpack.c.l.b16 %v1071
    %v1156 = vunpack.c.h.b16 %v1071
    %v1157 = vunpack.c.l.b16 %v1072
    %v1158 = vunpack.c.h.b16 %v1072
    %v1159 = vunpack.c.l.b16 %v1073
    %v1160 = vunpack.c.h.b16 %v1073
    %v1161 = vunpack.c.l.b16 %v1074
    %v1162 = vunpack.c.h.b16 %v1074
    %v1163 = vunpack.c.l.b16 %v1075
    %v1164 = vunpack.c.h.b16 %v1075
    %v1165 = vunpack.c.l.b16 %v1076
    %v1166 = vunpack.c.h.b16 %v1076
    %v1167 = vunpack.c.l.b16 %v1077
    %v1168 = vunpack.c.h.b16 %v1077
    %v1169 = vunpack.c.l.b16 %v1078
    %v1170 = vunpack.c.h.b16 %v1078
    %v1171 = vunpack.c.l.b16 %v1079
    %v1172 = vunpack.c.h.b16 %v1079
    %v1173 = vunpack.c.l.b16 %v1080
    %v1174 = vunpack.c.h.b16 %v1080
    %v1175 = vunpack.c.l.b16 %v1081
    %v1176 = vunpack.c.h.b16 %v1081
    %v1177 = vunpack.c.l.b16 %v1082
    %v1178 = vunpack.c.h.b16 %v1082
    %v1179 = vunpack.c.l.b16 %v1083
    %v1180 = vunpack.c.h.b16 %v1083
    %v1181 = vunpack.c.l.b16 %v1084
    %v1182 = vunpack.c.h.b16 %v1084
    %v1183 = vunpack.c.l.b16 %v1085
    %v1184 = vunpack.c.h.b16 %v1085
    %v1185 = vunpack.c.l.b16 %v1086
    %v1186 = vunpack.c.h.b16 %v1086
    %v1187 = vunpack.c.l.b16 %v1087
    %v1188 = vunpack.c.h.b16 %v1087
    %v1189 = vunpack.c.l.b16 %v1088
    %v1190 = vunpack.c.h.b16 %v1088
    %v1191 = vunpack.c.l.b16 %v1089
    %v1192 = vunpack.c.h.b16 %v1089
    %v1193 = vunpack.c.l.b16 %v1090
    %v1194 = vunpack.c.h.b16 %v1090
    %v1195 = vunpack.c.l.b16 %v1091
    %v1196 = vunpack.c.h.b16 %v1091
    %v1197 = vunpack.c.l.b16 %v1092
    %v1198 = vunpack.c.h.b16 %v1092
    %v1199 = vunpack.c.l.b16 %v1093
    %v1200 = vunpack.c.h.b16 %v1093
    %v1201 = vunpack.c.l.b16 %v1094
    %v1202 = vunpack.c.h.b16 %v1094
    %v1203 = vpack.c.b16 %v1141, %v1139
    %v1204 = vpack.c.b16 %v1142, %v1140
    %v1205 = vpack.c.b16 %v1145, %v1143
    %v1206 = vpack.c.b16 %v1146, %v1144
    %v1207 = vpack.c.b16 %v1149, %v1147
    %v1208 = vpack.c.b16 %v1150, %v1148
    %v1209 = vpack.c.b16 %v1153, %v1151
    %v1210 = vpack.c.b16 %v1154, %v1152
    %v1211 = vpack.c.b16 %v1157, %v1155
    %v1212 = vpack.c.b16 %v1158, %v1156
    %v1213 = vpack.c.b16 %v1161, %v1159
    %v1214 = vpack.c.b16 %v1162, %v1160
    %v1215 = vpack.c.b16 %v1165, %v1163
    %v1216 = vpack.c.b16 %v1166, %v1164
    %v1217 = vpack.c.b16 %v1169, %v1167
    %v1218 = vpack.c.b16 %v1170, %v1168
    %v1219 = vpack.c.b16 %v1173, %v1171
    %v1220 = vpack.c.b16 %v1174, %v1172
    %v1221 = vpack.c.b16 %v1177, %v1175
    %v1222 = vpack.c.b16 %v1178, %v1176
    %v1223 = vpack.c.b16 %v1181, %v1179
    %v1224 = vpack.c.b16 %v1182, %v1180
    %v1225 = vpack.c.b16 %v1185, %v1183
    %v1226 = vpack.c.b16 %v1186, %v1184
    %v1227 = vpack.c.b16 %v1189, %v1187
    %v1228 = vpack.c.b16 %v1190, %v1188
    %v1229 = vpack.c.b16 %v1193, %v1191
    %v1230 = vpack.c.b16 %v1194, %v1192
    %v1231 = vpack.c.b16 %v1197, %v1195
    %v1232 = vpack.c.b16 %v1198, %v1196
    %v1233 = vpack.c.b16 %v1201, %v1199
    %v1234 = vpack.c.b16 %v1202, %v1200
    %1267 = vmatprep.subr.bf16.mxu0 %v1218
    %1268 = vmatpush1.bf16.msra.mxu0 %v1217
    %1269 = vmatprep.subr.bf16.mxu0 %v1216
    %1270 = vmatpush1.bf16.msra.mxu0 %v1215
    %1271 = vmatprep.subr.bf16.mxu0 %v1214
    %1272 = vmatpush1.bf16.msra.mxu0 %v1213
    %1273 = vmatprep.subr.bf16.mxu0 %v1212
    %1274 = vmatpush1.bf16.msra.mxu0 %v1211
    %1275 = vmatprep.subr.bf16.mxu0 %v1210
    %1276 = vmatpush1.bf16.msra.mxu0 %v1209
    %1277 = vmatprep.subr.bf16.mxu0 %v1208
    %1278 = vmatpush1.bf16.msra.mxu0 %v1207
    %1279 = vmatprep.subr.bf16.mxu0 %v1206
    %1280 = vmatpush1.bf16.msra.mxu0 %v1205
    %1281 = vmatprep.subr.bf16.mxu0 %v1204
    %1282 = vmatpush1.bf16.msra.mxu0 %v1203
    %1283 = vmatprep.subr.bf16.mxu0 %v1234
    %1284 = vmatpush2.bf16.msra.mxu0 %v1233
    %1285 = vmatprep.subr.bf16.mxu0 %v1232
    %1286 = vmatpush2.bf16.msra.mxu0 %v1231
    %1287 = vmatprep.subr.bf16.mxu0 %v1230
    %1288 = vmatpush2.bf16.msra.mxu0 %v1229
    %1289 = vmatprep.subr.bf16.mxu0 %v1228
    %1290 = vmatpush2.bf16.msra.mxu0 %v1227
    %1291 = vmatprep.subr.bf16.mxu0 %v1226
    %1292 = vmatpush2.bf16.msra.mxu0 %v1225
    %1293 = vmatprep.subr.bf16.mxu0 %v1224
    %1294 = vmatpush2.bf16.msra.mxu0 %v1223
    %1295 = vmatprep.subr.bf16.mxu0 %v1222
    %1296 = vmatpush2.bf16.msra.mxu0 %v1221
    %1297 = vmatprep.subr.bf16.mxu0 %v1220
    %1298 = vmatpush2.bf16.msra.mxu0 %v1219
    %1299 = vmatprep.mubr.bf16.mxu0 %v1061
    %1300 = vmatmul.mubr.bf16.gmra.mxu0 %v1060
    %v1301 = vpop.f32.mrf.mxu0
    %v1302 = vadd.f32 %v1100, %v1301
    %v1303 = vpop.f32.mrf.mxu0
    %v1304 = vadd.f32 %v1104, %v1303
    %v1305 = vpop.f32.mrf.mxu0
    %v1306 = vpop.f32.mrf.mxu0
    %1307 = vdwg.mxu0
    %s1308 = scalar_lea.vmem [#allocation7], 24
    %v1309 = vld [vmem:[%s1308] sm:$0xf]
    %v1310 = vld [vmem:[%s1308 + $0x4] sm:$0xf]
    %v1311 = vld [vmem:[%s1308 + $0x8] sm:$0xf]
    %v1315 = vunpack.c.l.b16 %v1309
    %v1316 = vunpack.c.l.b16 %v1310
    %v1317 = vunpack.c.l.b16 %v1311
    %v1318 = vpack.c.b16 %v1316, %v1315
    %v1319 = vpack.c.b16 %v1317, %v1317
    %v1321 = vsel %vm1009, %v1318, 0
    %v1324 = vsel %vm1009, %v1319, 0
    %1326 = vmatprep.subr.bf16.mxu0 0
    %1327 = vmatpush1.bf16.msra.mxu0 0
    %1328 = vmatprep.subr.bf16.mxu0 0
    %1329 = vmatpush1.bf16.msra.mxu0 0
    %1330 = vmatprep.subr.bf16.mxu0 0
    %1331 = vmatpush1.bf16.msra.mxu0 0
    %1332 = vmatprep.subr.bf16.mxu0 0
    %1333 = vmatpush1.bf16.msra.mxu0 0
    %1334 = vmatprep.subr.bf16.mxu0 0
    %1335 = vmatpush1.bf16.msra.mxu0 0
    %1336 = vmatprep.subr.bf16.mxu0 0
    %1337 = vmatpush1.bf16.msra.mxu0 0
    %1338 = vmatprep.subr.bf16.mxu0 %v1017
    %1339 = vmatpush1.bf16.msra.mxu0 %v1014
    %1340 = vmatprep.subr.bf16.mxu0 %v1004
    %1341 = vmatpush1.bf16.msra.mxu0 %v1003
    %1342 = vmatprep.subr.bf16.mxu0 0
    %1343 = vmatpush2.bf16.msra.mxu0 0
    %1344 = vmatprep.subr.bf16.mxu0 0
    %1345 = vmatpush2.bf16.msra.mxu0 0
    %1346 = vmatprep.subr.bf16.mxu0 0
    %1347 = vmatpush2.bf16.msra.mxu0 0
    %1348 = vmatprep.subr.bf16.mxu0 0
    %1349 = vmatpush2.bf16.msra.mxu0 0
    %1350 = vmatprep.subr.bf16.mxu0 0
    %1351 = vmatpush2.bf16.msra.mxu0 0
    %1352 = vmatprep.subr.bf16.mxu0 0
    %1353 = vmatpush2.bf16.msra.mxu0 0
    %1354 = vmatprep.subr.bf16.mxu0 0
    %1355 = vmatpush2.bf16.msra.mxu0 0
    %1356 = vmatprep.subr.bf16.mxu0 0
    %1357 = vmatpush2.bf16.msra.mxu0 0
    %1358 = vmatprep.mubr.bf16.mxu0 0
    %1359 = vmatmul.mubr.bf16.gmra.mxu0 %v1321
    %v1360 = vpop.f32.mrf.mxu0
    %v1361 = vadd.f32 0.0, %v1360
    %v1362 = vpop.f32.mrf.mxu0
    %v1363 = vadd.f32 0.0, %v1362
    %v1364 = vpop.f32.mrf.mxu0
    %v1365 = vadd.f32 0.0, %v1364
    %v1366 = vpop.f32.mrf.mxu0
    %v1367 = vadd.f32 0.0, %v1366
    %1368 = vmatprep.mubr.bf16.mxu0 0
    %1369 = vmatmul.mubr.bf16.gmra.mxu0 %v1324
    %v1370 = vpop.f32.mrf.mxu0
    %v1371 = vadd.f32 0.0, %v1370
    %v1372 = vpop.f32.mrf.mxu0
    %v1373 = vadd.f32 0.0, %v1372
    %v1374 = vpop.f32.mrf.mxu0
    %v1375 = vpop.f32.mrf.mxu0
    %1376 = vdwg.mxu0
    %v1377 = vpack.c.bf16 %v1365, %v1361
    %v1378 = vpack.c.bf16 %v1367, %v1363
    %v1379 = vpack.c.bf16 %v1371, %v1371
    %v1380 = vpack.c.bf16 %v1373, %v1373
    %s1381 = scalar_lea.vmem [#allocation9], 768
    %v1382 = vld [vmem:[%s1381] sm:$0xff]
    %v1383 = vld [vmem:[%s1381 + $0x8] sm:$0xff]
    %v1384 = vld [vmem:[%s1381 + $0x10] sm:$0xff]
    %v1385 = vld [vmem:[%s1381 + $0x18] sm:$0xff]
    %v1386 = vld [vmem:[%s1381 + $0x20] sm:$0xff]
    %v1387 = vld [vmem:[%s1381 + $0x28] sm:$0xff]
    %v1388 = vld [vmem:[%s1381 + $0x30] sm:$0xff]
    %v1389 = vld [vmem:[%s1381 + $0x38] sm:$0xff]
    %v1390 = vld [vmem:[%s1381 + $0x40] sm:$0xff]
    %v1391 = vld [vmem:[%s1381 + $0x48] sm:$0xff]
    %v1392 = vld [vmem:[%s1381 + $0x50] sm:$0xff]
    %v1393 = vld [vmem:[%s1381 + $0x58] sm:$0xff]
    %v1394 = vld [vmem:[%s1381 + $0x60] sm:$0xff]
    %v1395 = vld [vmem:[%s1381 + $0x68] sm:$0xff]
    %v1396 = vld [vmem:[%s1381 + $0x70] sm:$0xff]
    %v1397 = vld [vmem:[%s1381 + $0x78] sm:$0xff]
    %v1398 = vld [vmem:[%s1381 + $0x80] sm:$0xff]
    %v1399 = vld [vmem:[%s1381 + $0x88] sm:$0xff]
    %v1400 = vld [vmem:[%s1381 + $0x90] sm:$0xff]
    %v1401 = vld [vmem:[%s1381 + $0x98] sm:$0xff]
    %v1402 = vld [vmem:[%s1381 + $0xa0] sm:$0xff]
    %v1403 = vld [vmem:[%s1381 + $0xa8] sm:$0xff]
    %v1404 = vld [vmem:[%s1381 + $0xb0] sm:$0xff]
    %v1405 = vld [vmem:[%s1381 + $0xb8] sm:$0xff]
    %v1406 = vld [vmem:[%s1381 + $0xc0] sm:$0xff]
    %v1407 = vld [vmem:[%s1381 + $0xc8] sm:$0xff]
    %v1408 = vld [vmem:[%s1381 + $0xd0] sm:$0xff]
    %v1409 = vld [vmem:[%s1381 + $0xd8] sm:$0xff]
    %v1410 = vld [vmem:[%s1381 + $0xe0] sm:$0xff]
    %v1411 = vld [vmem:[%s1381 + $0xe8] sm:$0xff]
    %v1412 = vld [vmem:[%s1381 + $0xf0] sm:$0xff]
    %v1413 = vld [vmem:[%s1381 + $0xf8] sm:$0xff]
    %s1414 = scalar_lea.vmem [#allocation9], 1024
    %v1415 = vld [vmem:[%s1414] sm:$0xff]
    %v1416 = vld [vmem:[%s1414 + $0x8] sm:$0xff]
    %v1417 = vld [vmem:[%s1414 + $0x10] sm:$0xff]
    %v1418 = vld [vmem:[%s1414 + $0x18] sm:$0xff]
    %v1419 = vld [vmem:[%s1414 + $0x20] sm:$0xff]
    %v1420 = vld [vmem:[%s1414 + $0x28] sm:$0xff]
    %v1421 = vld [vmem:[%s1414 + $0x30] sm:$0xff]
    %v1422 = vld [vmem:[%s1414 + $0x38] sm:$0xff]
    %v1423 = vld [vmem:[%s1414 + $0x40] sm:$0xff]
    %v1424 = vld [vmem:[%s1414 + $0x48] sm:$0xff]
    %v1425 = vld [vmem:[%s1414 + $0x50] sm:$0xff]
    %v1426 = vld [vmem:[%s1414 + $0x58] sm:$0xff]
    %v1427 = vld [vmem:[%s1414 + $0x60] sm:$0xff]
    %v1428 = vld [vmem:[%s1414 + $0x68] sm:$0xff]
    %v1429 = vld [vmem:[%s1414 + $0x70] sm:$0xff]
    %v1430 = vld [vmem:[%s1414 + $0x78] sm:$0xff]
    %v1431 = vld [vmem:[%s1414 + $0x80] sm:$0xff]
    %v1432 = vld [vmem:[%s1414 + $0x88] sm:$0xff]
    %v1433 = vld [vmem:[%s1414 + $0x90] sm:$0xff]
    %v1434 = vld [vmem:[%s1414 + $0x98] sm:$0xff]
    %v1435 = vld [vmem:[%s1414 + $0xa0] sm:$0xff]
    %v1436 = vld [vmem:[%s1414 + $0xa8] sm:$0xff]
    %v1437 = vld [vmem:[%s1414 + $0xb0] sm:$0xff]
    %v1438 = vld [vmem:[%s1414 + $0xb8] sm:$0xff]
    %v1439 = vld [vmem:[%s1414 + $0xc0] sm:$0xff]
    %v1440 = vld [vmem:[%s1414 + $0xc8] sm:$0xff]
    %v1441 = vld [vmem:[%s1414 + $0xd0] sm:$0xff]
    %v1442 = vld [vmem:[%s1414 + $0xd8] sm:$0xff]
    %v1443 = vld [vmem:[%s1414 + $0xe0] sm:$0xff]
    %v1444 = vld [vmem:[%s1414 + $0xe8] sm:$0xff]
    %v1445 = vld [vmem:[%s1414 + $0xf0] sm:$0xff]
    %v1446 = vld [vmem:[%s1414 + $0xf8] sm:$0xff]
    %v1449 = vrot.slane %v1377, 4
    %v1450 = vrot.slane %v1378, 4
    %v1485 = vunpack.c.l.b16 %v1415
    %v1486 = vunpack.c.h.b16 %v1415
    %v1487 = vunpack.c.l.b16 %v1416
    %v1488 = vunpack.c.h.b16 %v1416
    %v1489 = vunpack.c.l.b16 %v1417
    %v1490 = vunpack.c.h.b16 %v1417
    %v1491 = vunpack.c.l.b16 %v1418
    %v1492 = vunpack.c.h.b16 %v1418
    %v1493 = vunpack.c.l.b16 %v1419
    %v1494 = vunpack.c.h.b16 %v1419
    %v1495 = vunpack.c.l.b16 %v1420
    %v1496 = vunpack.c.h.b16 %v1420
    %v1497 = vunpack.c.l.b16 %v1421
    %v1498 = vunpack.c.h.b16 %v1421
    %v1499 = vunpack.c.l.b16 %v1422
    %v1500 = vunpack.c.h.b16 %v1422
    %v1501 = vunpack.c.l.b16 %v1423
    %v1502 = vunpack.c.h.b16 %v1423
    %v1503 = vunpack.c.l.b16 %v1424
    %v1504 = vunpack.c.h.b16 %v1424
    %v1505 = vunpack.c.l.b16 %v1425
    %v1506 = vunpack.c.h.b16 %v1425
    %v1507 = vunpack.c.l.b16 %v1426
    %v1508 = vunpack.c.h.b16 %v1426
    %v1509 = vunpack.c.l.b16 %v1427
    %v1510 = vunpack.c.h.b16 %v1427
    %v1511 = vunpack.c.l.b16 %v1428
    %v1512 = vunpack.c.h.b16 %v1428
    %v1513 = vunpack.c.l.b16 %v1429
    %v1514 = vunpack.c.h.b16 %v1429
    %v1515 = vunpack.c.l.b16 %v1430
    %v1516 = vunpack.c.h.b16 %v1430
    %v1517 = vunpack.c.l.b16 %v1431
    %v1518 = vunpack.c.h.b16 %v1431
    %v1519 = vunpack.c.l.b16 %v1432
    %v1520 = vunpack.c.h.b16 %v1432
    %v1521 = vunpack.c.l.b16 %v1433
    %v1522 = vunpack.c.h.b16 %v1433
    %v1523 = vunpack.c.l.b16 %v1434
    %v1524 = vunpack.c.h.b16 %v1434
    %v1525 = vunpack.c.l.b16 %v1435
    %v1526 = vunpack.c.h.b16 %v1435
    %v1527 = vunpack.c.l.b16 %v1436
    %v1528 = vunpack.c.h.b16 %v1436
    %v1529 = vunpack.c.l.b16 %v1437
    %v1530 = vunpack.c.h.b16 %v1437
    %v1531 = vunpack.c.l.b16 %v1438
    %v1532 = vunpack.c.h.b16 %v1438
    %v1533 = vunpack.c.l.b16 %v1439
    %v1534 = vunpack.c.h.b16 %v1439
    %v1535 = vunpack.c.l.b16 %v1440
    %v1536 = vunpack.c.h.b16 %v1440
    %v1537 = vunpack.c.l.b16 %v1441
    %v1538 = vunpack.c.h.b16 %v1441
    %v1539 = vunpack.c.l.b16 %v1442
    %v1540 = vunpack.c.h.b16 %v1442
    %v1541 = vunpack.c.l.b16 %v1443
    %v1542 = vunpack.c.h.b16 %v1443
    %v1543 = vunpack.c.l.b16 %v1444
    %v1544 = vunpack.c.h.b16 %v1444
    %v1545 = vunpack.c.l.b16 %v1445
    %v1546 = vunpack.c.h.b16 %v1445
    %v1547 = vunpack.c.l.b16 %v1446
    %v1548 = vunpack.c.h.b16 %v1446
    %v1549 = vpack.c.b16 %v1487, %v1485
    %v1550 = vpack.c.b16 %v1488, %v1486
    %v1551 = vpack.c.b16 %v1491, %v1489
    %v1552 = vpack.c.b16 %v1492, %v1490
    %v1553 = vpack.c.b16 %v1495, %v1493
    %v1554 = vpack.c.b16 %v1496, %v1494
    %v1555 = vpack.c.b16 %v1499, %v1497
    %v1556 = vpack.c.b16 %v1500, %v1498
    %v1557 = vpack.c.b16 %v1503, %v1501
    %v1558 = vpack.c.b16 %v1504, %v1502
    %v1559 = vpack.c.b16 %v1507, %v1505
    %v1560 = vpack.c.b16 %v1508, %v1506
    %v1561 = vpack.c.b16 %v1511, %v1509
    %v1562 = vpack.c.b16 %v1512, %v1510
    %v1563 = vpack.c.b16 %v1515, %v1513
    %v1564 = vpack.c.b16 %v1516, %v1514
    %v1565 = vpack.c.b16 %v1519, %v1517
    %v1566 = vpack.c.b16 %v1520, %v1518
    %v1567 = vpack.c.b16 %v1523, %v1521
    %v1568 = vpack.c.b16 %v1524, %v1522
    %v1569 = vpack.c.b16 %v1527, %v1525
    %v1570 = vpack.c.b16 %v1528, %v1526
    %v1571 = vpack.c.b16 %v1531, %v1529
    %v1572 = vpack.c.b16 %v1532, %v1530
    %v1573 = vpack.c.b16 %v1535, %v1533
    %v1574 = vpack.c.b16 %v1536, %v1534
    %v1575 = vpack.c.b16 %v1539, %v1537
    %v1576 = vpack.c.b16 %v1540, %v1538
    %v1577 = vpack.c.b16 %v1543, %v1541
    %v1578 = vpack.c.b16 %v1544, %v1542
    %v1579 = vpack.c.b16 %v1547, %v1545
    %v1580 = vpack.c.b16 %v1548, %v1546
    %1613 = vmatprep.subr.bf16.mxu0 %v1564
    %1614 = vmatpush1.bf16.msra.mxu0 %v1563
    %1615 = vmatprep.subr.bf16.mxu0 %v1562
    %1616 = vmatpush1.bf16.msra.mxu0 %v1561
    %1617 = vmatprep.subr.bf16.mxu0 %v1560
    %1618 = vmatpush1.bf16.msra.mxu0 %v1559
    %1619 = vmatprep.subr.bf16.mxu0 %v1558
    %1620 = vmatpush1.bf16.msra.mxu0 %v1557
    %1621 = vmatprep.subr.bf16.mxu0 %v1556
    %1622 = vmatpush1.bf16.msra.mxu0 %v1555
    %1623 = vmatprep.subr.bf16.mxu0 %v1554
    %1624 = vmatpush1.bf16.msra.mxu0 %v1553
    %1625 = vmatprep.subr.bf16.mxu0 %v1552
    %1626 = vmatpush1.bf16.msra.mxu0 %v1551
    %1627 = vmatprep.subr.bf16.mxu0 %v1550
    %1628 = vmatpush1.bf16.msra.mxu0 %v1549
    %1629 = vmatprep.subr.bf16.mxu0 %v1580
    %1630 = vmatpush2.bf16.msra.mxu0 %v1579
    %1631 = vmatprep.subr.bf16.mxu0 %v1578
    %1632 = vmatpush2.bf16.msra.mxu0 %v1577
    %1633 = vmatprep.subr.bf16.mxu0 %v1576
    %1634 = vmatpush2.bf16.msra.mxu0 %v1575
    %1635 = vmatprep.subr.bf16.mxu0 %v1574
    %1636 = vmatpush2.bf16.msra.mxu0 %v1573
    %1637 = vmatprep.subr.bf16.mxu0 %v1572
    %1638 = vmatpush2.bf16.msra.mxu0 %v1571
    %1639 = vmatprep.subr.bf16.mxu0 %v1570
    %1640 = vmatpush2.bf16.msra.mxu0 %v1569
    %1641 = vmatprep.subr.bf16.mxu0 %v1568
    %1642 = vmatpush2.bf16.msra.mxu0 %v1567
    %1643 = vmatprep.subr.bf16.mxu0 %v1566
    %1644 = vmatpush2.bf16.msra.mxu0 %v1565
    %1645 = vmatprep.mubr.bf16.mxu0 %v1450
    %1646 = vmatmul.mubr.bf16.gmra.mxu0 %v1449
    %v1647 = vpop.f32.mrf.mxu0
    %v1648 = vadd.f32 0.0, %v1647
    %v1649 = vpop.f32.mrf.mxu0
    %v1650 = vadd.f32 0.0, %v1649
    %v1651 = vpop.f32.mrf.mxu0
    %v1652 = vpop.f32.mrf.mxu0
    %1653 = vdwg.mxu0
    %v1686 = vunpack.c.l.b16 %v1382
    %v1687 = vunpack.c.h.b16 %v1382
    %v1688 = vunpack.c.l.b16 %v1383
    %v1689 = vunpack.c.h.b16 %v1383
    %v1690 = vunpack.c.l.b16 %v1384
    %v1691 = vunpack.c.h.b16 %v1384
    %v1692 = vunpack.c.l.b16 %v1385
    %v1693 = vunpack.c.h.b16 %v1385
    %v1694 = vunpack.c.l.b16 %v1386
    %v1695 = vunpack.c.h.b16 %v1386
    %v1696 = vunpack.c.l.b16 %v1387
    %v1697 = vunpack.c.h.b16 %v1387
    %v1698 = vunpack.c.l.b16 %v1388
    %v1699 = vunpack.c.h.b16 %v1388
    %v1700 = vunpack.c.l.b16 %v1389
    %v1701 = vunpack.c.h.b16 %v1389
    %v1702 = vunpack.c.l.b16 %v1390
    %v1703 = vunpack.c.h.b16 %v1390
    %v1704 = vunpack.c.l.b16 %v1391
    %v1705 = vunpack.c.h.b16 %v1391
    %v1706 = vunpack.c.l.b16 %v1392
    %v1707 = vunpack.c.h.b16 %v1392
    %v1708 = vunpack.c.l.b16 %v1393
    %v1709 = vunpack.c.h.b16 %v1393
    %v1710 = vunpack.c.l.b16 %v1394
    %v1711 = vunpack.c.h.b16 %v1394
    %v1712 = vunpack.c.l.b16 %v1395
    %v1713 = vunpack.c.h.b16 %v1395
    %v1714 = vunpack.c.l.b16 %v1396
    %v1715 = vunpack.c.h.b16 %v1396
    %v1716 = vunpack.c.l.b16 %v1397
    %v1717 = vunpack.c.h.b16 %v1397
    %v1718 = vunpack.c.l.b16 %v1398
    %v1719 = vunpack.c.h.b16 %v1398
    %v1720 = vunpack.c.l.b16 %v1399
    %v1721 = vunpack.c.h.b16 %v1399
    %v1722 = vunpack.c.l.b16 %v1400
    %v1723 = vunpack.c.h.b16 %v1400
    %v1724 = vunpack.c.l.b16 %v1401
    %v1725 = vunpack.c.h.b16 %v1401
    %v1726 = vunpack.c.l.b16 %v1402
    %v1727 = vunpack.c.h.b16 %v1402
    %v1728 = vunpack.c.l.b16 %v1403
    %v1729 = vunpack.c.h.b16 %v1403
    %v1730 = vunpack.c.l.b16 %v1404
    %v1731 = vunpack.c.h.b16 %v1404
    %v1732 = vunpack.c.l.b16 %v1405
    %v1733 = vunpack.c.h.b16 %v1405
    %v1734 = vunpack.c.l.b16 %v1406
    %v1735 = vunpack.c.h.b16 %v1406
    %v1736 = vunpack.c.l.b16 %v1407
    %v1737 = vunpack.c.h.b16 %v1407
    %v1738 = vunpack.c.l.b16 %v1408
    %v1739 = vunpack.c.h.b16 %v1408
    %v1740 = vunpack.c.l.b16 %v1409
    %v1741 = vunpack.c.h.b16 %v1409
    %v1742 = vunpack.c.l.b16 %v1410
    %v1743 = vunpack.c.h.b16 %v1410
    %v1744 = vunpack.c.l.b16 %v1411
    %v1745 = vunpack.c.h.b16 %v1411
    %v1746 = vunpack.c.l.b16 %v1412
    %v1747 = vunpack.c.h.b16 %v1412
    %v1748 = vunpack.c.l.b16 %v1413
    %v1749 = vunpack.c.h.b16 %v1413
    %v1750 = vpack.c.b16 %v1688, %v1686
    %v1751 = vpack.c.b16 %v1689, %v1687
    %v1752 = vpack.c.b16 %v1692, %v1690
    %v1753 = vpack.c.b16 %v1693, %v1691
    %v1754 = vpack.c.b16 %v1696, %v1694
    %v1755 = vpack.c.b16 %v1697, %v1695
    %v1756 = vpack.c.b16 %v1700, %v1698
    %v1757 = vpack.c.b16 %v1701, %v1699
    %v1758 = vpack.c.b16 %v1704, %v1702
    %v1759 = vpack.c.b16 %v1705, %v1703
    %v1760 = vpack.c.b16 %v1708, %v1706
    %v1761 = vpack.c.b16 %v1709, %v1707
    %v1762 = vpack.c.b16 %v1712, %v1710
    %v1763 = vpack.c.b16 %v1713, %v1711
    %v1764 = vpack.c.b16 %v1716, %v1714
    %v1765 = vpack.c.b16 %v1717, %v1715
    %v1766 = vpack.c.b16 %v1720, %v1718
    %v1767 = vpack.c.b16 %v1721, %v1719
    %v1768 = vpack.c.b16 %v1724, %v1722
    %v1769 = vpack.c.b16 %v1725, %v1723
    %v1770 = vpack.c.b16 %v1728, %v1726
    %v1771 = vpack.c.b16 %v1729, %v1727
    %v1772 = vpack.c.b16 %v1732, %v1730
    %v1773 = vpack.c.b16 %v1733, %v1731
    %v1774 = vpack.c.b16 %v1736, %v1734
    %v1775 = vpack.c.b16 %v1737, %v1735
    %v1776 = vpack.c.b16 %v1740, %v1738
    %v1777 = vpack.c.b16 %v1741, %v1739
    %v1778 = vpack.c.b16 %v1744, %v1742
    %v1779 = vpack.c.b16 %v1745, %v1743
    %v1780 = vpack.c.b16 %v1748, %v1746
    %v1781 = vpack.c.b16 %v1749, %v1747
    %1814 = vmatprep.subr.bf16.mxu0 %v1765
    %1815 = vmatpush1.bf16.msra.mxu0 %v1764
    %1816 = vmatprep.subr.bf16.mxu0 %v1763
    %1817 = vmatpush1.bf16.msra.mxu0 %v1762
    %1818 = vmatprep.subr.bf16.mxu0 %v1761
    %1819 = vmatpush1.bf16.msra.mxu0 %v1760
    %1820 = vmatprep.subr.bf16.mxu0 %v1759
    %1821 = vmatpush1.bf16.msra.mxu0 %v1758
    %1822 = vmatprep.subr.bf16.mxu0 %v1757
    %1823 = vmatpush1.bf16.msra.mxu0 %v1756
    %1824 = vmatprep.subr.bf16.mxu0 %v1755
    %1825 = vmatpush1.bf16.msra.mxu0 %v1754
    %1826 = vmatprep.subr.bf16.mxu0 %v1753
    %1827 = vmatpush1.bf16.msra.mxu0 %v1752
    %1828 = vmatprep.subr.bf16.mxu0 %v1751
    %1829 = vmatpush1.bf16.msra.mxu0 %v1750
    %1830 = vmatprep.subr.bf16.mxu0 %v1781
    %1831 = vmatpush2.bf16.msra.mxu0 %v1780
    %1832 = vmatprep.subr.bf16.mxu0 %v1779
    %1833 = vmatpush2.bf16.msra.mxu0 %v1778
    %1834 = vmatprep.subr.bf16.mxu0 %v1777
    %1835 = vmatpush2.bf16.msra.mxu0 %v1776
    %1836 = vmatprep.subr.bf16.mxu0 %v1775
    %1837 = vmatpush2.bf16.msra.mxu0 %v1774
    %1838 = vmatprep.subr.bf16.mxu0 %v1773
    %1839 = vmatpush2.bf16.msra.mxu0 %v1772
    %1840 = vmatprep.subr.bf16.mxu0 %v1771
    %1841 = vmatpush2.bf16.msra.mxu0 %v1770
    %1842 = vmatprep.subr.bf16.mxu0 %v1769
    %1843 = vmatpush2.bf16.msra.mxu0 %v1768
    %1844 = vmatprep.subr.bf16.mxu0 %v1767
    %1845 = vmatpush2.bf16.msra.mxu0 %v1766
    %1846 = vmatprep.mubr.bf16.mxu0 %v1378
    %1847 = vmatmul.mubr.bf16.gmra.mxu0 %v1377
    %v1848 = vpop.f32.mrf.mxu0
    %v1849 = vadd.f32 %v1648, %v1848
    %v1850 = vpop.f32.mrf.mxu0
    %v1851 = vadd.f32 %v1650, %v1850
    %v1852 = vpop.f32.mrf.mxu0
    %v1853 = vpop.f32.mrf.mxu0
    %1854 = vdwg.mxu0
    %s1855 = scalar_lea.vmem [#allocation9], 1280
    %v1856 = vld [vmem:[%s1855] sm:$0xff]
    %v1857 = vld [vmem:[%s1855 + $0x8] sm:$0xff]
    %v1858 = vld [vmem:[%s1855 + $0x10] sm:$0xff]
    %v1859 = vld [vmem:[%s1855 + $0x18] sm:$0xff]
    %v1860 = vld [vmem:[%s1855 + $0x20] sm:$0xff]
    %v1861 = vld [vmem:[%s1855 + $0x28] sm:$0xff]
    %v1862 = vld [vmem:[%s1855 + $0x30] sm:$0xff]
    %v1863 = vld [vmem:[%s1855 + $0x38] sm:$0xff]
    %v1864 = vld [vmem:[%s1855 + $0x40] sm:$0xff]
    %v1865 = vld [vmem:[%s1855 + $0x48] sm:$0xff]
    %v1866 = vld [vmem:[%s1855 + $0x50] sm:$0xff]
    %v1867 = vld [vmem:[%s1855 + $0x58] sm:$0xff]
    %v1868 = vld [vmem:[%s1855 + $0x60] sm:$0xff]
    %v1869 = vld [vmem:[%s1855 + $0x68] sm:$0xff]
    %v1870 = vld [vmem:[%s1855 + $0x70] sm:$0xff]
    %v1871 = vld [vmem:[%s1855 + $0x78] sm:$0xff]
    %v1872 = vld [vmem:[%s1855 + $0x80] sm:$0xff]
    %v1873 = vld [vmem:[%s1855 + $0x88] sm:$0xff]
    %v1874 = vld [vmem:[%s1855 + $0x90] sm:$0xff]
    %v1875 = vld [vmem:[%s1855 + $0x98] sm:$0xff]
    %v1876 = vld [vmem:[%s1855 + $0xa0] sm:$0xff]
    %v1877 = vld [vmem:[%s1855 + $0xa8] sm:$0xff]
    %v1878 = vld [vmem:[%s1855 + $0xb0] sm:$0xff]
    %v1879 = vld [vmem:[%s1855 + $0xb8] sm:$0xff]
    %v1880 = vld [vmem:[%s1855 + $0xc0] sm:$0xff]
    %v1881 = vld [vmem:[%s1855 + $0xc8] sm:$0xff]
    %v1882 = vld [vmem:[%s1855 + $0xd0] sm:$0xff]
    %v1883 = vld [vmem:[%s1855 + $0xd8] sm:$0xff]
    %v1884 = vld [vmem:[%s1855 + $0xe0] sm:$0xff]
    %v1885 = vld [vmem:[%s1855 + $0xe8] sm:$0xff]
    %v1886 = vld [vmem:[%s1855 + $0xf0] sm:$0xff]
    %v1887 = vld [vmem:[%s1855 + $0xf8] sm:$0xff]
    %v1920 = vunpack.c.l.b16 %v1856
    %v1921 = vunpack.c.h.b16 %v1856
    %v1922 = vunpack.c.l.b16 %v1857
    %v1923 = vunpack.c.h.b16 %v1857
    %v1924 = vunpack.c.l.b16 %v1858
    %v1925 = vunpack.c.h.b16 %v1858
    %v1926 = vunpack.c.l.b16 %v1859
    %v1927 = vunpack.c.h.b16 %v1859
    %v1928 = vunpack.c.l.b16 %v1860
    %v1929 = vunpack.c.h.b16 %v1860
    %v1930 = vunpack.c.l.b16 %v1861
    %v1931 = vunpack.c.h.b16 %v1861
    %v1932 = vunpack.c.l.b16 %v1862
    %v1933 = vunpack.c.h.b16 %v1862
    %v1934 = vunpack.c.l.b16 %v1863
    %v1935 = vunpack.c.h.b16 %v1863
    %v1936 = vunpack.c.l.b16 %v1864
    %v1937 = vunpack.c.h.b16 %v1864
    %v1938 = vunpack.c.l.b16 %v1865
    %v1939 = vunpack.c.h.b16 %v1865
    %v1940 = vunpack.c.l.b16 %v1866
    %v1941 = vunpack.c.h.b16 %v1866
    %v1942 = vunpack.c.l.b16 %v1867
    %v1943 = vunpack.c.h.b16 %v1867
    %v1944 = vunpack.c.l.b16 %v1868
    %v1945 = vunpack.c.h.b16 %v1868
    %v1946 = vunpack.c.l.b16 %v1869
    %v1947 = vunpack.c.h.b16 %v1869
    %v1948 = vunpack.c.l.b16 %v1870
    %v1949 = vunpack.c.h.b16 %v1870
    %v1950 = vunpack.c.l.b16 %v1871
    %v1951 = vunpack.c.h.b16 %v1871
    %v1952 = vunpack.c.l.b16 %v1872
    %v1953 = vunpack.c.h.b16 %v1872
    %v1954 = vunpack.c.l.b16 %v1873
    %v1955 = vunpack.c.h.b16 %v1873
    %v1956 = vunpack.c.l.b16 %v1874
    %v1957 = vunpack.c.h.b16 %v1874
    %v1958 = vunpack.c.l.b16 %v1875
    %v1959 = vunpack.c.h.b16 %v1875
    %v1960 = vunpack.c.l.b16 %v1876
    %v1961 = vunpack.c.h.b16 %v1876
    %v1962 = vunpack.c.l.b16 %v1877
    %v1963 = vunpack.c.h.b16 %v1877
    %v1964 = vunpack.c.l.b16 %v1878
    %v1965 = vunpack.c.h.b16 %v1878
    %v1966 = vunpack.c.l.b16 %v1879
    %v1967 = vunpack.c.h.b16 %v1879
    %v1968 = vunpack.c.l.b16 %v1880
    %v1969 = vunpack.c.h.b16 %v1880
    %v1970 = vunpack.c.l.b16 %v1881
    %v1971 = vunpack.c.h.b16 %v1881
    %v1972 = vunpack.c.l.b16 %v1882
    %v1973 = vunpack.c.h.b16 %v1882
    %v1974 = vunpack.c.l.b16 %v1883
    %v1975 = vunpack.c.h.b16 %v1883
    %v1976 = vunpack.c.l.b16 %v1884
    %v1977 = vunpack.c.h.b16 %v1884
    %v1978 = vunpack.c.l.b16 %v1885
    %v1979 = vunpack.c.h.b16 %v1885
    %v1980 = vunpack.c.l.b16 %v1886
    %v1981 = vunpack.c.h.b16 %v1886
    %v1982 = vunpack.c.l.b16 %v1887
    %v1983 = vunpack.c.h.b16 %v1887
    %v1984 = vpack.c.b16 %v1922, %v1920
    %v1985 = vpack.c.b16 %v1923, %v1921
    %v1986 = vpack.c.b16 %v1926, %v1924
    %v1987 = vpack.c.b16 %v1927, %v1925
    %v1988 = vpack.c.b16 %v1930, %v1928
    %v1989 = vpack.c.b16 %v1931, %v1929
    %v1990 = vpack.c.b16 %v1934, %v1932
    %v1991 = vpack.c.b16 %v1935, %v1933
    %v1992 = vpack.c.b16 %v1938, %v1936
    %v1993 = vpack.c.b16 %v1939, %v1937
    %v1994 = vpack.c.b16 %v1942, %v1940
    %v1995 = vpack.c.b16 %v1943, %v1941
    %v1996 = vpack.c.b16 %v1946, %v1944
    %v1997 = vpack.c.b16 %v1947, %v1945
    %v1998 = vpack.c.b16 %v1950, %v1948
    %v1999 = vpack.c.b16 %v1951, %v1949
    %v2000 = vpack.c.b16 %v1954, %v1952
    %v2001 = vpack.c.b16 %v1955, %v1953
    %v2002 = vpack.c.b16 %v1958, %v1956
    %v2003 = vpack.c.b16 %v1959, %v1957
    %v2004 = vpack.c.b16 %v1962, %v1960
    %v2005 = vpack.c.b16 %v1963, %v1961
    %v2006 = vpack.c.b16 %v1966, %v1964
    %v2007 = vpack.c.b16 %v1967, %v1965
    %v2008 = vpack.c.b16 %v1970, %v1968
    %v2009 = vpack.c.b16 %v1971, %v1969
    %v2010 = vpack.c.b16 %v1974, %v1972
    %v2011 = vpack.c.b16 %v1975, %v1973
    %v2012 = vpack.c.b16 %v1978, %v1976
    %v2013 = vpack.c.b16 %v1979, %v1977
    %v2014 = vpack.c.b16 %v1982, %v1980
    %v2015 = vpack.c.b16 %v1983, %v1981
    %2048 = vmatprep.subr.bf16.mxu0 %v1999
    %2049 = vmatpush1.bf16.msra.mxu0 %v1998
    %2050 = vmatprep.subr.bf16.mxu0 %v1997
    %2051 = vmatpush1.bf16.msra.mxu0 %v1996
    %2052 = vmatprep.subr.bf16.mxu0 %v1995
    %2053 = vmatpush1.bf16.msra.mxu0 %v1994
    %2054 = vmatprep.subr.bf16.mxu0 %v1993
    %2055 = vmatpush1.bf16.msra.mxu0 %v1992
    %2056 = vmatprep.subr.bf16.mxu0 %v1991
    %2057 = vmatpush1.bf16.msra.mxu0 %v1990
    %2058 = vmatprep.subr.bf16.mxu0 %v1989
    %2059 = vmatpush1.bf16.msra.mxu0 %v1988
    %2060 = vmatprep.subr.bf16.mxu0 %v1987
    %2061 = vmatpush1.bf16.msra.mxu0 %v1986
    %2062 = vmatprep.subr.bf16.mxu0 %v1985
    %2063 = vmatpush1.bf16.msra.mxu0 %v1984
    %2064 = vmatprep.subr.bf16.mxu0 %v2015
    %2065 = vmatpush2.bf16.msra.mxu0 %v2014
    %2066 = vmatprep.subr.bf16.mxu0 %v2013
    %2067 = vmatpush2.bf16.msra.mxu0 %v2012
    %2068 = vmatprep.subr.bf16.mxu0 %v2011
    %2069 = vmatpush2.bf16.msra.mxu0 %v2010
    %2070 = vmatprep.subr.bf16.mxu0 %v2009
    %2071 = vmatpush2.bf16.msra.mxu0 %v2008
    %2072 = vmatprep.subr.bf16.mxu0 %v2007
    %2073 = vmatpush2.bf16.msra.mxu0 %v2006
    %2074 = vmatprep.subr.bf16.mxu0 %v2005
    %2075 = vmatpush2.bf16.msra.mxu0 %v2004
    %2076 = vmatprep.subr.bf16.mxu0 %v2003
    %2077 = vmatpush2.bf16.msra.mxu0 %v2002
    %2078 = vmatprep.subr.bf16.mxu0 %v2001
    %2079 = vmatpush2.bf16.msra.mxu0 %v2000
    %2080 = vmatprep.mubr.bf16.mxu0 %v1380
    %2081 = vmatmul.mubr.bf16.gmra.mxu0 %v1379
    %v2082 = vpop.f32.mrf.mxu0
    %v2083 = vadd.f32 0.0, %v2082
    %v2084 = vpop.f32.mrf.mxu0
    %v2085 = vadd.f32 0.0, %v2084
    %v2086 = vpop.f32.mrf.mxu0
    %v2087 = vpop.f32.mrf.mxu0
    %2088 = vdwg.mxu0
    %v2089 = vadd.f32 %v1849, %v2083
    %v2090 = vadd.f32 %v1851, %v2085
    %v2091 = vld [vmem:[#allocation14 + $0x2] sm:$0x3]
    %v2093 = vlaneseq
    %v2094 = vshrl.u32 %v2093, 7
    %v2095 = vsub.s32 0, %v2094
    %v2096 = vrot.slane %v2091, %v2095
    %v2097 = vlaneseq
    %v2098 = vshrl.u32 %v2097, 7
    %v2099 = vsub.s32 1, %v2098
    %v2100 = vrot.slane %v2091, %v2099
    %v2103 = vadd.f32 %v2089, %v2096
    %v2104 = vadd.f32 %v2090, %v2100
    %v2105 = vmax.f32 %v2103, 0.0
    %v2106 = vmax.f32 %v2104, 0.0
    %v2109 = vrot.slane %v2105, 7
    %v2110 = vrot.slane %v2106, 7
    %2113 = vst [vmem:[#allocation3] sm:$0xfe] %v2109
    %2114 = vst [vmem:[#allocation3 + $0x8] sm:$0xfe] %v2110
    %2115 = vst [vmem:[#allocation3 + $0x10] sm:$0x1] %v2109
    %2116 = vst [vmem:[#allocation3 + $0x18] sm:$0x1] %v2110
    %v2117 = vld [vmem:[#allocation3] sm:$0xff]
    %v2118 = vld [vmem:[#allocation3 + $0x8] sm:$0xff]
    %v2119 = vpack.c.bf16 %v2117, %v2117
    %v2120 = vpack.c.bf16 %v2118, %v2118
    %s2121 = scalar_lea.vmem [#allocation9], 1792
    %v2122 = vld [vmem:[%s2121] sm:$0xff]
    %v2123 = vld [vmem:[%s2121 + $0x8] sm:$0xff]
    %v2124 = vld [vmem:[%s2121 + $0x10] sm:$0xff]
    %v2125 = vld [vmem:[%s2121 + $0x18] sm:$0xff]
    %v2126 = vld [vmem:[%s2121 + $0x20] sm:$0xff]
    %v2127 = vld [vmem:[%s2121 + $0x28] sm:$0xff]
    %v2128 = vld [vmem:[%s2121 + $0x30] sm:$0xff]
    %v2129 = vld [vmem:[%s2121 + $0x38] sm:$0xff]
    %v2130 = vld [vmem:[%s2121 + $0x40] sm:$0xff]
    %v2131 = vld [vmem:[%s2121 + $0x48] sm:$0xff]
    %v2132 = vld [vmem:[%s2121 + $0x50] sm:$0xff]
    %v2133 = vld [vmem:[%s2121 + $0x58] sm:$0xff]
    %v2134 = vld [vmem:[%s2121 + $0x60] sm:$0xff]
    %v2135 = vld [vmem:[%s2121 + $0x68] sm:$0xff]
    %v2136 = vld [vmem:[%s2121 + $0x70] sm:$0xff]
    %v2137 = vld [vmem:[%s2121 + $0x78] sm:$0xff]
    %v2138 = vld [vmem:[%s2121 + $0x80] sm:$0xff]
    %v2139 = vld [vmem:[%s2121 + $0x88] sm:$0xff]
    %v2140 = vld [vmem:[%s2121 + $0x90] sm:$0xff]
    %v2141 = vld [vmem:[%s2121 + $0x98] sm:$0xff]
    %v2142 = vld [vmem:[%s2121 + $0xa0] sm:$0xff]
    %v2143 = vld [vmem:[%s2121 + $0xa8] sm:$0xff]
    %v2144 = vld [vmem:[%s2121 + $0xb0] sm:$0xff]
    %v2145 = vld [vmem:[%s2121 + $0xb8] sm:$0xff]
    %v2146 = vld [vmem:[%s2121 + $0xc0] sm:$0xff]
    %v2147 = vld [vmem:[%s2121 + $0xc8] sm:$0xff]
    %v2148 = vld [vmem:[%s2121 + $0xd0] sm:$0xff]
    %v2149 = vld [vmem:[%s2121 + $0xd8] sm:$0xff]
    %v2150 = vld [vmem:[%s2121 + $0xe0] sm:$0xff]
    %v2151 = vld [vmem:[%s2121 + $0xe8] sm:$0xff]
    %v2152 = vld [vmem:[%s2121 + $0xf0] sm:$0xff]
    %v2153 = vld [vmem:[%s2121 + $0xf8] sm:$0xff]
    %v2154 = vld [vmem:[#allocation3] sm:$0xfe]
    %v2155 = vld [vmem:[#allocation3 + $0x8] sm:$0xfe]
    %v2156 = vld [vmem:[#allocation3 + $0x10] sm:$0x1]
    %v2157 = vld [vmem:[#allocation3 + $0x18] sm:$0x1]
    %v2158 = vpack.c.bf16 %v2156, %v2154
    %v2159 = vpack.c.bf16 %v2157, %v2155
    %s2160 = scalar_lea.vmem [#allocation9], 2048
    %v2161 = vld [vmem:[%s2160] sm:$0xff]
    %v2162 = vld [vmem:[%s2160 + $0x8] sm:$0xff]
    %v2163 = vld [vmem:[%s2160 + $0x10] sm:$0xff]
    %v2164 = vld [vmem:[%s2160 + $0x18] sm:$0xff]
    %v2165 = vld [vmem:[%s2160 + $0x20] sm:$0xff]
    %v2166 = vld [vmem:[%s2160 + $0x28] sm:$0xff]
    %v2167 = vld [vmem:[%s2160 + $0x30] sm:$0xff]
    %v2168 = vld [vmem:[%s2160 + $0x38] sm:$0xff]
    %v2169 = vld [vmem:[%s2160 + $0x40] sm:$0xff]
    %v2170 = vld [vmem:[%s2160 + $0x48] sm:$0xff]
    %v2171 = vld [vmem:[%s2160 + $0x50] sm:$0xff]
    %v2172 = vld [vmem:[%s2160 + $0x58] sm:$0xff]
    %v2173 = vld [vmem:[%s2160 + $0x60] sm:$0xff]
    %v2174 = vld [vmem:[%s2160 + $0x68] sm:$0xff]
    %v2175 = vld [vmem:[%s2160 + $0x70] sm:$0xff]
    %v2176 = vld [vmem:[%s2160 + $0x78] sm:$0xff]
    %v2177 = vld [vmem:[%s2160 + $0x80] sm:$0xff]
    %v2178 = vld [vmem:[%s2160 + $0x88] sm:$0xff]
    %v2179 = vld [vmem:[%s2160 + $0x90] sm:$0xff]
    %v2180 = vld [vmem:[%s2160 + $0x98] sm:$0xff]
    %v2181 = vld [vmem:[%s2160 + $0xa0] sm:$0xff]
    %v2182 = vld [vmem:[%s2160 + $0xa8] sm:$0xff]
    %v2183 = vld [vmem:[%s2160 + $0xb0] sm:$0xff]
    %v2184 = vld [vmem:[%s2160 + $0xb8] sm:$0xff]
    %v2185 = vld [vmem:[%s2160 + $0xc0] sm:$0xff]
    %v2186 = vld [vmem:[%s2160 + $0xc8] sm:$0xff]
    %v2187 = vld [vmem:[%s2160 + $0xd0] sm:$0xff]
    %v2188 = vld [vmem:[%s2160 + $0xd8] sm:$0xff]
    %v2189 = vld [vmem:[%s2160 + $0xe0] sm:$0xff]
    %v2190 = vld [vmem:[%s2160 + $0xe8] sm:$0xff]
    %v2191 = vld [vmem:[%s2160 + $0xf0] sm:$0xff]
    %v2192 = vld [vmem:[%s2160 + $0xf8] sm:$0xff]
    %v2194 = vshrl.u32 %v2158, 16
    %v2196 = vshll.u32 %v2158, 16
    %v2198 = vrot.slane %v2196, 1
    %v2199 = vor.u32 %v2194, %v2198
    %v2201 = vshrl.u32 %v2159, 16
    %v2203 = vshll.u32 %v2159, 16
    %v2205 = vrot.slane %v2203, 1
    %v2206 = vor.u32 %v2201, %v2205
    %v2241 = vunpack.c.l.b16 %v2161
    %v2242 = vunpack.c.h.b16 %v2161
    %v2243 = vunpack.c.l.b16 %v2162
    %v2244 = vunpack.c.h.b16 %v2162
    %v2245 = vunpack.c.l.b16 %v2163
    %v2246 = vunpack.c.h.b16 %v2163
    %v2247 = vunpack.c.l.b16 %v2164
    %v2248 = vunpack.c.h.b16 %v2164
    %v2249 = vunpack.c.l.b16 %v2165
    %v2250 = vunpack.c.h.b16 %v2165
    %v2251 = vunpack.c.l.b16 %v2166
    %v2252 = vunpack.c.h.b16 %v2166
    %v2253 = vunpack.c.l.b16 %v2167
    %v2254 = vunpack.c.h.b16 %v2167
    %v2255 = vunpack.c.l.b16 %v2168
    %v2256 = vunpack.c.h.b16 %v2168
    %v2257 = vunpack.c.l.b16 %v2169
    %v2258 = vunpack.c.h.b16 %v2169
    %v2259 = vunpack.c.l.b16 %v2170
    %v2260 = vunpack.c.h.b16 %v2170
    %v2261 = vunpack.c.l.b16 %v2171
    %v2262 = vunpack.c.h.b16 %v2171
    %v2263 = vunpack.c.l.b16 %v2172
    %v2264 = vunpack.c.h.b16 %v2172
    %v2265 = vunpack.c.l.b16 %v2173
    %v2266 = vunpack.c.h.b16 %v2173
    %v2267 = vunpack.c.l.b16 %v2174
    %v2268 = vunpack.c.h.b16 %v2174
    %v2269 = vunpack.c.l.b16 %v2175
    %v2270 = vunpack.c.h.b16 %v2175
    %v2271 = vunpack.c.l.b16 %v2176
    %v2272 = vunpack.c.h.b16 %v2176
    %v2273 = vunpack.c.l.b16 %v2177
    %v2274 = vunpack.c.h.b16 %v2177
    %v2275 = vunpack.c.l.b16 %v2178
    %v2276 = vunpack.c.h.b16 %v2178
    %v2277 = vunpack.c.l.b16 %v2179
    %v2278 = vunpack.c.h.b16 %v2179
    %v2279 = vunpack.c.l.b16 %v2180
    %v2280 = vunpack.c.h.b16 %v2180
    %v2281 = vunpack.c.l.b16 %v2181
    %v2282 = vunpack.c.h.b16 %v2181
    %v2283 = vunpack.c.l.b16 %v2182
    %v2284 = vunpack.c.h.b16 %v2182
    %v2285 = vunpack.c.l.b16 %v2183
    %v2286 = vunpack.c.h.b16 %v2183
    %v2287 = vunpack.c.l.b16 %v2184
    %v2288 = vunpack.c.h.b16 %v2184
    %v2289 = vunpack.c.l.b16 %v2185
    %v2290 = vunpack.c.h.b16 %v2185
    %v2291 = vunpack.c.l.b16 %v2186
    %v2292 = vunpack.c.h.b16 %v2186
    %v2293 = vunpack.c.l.b16 %v2187
    %v2294 = vunpack.c.h.b16 %v2187
    %v2295 = vunpack.c.l.b16 %v2188
    %v2296 = vunpack.c.h.b16 %v2188
    %v2297 = vunpack.c.l.b16 %v2189
    %v2298 = vunpack.c.h.b16 %v2189
    %v2299 = vunpack.c.l.b16 %v2190
    %v2300 = vunpack.c.h.b16 %v2190
    %v2301 = vunpack.c.l.b16 %v2191
    %v2302 = vunpack.c.h.b16 %v2191
    %v2303 = vunpack.c.l.b16 %v2192
    %v2304 = vunpack.c.h.b16 %v2192
    %v2305 = vpack.c.b16 %v2243, %v2241
    %v2306 = vpack.c.b16 %v2244, %v2242
    %v2307 = vpack.c.b16 %v2247, %v2245
    %v2308 = vpack.c.b16 %v2248, %v2246
    %v2309 = vpack.c.b16 %v2251, %v2249
    %v2310 = vpack.c.b16 %v2252, %v2250
    %v2311 = vpack.c.b16 %v2255, %v2253
    %v2312 = vpack.c.b16 %v2256, %v2254
    %v2313 = vpack.c.b16 %v2259, %v2257
    %v2314 = vpack.c.b16 %v2260, %v2258
    %v2315 = vpack.c.b16 %v2263, %v2261
    %v2316 = vpack.c.b16 %v2264, %v2262
    %v2317 = vpack.c.b16 %v2267, %v2265
    %v2318 = vpack.c.b16 %v2268, %v2266
    %v2319 = vpack.c.b16 %v2271, %v2269
    %v2320 = vpack.c.b16 %v2272, %v2270
    %v2321 = vpack.c.b16 %v2275, %v2273
    %v2322 = vpack.c.b16 %v2276, %v2274
    %v2323 = vpack.c.b16 %v2279, %v2277
    %v2324 = vpack.c.b16 %v2280, %v2278
    %v2325 = vpack.c.b16 %v2283, %v2281
    %v2326 = vpack.c.b16 %v2284, %v2282
    %v2327 = vpack.c.b16 %v2287, %v2285
    %v2328 = vpack.c.b16 %v2288, %v2286
    %v2329 = vpack.c.b16 %v2291, %v2289
    %v2330 = vpack.c.b16 %v2292, %v2290
    %v2331 = vpack.c.b16 %v2295, %v2293
    %v2332 = vpack.c.b16 %v2296, %v2294
    %v2333 = vpack.c.b16 %v2299, %v2297
    %v2334 = vpack.c.b16 %v2300, %v2298
    %v2335 = vpack.c.b16 %v2303, %v2301
    %v2336 = vpack.c.b16 %v2304, %v2302
    %2369 = vmatprep.subr.bf16.mxu0 %v2320
    %2370 = vmatpush1.bf16.msra.mxu0 %v2319
    %2371 = vmatprep.subr.bf16.mxu0 %v2318
    %2372 = vmatpush1.bf16.msra.mxu0 %v2317
    %2373 = vmatprep.subr.bf16.mxu0 %v2316
    %2374 = vmatpush1.bf16.msra.mxu0 %v2315
    %2375 = vmatprep.subr.bf16.mxu0 %v2314
    %2376 = vmatpush1.bf16.msra.mxu0 %v2313
    %2377 = vmatprep.subr.bf16.mxu0 %v2312
    %2378 = vmatpush1.bf16.msra.mxu0 %v2311
    %2379 = vmatprep.subr.bf16.mxu0 %v2310
    %2380 = vmatpush1.bf16.msra.mxu0 %v2309
    %2381 = vmatprep.subr.bf16.mxu0 %v2308
    %2382 = vmatpush1.bf16.msra.mxu0 %v2307
    %2383 = vmatprep.subr.bf16.mxu0 %v2306
    %2384 = vmatpush1.bf16.msra.mxu0 %v2305
    %2385 = vmatprep.subr.bf16.mxu0 %v2336
    %2386 = vmatpush2.bf16.msra.mxu0 %v2335
    %2387 = vmatprep.subr.bf16.mxu0 %v2334
    %2388 = vmatpush2.bf16.msra.mxu0 %v2333
    %2389 = vmatprep.subr.bf16.mxu0 %v2332
    %2390 = vmatpush2.bf16.msra.mxu0 %v2331
    %2391 = vmatprep.subr.bf16.mxu0 %v2330
    %2392 = vmatpush2.bf16.msra.mxu0 %v2329
    %2393 = vmatprep.subr.bf16.mxu0 %v2328
    %2394 = vmatpush2.bf16.msra.mxu0 %v2327
    %2395 = vmatprep.subr.bf16.mxu0 %v2326
    %2396 = vmatpush2.bf16.msra.mxu0 %v2325
    %2397 = vmatprep.subr.bf16.mxu0 %v2324
    %2398 = vmatpush2.bf16.msra.mxu0 %v2323
    %2399 = vmatprep.subr.bf16.mxu0 %v2322
    %2400 = vmatpush2.bf16.msra.mxu0 %v2321
    %2401 = vmatprep.mubr.bf16.mxu0 %v2206
    %2402 = vmatmul.mubr.bf16.gmra.mxu0 %v2199
    %v2403 = vpop.f32.mrf.mxu0
    %v2404 = vadd.f32 0.0, %v2403
    %v2405 = vpop.f32.mrf.mxu0
    %v2406 = vadd.f32 0.0, %v2405
    %v2407 = vpop.f32.mrf.mxu0
    %v2408 = vpop.f32.mrf.mxu0
    %2409 = vdwg.mxu0
    %v2442 = vunpack.c.l.b16 %v2122
    %v2443 = vunpack.c.h.b16 %v2122
    %v2444 = vunpack.c.l.b16 %v2123
    %v2445 = vunpack.c.h.b16 %v2123
    %v2446 = vunpack.c.l.b16 %v2124
    %v2447 = vunpack.c.h.b16 %v2124
    %v2448 = vunpack.c.l.b16 %v2125
    %v2449 = vunpack.c.h.b16 %v2125
    %v2450 = vunpack.c.l.b16 %v2126
    %v2451 = vunpack.c.h.b16 %v2126
    %v2452 = vunpack.c.l.b16 %v2127
    %v2453 = vunpack.c.h.b16 %v2127
    %v2454 = vunpack.c.l.b16 %v2128
    %v2455 = vunpack.c.h.b16 %v2128
    %v2456 = vunpack.c.l.b16 %v2129
    %v2457 = vunpack.c.h.b16 %v2129
    %v2458 = vunpack.c.l.b16 %v2130
    %v2459 = vunpack.c.h.b16 %v2130
    %v2460 = vunpack.c.l.b16 %v2131
    %v2461 = vunpack.c.h.b16 %v2131
    %v2462 = vunpack.c.l.b16 %v2132
    %v2463 = vunpack.c.h.b16 %v2132
    %v2464 = vunpack.c.l.b16 %v2133
    %v2465 = vunpack.c.h.b16 %v2133
    %v2466 = vunpack.c.l.b16 %v2134
    %v2467 = vunpack.c.h.b16 %v2134
    %v2468 = vunpack.c.l.b16 %v2135
    %v2469 = vunpack.c.h.b16 %v2135
    %v2470 = vunpack.c.l.b16 %v2136
    %v2471 = vunpack.c.h.b16 %v2136
    %v2472 = vunpack.c.l.b16 %v2137
    %v2473 = vunpack.c.h.b16 %v2137
    %v2474 = vunpack.c.l.b16 %v2138
    %v2475 = vunpack.c.h.b16 %v2138
    %v2476 = vunpack.c.l.b16 %v2139
    %v2477 = vunpack.c.h.b16 %v2139
    %v2478 = vunpack.c.l.b16 %v2140
    %v2479 = vunpack.c.h.b16 %v2140
    %v2480 = vunpack.c.l.b16 %v2141
    %v2481 = vunpack.c.h.b16 %v2141
    %v2482 = vunpack.c.l.b16 %v2142
    %v2483 = vunpack.c.h.b16 %v2142
    %v2484 = vunpack.c.l.b16 %v2143
    %v2485 = vunpack.c.h.b16 %v2143
    %v2486 = vunpack.c.l.b16 %v2144
    %v2487 = vunpack.c.h.b16 %v2144
    %v2488 = vunpack.c.l.b16 %v2145
    %v2489 = vunpack.c.h.b16 %v2145
    %v2490 = vunpack.c.l.b16 %v2146
    %v2491 = vunpack.c.h.b16 %v2146
    %v2492 = vunpack.c.l.b16 %v2147
    %v2493 = vunpack.c.h.b16 %v2147
    %v2494 = vunpack.c.l.b16 %v2148
    %v2495 = vunpack.c.h.b16 %v2148
    %v2496 = vunpack.c.l.b16 %v2149
    %v2497 = vunpack.c.h.b16 %v2149
    %v2498 = vunpack.c.l.b16 %v2150
    %v2499 = vunpack.c.h.b16 %v2150
    %v2500 = vunpack.c.l.b16 %v2151
    %v2501 = vunpack.c.h.b16 %v2151
    %v2502 = vunpack.c.l.b16 %v2152
    %v2503 = vunpack.c.h.b16 %v2152
    %v2504 = vunpack.c.l.b16 %v2153
    %v2505 = vunpack.c.h.b16 %v2153
    %v2506 = vpack.c.b16 %v2444, %v2442
    %v2507 = vpack.c.b16 %v2445, %v2443
    %v2508 = vpack.c.b16 %v2448, %v2446
    %v2509 = vpack.c.b16 %v2449, %v2447
    %v2510 = vpack.c.b16 %v2452, %v2450
    %v2511 = vpack.c.b16 %v2453, %v2451
    %v2512 = vpack.c.b16 %v2456, %v2454
    %v2513 = vpack.c.b16 %v2457, %v2455
    %v2514 = vpack.c.b16 %v2460, %v2458
    %v2515 = vpack.c.b16 %v2461, %v2459
    %v2516 = vpack.c.b16 %v2464, %v2462
    %v2517 = vpack.c.b16 %v2465, %v2463
    %v2518 = vpack.c.b16 %v2468, %v2466
    %v2519 = vpack.c.b16 %v2469, %v2467
    %v2520 = vpack.c.b16 %v2472, %v2470
    %v2521 = vpack.c.b16 %v2473, %v2471
    %v2522 = vpack.c.b16 %v2476, %v2474
    %v2523 = vpack.c.b16 %v2477, %v2475
    %v2524 = vpack.c.b16 %v2480, %v2478
    %v2525 = vpack.c.b16 %v2481, %v2479
    %v2526 = vpack.c.b16 %v2484, %v2482
    %v2527 = vpack.c.b16 %v2485, %v2483
    %v2528 = vpack.c.b16 %v2488, %v2486
    %v2529 = vpack.c.b16 %v2489, %v2487
    %v2530 = vpack.c.b16 %v2492, %v2490
    %v2531 = vpack.c.b16 %v2493, %v2491
    %v2532 = vpack.c.b16 %v2496, %v2494
    %v2533 = vpack.c.b16 %v2497, %v2495
    %v2534 = vpack.c.b16 %v2500, %v2498
    %v2535 = vpack.c.b16 %v2501, %v2499
    %v2536 = vpack.c.b16 %v2504, %v2502
    %v2537 = vpack.c.b16 %v2505, %v2503
    %2570 = vmatprep.subr.bf16.mxu0 %v2521
    %2571 = vmatpush1.bf16.msra.mxu0 %v2520
    %2572 = vmatprep.subr.bf16.mxu0 %v2519
    %2573 = vmatpush1.bf16.msra.mxu0 %v2518
    %2574 = vmatprep.subr.bf16.mxu0 %v2517
    %2575 = vmatpush1.bf16.msra.mxu0 %v2516
    %2576 = vmatprep.subr.bf16.mxu0 %v2515
    %2577 = vmatpush1.bf16.msra.mxu0 %v2514
    %2578 = vmatprep.subr.bf16.mxu0 %v2513
    %2579 = vmatpush1.bf16.msra.mxu0 %v2512
    %2580 = vmatprep.subr.bf16.mxu0 %v2511
    %2581 = vmatpush1.bf16.msra.mxu0 %v2510
    %2582 = vmatprep.subr.bf16.mxu0 %v2509
    %2583 = vmatpush1.bf16.msra.mxu0 %v2508
    %2584 = vmatprep.subr.bf16.mxu0 %v2507
    %2585 = vmatpush1.bf16.msra.mxu0 %v2506
    %2586 = vmatprep.subr.bf16.mxu0 %v2537
    %2587 = vmatpush2.bf16.msra.mxu0 %v2536
    %2588 = vmatprep.subr.bf16.mxu0 %v2535
    %2589 = vmatpush2.bf16.msra.mxu0 %v2534
    %2590 = vmatprep.subr.bf16.mxu0 %v2533
    %2591 = vmatpush2.bf16.msra.mxu0 %v2532
    %2592 = vmatprep.subr.bf16.mxu0 %v2531
    %2593 = vmatpush2.bf16.msra.mxu0 %v2530
    %2594 = vmatprep.subr.bf16.mxu0 %v2529
    %2595 = vmatpush2.bf16.msra.mxu0 %v2528
    %2596 = vmatprep.subr.bf16.mxu0 %v2527
    %2597 = vmatpush2.bf16.msra.mxu0 %v2526
    %2598 = vmatprep.subr.bf16.mxu0 %v2525
    %2599 = vmatpush2.bf16.msra.mxu0 %v2524
    %2600 = vmatprep.subr.bf16.mxu0 %v2523
    %2601 = vmatpush2.bf16.msra.mxu0 %v2522
    %2602 = vmatprep.mubr.bf16.mxu0 %v2120
    %2603 = vmatmul.mubr.bf16.gmra.mxu0 %v2119
    %v2604 = vpop.f32.mrf.mxu0
    %v2605 = vadd.f32 %v2404, %v2604
    %v2606 = vpop.f32.mrf.mxu0
    %v2607 = vadd.f32 %v2406, %v2606
    %v2608 = vpop.f32.mrf.mxu0
    %v2609 = vpop.f32.mrf.mxu0
    %2610 = vdwg.mxu0
    %v2611 = vld [vmem:[#allocation3] sm:$0xfc]
    %v2612 = vld [vmem:[#allocation3 + $0x8] sm:$0xfc]
    %v2613 = vld [vmem:[#allocation3 + $0x10] sm:$0x3]
    %v2614 = vld [vmem:[#allocation3 + $0x18] sm:$0x3]
    %v2615 = vpack.c.bf16 %v2613, %v2611
    %v2616 = vpack.c.bf16 %v2614, %v2612
    %s2617 = scalar_lea.vmem [#allocation9], 2304
    %v2618 = vld [vmem:[%s2617] sm:$0xff]
    %v2619 = vld [vmem:[%s2617 + $0x8] sm:$0xff]
    %v2620 = vld [vmem:[%s2617 + $0x10] sm:$0xff]
    %v2621 = vld [vmem:[%s2617 + $0x18] sm:$0xff]
    %v2622 = vld [vmem:[%s2617 + $0x20] sm:$0xff]
    %v2623 = vld [vmem:[%s2617 + $0x28] sm:$0xff]
    %v2624 = vld [vmem:[%s2617 + $0x30] sm:$0xff]
    %v2625 = vld [vmem:[%s2617 + $0x38] sm:$0xff]
    %v2626 = vld [vmem:[%s2617 + $0x40] sm:$0xff]
    %v2627 = vld [vmem:[%s2617 + $0x48] sm:$0xff]
    %v2628 = vld [vmem:[%s2617 + $0x50] sm:$0xff]
    %v2629 = vld [vmem:[%s2617 + $0x58] sm:$0xff]
    %v2630 = vld [vmem:[%s2617 + $0x60] sm:$0xff]
    %v2631 = vld [vmem:[%s2617 + $0x68] sm:$0xff]
    %v2632 = vld [vmem:[%s2617 + $0x70] sm:$0xff]
    %v2633 = vld [vmem:[%s2617 + $0x78] sm:$0xff]
    %v2634 = vld [vmem:[%s2617 + $0x80] sm:$0xff]
    %v2635 = vld [vmem:[%s2617 + $0x88] sm:$0xff]
    %v2636 = vld [vmem:[%s2617 + $0x90] sm:$0xff]
    %v2637 = vld [vmem:[%s2617 + $0x98] sm:$0xff]
    %v2638 = vld [vmem:[%s2617 + $0xa0] sm:$0xff]
    %v2639 = vld [vmem:[%s2617 + $0xa8] sm:$0xff]
    %v2640 = vld [vmem:[%s2617 + $0xb0] sm:$0xff]
    %v2641 = vld [vmem:[%s2617 + $0xb8] sm:$0xff]
    %v2642 = vld [vmem:[%s2617 + $0xc0] sm:$0xff]
    %v2643 = vld [vmem:[%s2617 + $0xc8] sm:$0xff]
    %v2644 = vld [vmem:[%s2617 + $0xd0] sm:$0xff]
    %v2645 = vld [vmem:[%s2617 + $0xd8] sm:$0xff]
    %v2646 = vld [vmem:[%s2617 + $0xe0] sm:$0xff]
    %v2647 = vld [vmem:[%s2617 + $0xe8] sm:$0xff]
    %v2648 = vld [vmem:[%s2617 + $0xf0] sm:$0xff]
    %v2649 = vld [vmem:[%s2617 + $0xf8] sm:$0xff]
    %v2652 = vrot.slane %v2615, 1
    %v2653 = vrot.slane %v2616, 1
    %v2688 = vunpack.c.l.b16 %v2618
    %v2689 = vunpack.c.h.b16 %v2618
    %v2690 = vunpack.c.l.b16 %v2619
    %v2691 = vunpack.c.h.b16 %v2619
    %v2692 = vunpack.c.l.b16 %v2620
    %v2693 = vunpack.c.h.b16 %v2620
    %v2694 = vunpack.c.l.b16 %v2621
    %v2695 = vunpack.c.h.b16 %v2621
    %v2696 = vunpack.c.l.b16 %v2622
    %v2697 = vunpack.c.h.b16 %v2622
    %v2698 = vunpack.c.l.b16 %v2623
    %v2699 = vunpack.c.h.b16 %v2623
    %v2700 = vunpack.c.l.b16 %v2624
    %v2701 = vunpack.c.h.b16 %v2624
    %v2702 = vunpack.c.l.b16 %v2625
    %v2703 = vunpack.c.h.b16 %v2625
    %v2704 = vunpack.c.l.b16 %v2626
    %v2705 = vunpack.c.h.b16 %v2626
    %v2706 = vunpack.c.l.b16 %v2627
    %v2707 = vunpack.c.h.b16 %v2627
    %v2708 = vunpack.c.l.b16 %v2628
    %v2709 = vunpack.c.h.b16 %v2628
    %v2710 = vunpack.c.l.b16 %v2629
    %v2711 = vunpack.c.h.b16 %v2629
    %v2712 = vunpack.c.l.b16 %v2630
    %v2713 = vunpack.c.h.b16 %v2630
    %v2714 = vunpack.c.l.b16 %v2631
    %v2715 = vunpack.c.h.b16 %v2631
    %v2716 = vunpack.c.l.b16 %v2632
    %v2717 = vunpack.c.h.b16 %v2632
    %v2718 = vunpack.c.l.b16 %v2633
    %v2719 = vunpack.c.h.b16 %v2633
    %v2720 = vunpack.c.l.b16 %v2634
    %v2721 = vunpack.c.h.b16 %v2634
    %v2722 = vunpack.c.l.b16 %v2635
    %v2723 = vunpack.c.h.b16 %v2635
    %v2724 = vunpack.c.l.b16 %v2636
    %v2725 = vunpack.c.h.b16 %v2636
    %v2726 = vunpack.c.l.b16 %v2637
    %v2727 = vunpack.c.h.b16 %v2637
    %v2728 = vunpack.c.l.b16 %v2638
    %v2729 = vunpack.c.h.b16 %v2638
    %v2730 = vunpack.c.l.b16 %v2639
    %v2731 = vunpack.c.h.b16 %v2639
    %v2732 = vunpack.c.l.b16 %v2640
    %v2733 = vunpack.c.h.b16 %v2640
    %v2734 = vunpack.c.l.b16 %v2641
    %v2735 = vunpack.c.h.b16 %v2641
    %v2736 = vunpack.c.l.b16 %v2642
    %v2737 = vunpack.c.h.b16 %v2642
    %v2738 = vunpack.c.l.b16 %v2643
    %v2739 = vunpack.c.h.b16 %v2643
    %v2740 = vunpack.c.l.b16 %v2644
    %v2741 = vunpack.c.h.b16 %v2644
    %v2742 = vunpack.c.l.b16 %v2645
    %v2743 = vunpack.c.h.b16 %v2645
    %v2744 = vunpack.c.l.b16 %v2646
    %v2745 = vunpack.c.h.b16 %v2646
    %v2746 = vunpack.c.l.b16 %v2647
    %v2747 = vunpack.c.h.b16 %v2647
    %v2748 = vunpack.c.l.b16 %v2648
    %v2749 = vunpack.c.h.b16 %v2648
    %v2750 = vunpack.c.l.b16 %v2649
    %v2751 = vunpack.c.h.b16 %v2649
    %v2752 = vpack.c.b16 %v2690, %v2688
    %v2753 = vpack.c.b16 %v2691, %v2689
    %v2754 = vpack.c.b16 %v2694, %v2692
    %v2755 = vpack.c.b16 %v2695, %v2693
    %v2756 = vpack.c.b16 %v2698, %v2696
    %v2757 = vpack.c.b16 %v2699, %v2697
    %v2758 = vpack.c.b16 %v2702, %v2700
    %v2759 = vpack.c.b16 %v2703, %v2701
    %v2760 = vpack.c.b16 %v2706, %v2704
    %v2761 = vpack.c.b16 %v2707, %v2705
    %v2762 = vpack.c.b16 %v2710, %v2708
    %v2763 = vpack.c.b16 %v2711, %v2709
    %v2764 = vpack.c.b16 %v2714, %v2712
    %v2765 = vpack.c.b16 %v2715, %v2713
    %v2766 = vpack.c.b16 %v2718, %v2716
    %v2767 = vpack.c.b16 %v2719, %v2717
    %v2768 = vpack.c.b16 %v2722, %v2720
    %v2769 = vpack.c.b16 %v2723, %v2721
    %v2770 = vpack.c.b16 %v2726, %v2724
    %v2771 = vpack.c.b16 %v2727, %v2725
    %v2772 = vpack.c.b16 %v2730, %v2728
    %v2773 = vpack.c.b16 %v2731, %v2729
    %v2774 = vpack.c.b16 %v2734, %v2732
    %v2775 = vpack.c.b16 %v2735, %v2733
    %v2776 = vpack.c.b16 %v2738, %v2736
    %v2777 = vpack.c.b16 %v2739, %v2737
    %v2778 = vpack.c.b16 %v2742, %v2740
    %v2779 = vpack.c.b16 %v2743, %v2741
    %v2780 = vpack.c.b16 %v2746, %v2744
    %v2781 = vpack.c.b16 %v2747, %v2745
    %v2782 = vpack.c.b16 %v2750, %v2748
    %v2783 = vpack.c.b16 %v2751, %v2749
    %2816 = vmatprep.subr.bf16.mxu0 %v2767
    %2817 = vmatpush1.bf16.msra.mxu0 %v2766
    %2818 = vmatprep.subr.bf16.mxu0 %v2765
    %2819 = vmatpush1.bf16.msra.mxu0 %v2764
    %2820 = vmatprep.subr.bf16.mxu0 %v2763
    %2821 = vmatpush1.bf16.msra.mxu0 %v2762
    %2822 = vmatprep.subr.bf16.mxu0 %v2761
    %2823 = vmatpush1.bf16.msra.mxu0 %v2760
    %2824 = vmatprep.subr.bf16.mxu0 %v2759
    %2825 = vmatpush1.bf16.msra.mxu0 %v2758
    %2826 = vmatprep.subr.bf16.mxu0 %v2757
    %2827 = vmatpush1.bf16.msra.mxu0 %v2756
    %2828 = vmatprep.subr.bf16.mxu0 %v2755
    %2829 = vmatpush1.bf16.msra.mxu0 %v2754
    %2830 = vmatprep.subr.bf16.mxu0 %v2753
    %2831 = vmatpush1.bf16.msra.mxu0 %v2752
    %2832 = vmatprep.subr.bf16.mxu0 %v2783
    %2833 = vmatpush2.bf16.msra.mxu0 %v2782
    %2834 = vmatprep.subr.bf16.mxu0 %v2781
    %2835 = vmatpush2.bf16.msra.mxu0 %v2780
    %2836 = vmatprep.subr.bf16.mxu0 %v2779
    %2837 = vmatpush2.bf16.msra.mxu0 %v2778
    %2838 = vmatprep.subr.bf16.mxu0 %v2777
    %2839 = vmatpush2.bf16.msra.mxu0 %v2776
    %2840 = vmatprep.subr.bf16.mxu0 %v2775
    %2841 = vmatpush2.bf16.msra.mxu0 %v2774
    %2842 = vmatprep.subr.bf16.mxu0 %v2773
    %2843 = vmatpush2.bf16.msra.mxu0 %v2772
    %2844 = vmatprep.subr.bf16.mxu0 %v2771
    %2845 = vmatpush2.bf16.msra.mxu0 %v2770
    %2846 = vmatprep.subr.bf16.mxu0 %v2769
    %2847 = vmatpush2.bf16.msra.mxu0 %v2768
    %2848 = vmatprep.mubr.bf16.mxu0 %v2653
    %2849 = vmatmul.mubr.bf16.gmra.mxu0 %v2652
    %v2850 = vpop.f32.mrf.mxu0
    %v2851 = vadd.f32 0.0, %v2850
    %v2852 = vpop.f32.mrf.mxu0
    %v2853 = vadd.f32 0.0, %v2852
    %v2854 = vpop.f32.mrf.mxu0
    %v2855 = vpop.f32.mrf.mxu0
    %2856 = vdwg.mxu0
    %v2857 = vadd.f32 %v2605, %v2851
    %v2858 = vadd.f32 %v2607, %v2853
    %v2859 = vld [vmem:[#allocation14 + $0x6] sm:$0x3]
    %v2861 = vlaneseq
    %v2862 = vshrl.u32 %v2861, 7
    %v2863 = vsub.s32 0, %v2862
    %v2864 = vrot.slane %v2859, %v2863
    %v2865 = vlaneseq
    %v2866 = vshrl.u32 %v2865, 7
    %v2867 = vsub.s32 1, %v2866
    %v2868 = vrot.slane %v2859, %v2867
    %v2871 = vadd.f32 %v2857, %v2864
    %v2872 = vadd.f32 %v2858, %v2868
    %v2873 = vadd.f32 %v2871, %v1302
    %v2874 = vadd.f32 %v2872, %v1304
    %v2875 = vmax.f32 %v2873, 0.0
    %v2876 = vmax.f32 %v2874, 0.0
    %v2879 = vrot.slane %v2875, 7
    %v2880 = vrot.slane %v2876, 7
    %2883 = vst [vmem:[#allocation4] sm:$0xfe] %v2879
    %2884 = vst [vmem:[#allocation4 + $0x8] sm:$0xfe] %v2880
    %2885 = vst [vmem:[#allocation4 + $0x10] sm:$0x1] %v2879
    %2886 = vst [vmem:[#allocation4 + $0x18] sm:$0x1] %v2880
    %v2887 = vld [vmem:[#allocation4] sm:$0xff]
    %v2888 = vld [vmem:[#allocation4 + $0x8] sm:$0xff]
    %v2889 = vpack.c.bf16 %v2887, %v2887
    %v2890 = vpack.c.bf16 %v2888, %v2888
    %s2891 = scalar_lea.vmem [#allocation9], 2560
    %v2892 = vld [vmem:[%s2891] sm:$0xff]
    %v2893 = vld [vmem:[%s2891 + $0x8] sm:$0xff]
    %v2894 = vld [vmem:[%s2891 + $0x10] sm:$0xff]
    %v2895 = vld [vmem:[%s2891 + $0x18] sm:$0xff]
    %v2896 = vld [vmem:[%s2891 + $0x20] sm:$0xff]
    %v2897 = vld [vmem:[%s2891 + $0x28] sm:$0xff]
    %v2898 = vld [vmem:[%s2891 + $0x30] sm:$0xff]
    %v2899 = vld [vmem:[%s2891 + $0x38] sm:$0xff]
    %v2900 = vld [vmem:[%s2891 + $0x40] sm:$0xff]
    %v2901 = vld [vmem:[%s2891 + $0x48] sm:$0xff]
    %v2902 = vld [vmem:[%s2891 + $0x50] sm:$0xff]
    %v2903 = vld [vmem:[%s2891 + $0x58] sm:$0xff]
    %v2904 = vld [vmem:[%s2891 + $0x60] sm:$0xff]
    %v2905 = vld [vmem:[%s2891 + $0x68] sm:$0xff]
    %v2906 = vld [vmem:[%s2891 + $0x70] sm:$0xff]
    %v2907 = vld [vmem:[%s2891 + $0x78] sm:$0xff]
    %v2908 = vld [vmem:[%s2891 + $0x80] sm:$0xff]
    %v2909 = vld [vmem:[%s2891 + $0x88] sm:$0xff]
    %v2910 = vld [vmem:[%s2891 + $0x90] sm:$0xff]
    %v2911 = vld [vmem:[%s2891 + $0x98] sm:$0xff]
    %v2912 = vld [vmem:[%s2891 + $0xa0] sm:$0xff]
    %v2913 = vld [vmem:[%s2891 + $0xa8] sm:$0xff]
    %v2914 = vld [vmem:[%s2891 + $0xb0] sm:$0xff]
    %v2915 = vld [vmem:[%s2891 + $0xb8] sm:$0xff]
    %v2916 = vld [vmem:[%s2891 + $0xc0] sm:$0xff]
    %v2917 = vld [vmem:[%s2891 + $0xc8] sm:$0xff]
    %v2918 = vld [vmem:[%s2891 + $0xd0] sm:$0xff]
    %v2919 = vld [vmem:[%s2891 + $0xd8] sm:$0xff]
    %v2920 = vld [vmem:[%s2891 + $0xe0] sm:$0xff]
    %v2921 = vld [vmem:[%s2891 + $0xe8] sm:$0xff]
    %v2922 = vld [vmem:[%s2891 + $0xf0] sm:$0xff]
    %v2923 = vld [vmem:[%s2891 + $0xf8] sm:$0xff]
    %v2924 = vld [vmem:[#allocation4] sm:$0xfe]
    %v2925 = vld [vmem:[#allocation4 + $0x8] sm:$0xfe]
    %v2926 = vld [vmem:[#allocation4 + $0x10] sm:$0x1]
    %v2927 = vld [vmem:[#allocation4 + $0x18] sm:$0x1]
    %v2928 = vpack.c.bf16 %v2926, %v2924
    %v2929 = vpack.c.bf16 %v2927, %v2925
    %s2930 = scalar_lea.vmem [#allocation9], 2816
    %v2931 = vld [vmem:[%s2930] sm:$0xff]
    %v2932 = vld [vmem:[%s2930 + $0x8] sm:$0xff]
    %v2933 = vld [vmem:[%s2930 + $0x10] sm:$0xff]
    %v2934 = vld [vmem:[%s2930 + $0x18] sm:$0xff]
    %v2935 = vld [vmem:[%s2930 + $0x20] sm:$0xff]
    %v2936 = vld [vmem:[%s2930 + $0x28] sm:$0xff]
    %v2937 = vld [vmem:[%s2930 + $0x30] sm:$0xff]
    %v2938 = vld [vmem:[%s2930 + $0x38] sm:$0xff]
    %v2939 = vld [vmem:[%s2930 + $0x40] sm:$0xff]
    %v2940 = vld [vmem:[%s2930 + $0x48] sm:$0xff]
    %v2941 = vld [vmem:[%s2930 + $0x50] sm:$0xff]
    %v2942 = vld [vmem:[%s2930 + $0x58] sm:$0xff]
    %v2943 = vld [vmem:[%s2930 + $0x60] sm:$0xff]
    %v2944 = vld [vmem:[%s2930 + $0x68] sm:$0xff]
    %v2945 = vld [vmem:[%s2930 + $0x70] sm:$0xff]
    %v2946 = vld [vmem:[%s2930 + $0x78] sm:$0xff]
    %v2947 = vld [vmem:[%s2930 + $0x80] sm:$0xff]
    %v2948 = vld [vmem:[%s2930 + $0x88] sm:$0xff]
    %v2949 = vld [vmem:[%s2930 + $0x90] sm:$0xff]
    %v2950 = vld [vmem:[%s2930 + $0x98] sm:$0xff]
    %v2951 = vld [vmem:[%s2930 + $0xa0] sm:$0xff]
    %v2952 = vld [vmem:[%s2930 + $0xa8] sm:$0xff]
    %v2953 = vld [vmem:[%s2930 + $0xb0] sm:$0xff]
    %v2954 = vld [vmem:[%s2930 + $0xb8] sm:$0xff]
    %v2955 = vld [vmem:[%s2930 + $0xc0] sm:$0xff]
    %v2956 = vld [vmem:[%s2930 + $0xc8] sm:$0xff]
    %v2957 = vld [vmem:[%s2930 + $0xd0] sm:$0xff]
    %v2958 = vld [vmem:[%s2930 + $0xd8] sm:$0xff]
    %v2959 = vld [vmem:[%s2930 + $0xe0] sm:$0xff]
    %v2960 = vld [vmem:[%s2930 + $0xe8] sm:$0xff]
    %v2961 = vld [vmem:[%s2930 + $0xf0] sm:$0xff]
    %v2962 = vld [vmem:[%s2930 + $0xf8] sm:$0xff]
    %v2964 = vshrl.u32 %v2928, 16
    %v2966 = vshll.u32 %v2928, 16
    %v2968 = vrot.slane %v2966, 1
    %v2969 = vor.u32 %v2964, %v2968
    %v2971 = vshrl.u32 %v2929, 16
    %v2973 = vshll.u32 %v2929, 16
    %v2975 = vrot.slane %v2973, 1
    %v2976 = vor.u32 %v2971, %v2975
    %v3011 = vunpack.c.l.b16 %v2931
    %v3012 = vunpack.c.h.b16 %v2931
    %v3013 = vunpack.c.l.b16 %v2932
    %v3014 = vunpack.c.h.b16 %v2932
    %v3015 = vunpack.c.l.b16 %v2933
    %v3016 = vunpack.c.h.b16 %v2933
    %v3017 = vunpack.c.l.b16 %v2934
    %v3018 = vunpack.c.h.b16 %v2934
    %v3019 = vunpack.c.l.b16 %v2935
    %v3020 = vunpack.c.h.b16 %v2935
    %v3021 = vunpack.c.l.b16 %v2936
    %v3022 = vunpack.c.h.b16 %v2936
    %v3023 = vunpack.c.l.b16 %v2937
    %v3024 = vunpack.c.h.b16 %v2937
    %v3025 = vunpack.c.l.b16 %v2938
    %v3026 = vunpack.c.h.b16 %v2938
    %v3027 = vunpack.c.l.b16 %v2939
    %v3028 = vunpack.c.h.b16 %v2939
    %v3029 = vunpack.c.l.b16 %v2940
    %v3030 = vunpack.c.h.b16 %v2940
    %v3031 = vunpack.c.l.b16 %v2941
    %v3032 = vunpack.c.h.b16 %v2941
    %v3033 = vunpack.c.l.b16 %v2942
    %v3034 = vunpack.c.h.b16 %v2942
    %v3035 = vunpack.c.l.b16 %v2943
    %v3036 = vunpack.c.h.b16 %v2943
    %v3037 = vunpack.c.l.b16 %v2944
    %v3038 = vunpack.c.h.b16 %v2944
    %v3039 = vunpack.c.l.b16 %v2945
    %v3040 = vunpack.c.h.b16 %v2945
    %v3041 = vunpack.c.l.b16 %v2946
    %v3042 = vunpack.c.h.b16 %v2946
    %v3043 = vunpack.c.l.b16 %v2947
    %v3044 = vunpack.c.h.b16 %v2947
    %v3045 = vunpack.c.l.b16 %v2948
    %v3046 = vunpack.c.h.b16 %v2948
    %v3047 = vunpack.c.l.b16 %v2949
    %v3048 = vunpack.c.h.b16 %v2949
    %v3049 = vunpack.c.l.b16 %v2950
    %v3050 = vunpack.c.h.b16 %v2950
    %v3051 = vunpack.c.l.b16 %v2951
    %v3052 = vunpack.c.h.b16 %v2951
    %v3053 = vunpack.c.l.b16 %v2952
    %v3054 = vunpack.c.h.b16 %v2952
    %v3055 = vunpack.c.l.b16 %v2953
    %v3056 = vunpack.c.h.b16 %v2953
    %v3057 = vunpack.c.l.b16 %v2954
    %v3058 = vunpack.c.h.b16 %v2954
    %v3059 = vunpack.c.l.b16 %v2955
    %v3060 = vunpack.c.h.b16 %v2955
    %v3061 = vunpack.c.l.b16 %v2956
    %v3062 = vunpack.c.h.b16 %v2956
    %v3063 = vunpack.c.l.b16 %v2957
    %v3064 = vunpack.c.h.b16 %v2957
    %v3065 = vunpack.c.l.b16 %v2958
    %v3066 = vunpack.c.h.b16 %v2958
    %v3067 = vunpack.c.l.b16 %v2959
    %v3068 = vunpack.c.h.b16 %v2959
    %v3069 = vunpack.c.l.b16 %v2960
    %v3070 = vunpack.c.h.b16 %v2960
    %v3071 = vunpack.c.l.b16 %v2961
    %v3072 = vunpack.c.h.b16 %v2961
    %v3073 = vunpack.c.l.b16 %v2962
    %v3074 = vunpack.c.h.b16 %v2962
    %v3075 = vpack.c.b16 %v3013, %v3011
    %v3076 = vpack.c.b16 %v3014, %v3012
    %v3077 = vpack.c.b16 %v3017, %v3015
    %v3078 = vpack.c.b16 %v3018, %v3016
    %v3079 = vpack.c.b16 %v3021, %v3019
    %v3080 = vpack.c.b16 %v3022, %v3020
    %v3081 = vpack.c.b16 %v3025, %v3023
    %v3082 = vpack.c.b16 %v3026, %v3024
    %v3083 = vpack.c.b16 %v3029, %v3027
    %v3084 = vpack.c.b16 %v3030, %v3028
    %v3085 = vpack.c.b16 %v3033, %v3031
    %v3086 = vpack.c.b16 %v3034, %v3032
    %v3087 = vpack.c.b16 %v3037, %v3035
    %v3088 = vpack.c.b16 %v3038, %v3036
    %v3089 = vpack.c.b16 %v3041, %v3039
    %v3090 = vpack.c.b16 %v3042, %v3040
    %v3091 = vpack.c.b16 %v3045, %v3043
    %v3092 = vpack.c.b16 %v3046, %v3044
    %v3093 = vpack.c.b16 %v3049, %v3047
    %v3094 = vpack.c.b16 %v3050, %v3048
    %v3095 = vpack.c.b16 %v3053, %v3051
    %v3096 = vpack.c.b16 %v3054, %v3052
    %v3097 = vpack.c.b16 %v3057, %v3055
    %v3098 = vpack.c.b16 %v3058, %v3056
    %v3099 = vpack.c.b16 %v3061, %v3059
    %v3100 = vpack.c.b16 %v3062, %v3060
    %v3101 = vpack.c.b16 %v3065, %v3063
    %v3102 = vpack.c.b16 %v3066, %v3064
    %v3103 = vpack.c.b16 %v3069, %v3067
    %v3104 = vpack.c.b16 %v3070, %v3068
    %v3105 = vpack.c.b16 %v3073, %v3071
    %v3106 = vpack.c.b16 %v3074, %v3072
    %3139 = vmatprep.subr.bf16.mxu0 %v3090
    %3140 = vmatpush1.bf16.msra.mxu0 %v3089
    %3141 = vmatprep.subr.bf16.mxu0 %v3088
    %3142 = vmatpush1.bf16.msra.mxu0 %v3087
    %3143 = vmatprep.subr.bf16.mxu0 %v3086
    %3144 = vmatpush1.bf16.msra.mxu0 %v3085
    %3145 = vmatprep.subr.bf16.mxu0 %v3084
    %3146 = vmatpush1.bf16.msra.mxu0 %v3083
    %3147 = vmatprep.subr.bf16.mxu0 %v3082
    %3148 = vmatpush1.bf16.msra.mxu0 %v3081
    %3149 = vmatprep.subr.bf16.mxu0 %v3080
    %3150 = vmatpush1.bf16.msra.mxu0 %v3079
    %3151 = vmatprep.subr.bf16.mxu0 %v3078
    %3152 = vmatpush1.bf16.msra.mxu0 %v3077
    %3153 = vmatprep.subr.bf16.mxu0 %v3076
    %3154 = vmatpush1.bf16.msra.mxu0 %v3075
    %3155 = vmatprep.subr.bf16.mxu0 %v3106
    %3156 = vmatpush2.bf16.msra.mxu0 %v3105
    %3157 = vmatprep.subr.bf16.mxu0 %v3104
    %3158 = vmatpush2.bf16.msra.mxu0 %v3103
    %3159 = vmatprep.subr.bf16.mxu0 %v3102
    %3160 = vmatpush2.bf16.msra.mxu0 %v3101
    %3161 = vmatprep.subr.bf16.mxu0 %v3100
    %3162 = vmatpush2.bf16.msra.mxu0 %v3099
    %3163 = vmatprep.subr.bf16.mxu0 %v3098
    %3164 = vmatpush2.bf16.msra.mxu0 %v3097
    %3165 = vmatprep.subr.bf16.mxu0 %v3096
    %3166 = vmatpush2.bf16.msra.mxu0 %v3095
    %3167 = vmatprep.subr.bf16.mxu0 %v3094
    %3168 = vmatpush2.bf16.msra.mxu0 %v3093
    %3169 = vmatprep.subr.bf16.mxu0 %v3092
    %3170 = vmatpush2.bf16.msra.mxu0 %v3091
    %3171 = vmatprep.mubr.bf16.mxu0 %v2976
    %3172 = vmatmul.mubr.bf16.gmra.mxu0 %v2969
    %v3173 = vpop.f32.mrf.mxu0
    %v3174 = vadd.f32 0.0, %v3173
    %v3175 = vpop.f32.mrf.mxu0
    %v3176 = vadd.f32 0.0, %v3175
    %v3177 = vpop.f32.mrf.mxu0
    %v3178 = vpop.f32.mrf.mxu0
    %3179 = vdwg.mxu0
    %v3212 = vunpack.c.l.b16 %v2892
    %v3213 = vunpack.c.h.b16 %v2892
    %v3214 = vunpack.c.l.b16 %v2893
    %v3215 = vunpack.c.h.b16 %v2893
    %v3216 = vunpack.c.l.b16 %v2894
    %v3217 = vunpack.c.h.b16 %v2894
    %v3218 = vunpack.c.l.b16 %v2895
    %v3219 = vunpack.c.h.b16 %v2895
    %v3220 = vunpack.c.l.b16 %v2896
    %v3221 = vunpack.c.h.b16 %v2896
    %v3222 = vunpack.c.l.b16 %v2897
    %v3223 = vunpack.c.h.b16 %v2897
    %v3224 = vunpack.c.l.b16 %v2898
    %v3225 = vunpack.c.h.b16 %v2898
    %v3226 = vunpack.c.l.b16 %v2899
    %v3227 = vunpack.c.h.b16 %v2899
    %v3228 = vunpack.c.l.b16 %v2900
    %v3229 = vunpack.c.h.b16 %v2900
    %v3230 = vunpack.c.l.b16 %v2901
    %v3231 = vunpack.c.h.b16 %v2901
    %v3232 = vunpack.c.l.b16 %v2902
    %v3233 = vunpack.c.h.b16 %v2902
    %v3234 = vunpack.c.l.b16 %v2903
    %v3235 = vunpack.c.h.b16 %v2903
    %v3236 = vunpack.c.l.b16 %v2904
    %v3237 = vunpack.c.h.b16 %v2904
    %v3238 = vunpack.c.l.b16 %v2905
    %v3239 = vunpack.c.h.b16 %v2905
    %v3240 = vunpack.c.l.b16 %v2906
    %v3241 = vunpack.c.h.b16 %v2906
    %v3242 = vunpack.c.l.b16 %v2907
    %v3243 = vunpack.c.h.b16 %v2907
    %v3244 = vunpack.c.l.b16 %v2908
    %v3245 = vunpack.c.h.b16 %v2908
    %v3246 = vunpack.c.l.b16 %v2909
    %v3247 = vunpack.c.h.b16 %v2909
    %v3248 = vunpack.c.l.b16 %v2910
    %v3249 = vunpack.c.h.b16 %v2910
    %v3250 = vunpack.c.l.b16 %v2911
    %v3251 = vunpack.c.h.b16 %v2911
    %v3252 = vunpack.c.l.b16 %v2912
    %v3253 = vunpack.c.h.b16 %v2912
    %v3254 = vunpack.c.l.b16 %v2913
    %v3255 = vunpack.c.h.b16 %v2913
    %v3256 = vunpack.c.l.b16 %v2914
    %v3257 = vunpack.c.h.b16 %v2914
    %v3258 = vunpack.c.l.b16 %v2915
    %v3259 = vunpack.c.h.b16 %v2915
    %v3260 = vunpack.c.l.b16 %v2916
    %v3261 = vunpack.c.h.b16 %v2916
    %v3262 = vunpack.c.l.b16 %v2917
    %v3263 = vunpack.c.h.b16 %v2917
    %v3264 = vunpack.c.l.b16 %v2918
    %v3265 = vunpack.c.h.b16 %v2918
    %v3266 = vunpack.c.l.b16 %v2919
    %v3267 = vunpack.c.h.b16 %v2919
    %v3268 = vunpack.c.l.b16 %v2920
    %v3269 = vunpack.c.h.b16 %v2920
    %v3270 = vunpack.c.l.b16 %v2921
    %v3271 = vunpack.c.h.b16 %v2921
    %v3272 = vunpack.c.l.b16 %v2922
    %v3273 = vunpack.c.h.b16 %v2922
    %v3274 = vunpack.c.l.b16 %v2923
    %v3275 = vunpack.c.h.b16 %v2923
    %v3276 = vpack.c.b16 %v3214, %v3212
    %v3277 = vpack.c.b16 %v3215, %v3213
    %v3278 = vpack.c.b16 %v3218, %v3216
    %v3279 = vpack.c.b16 %v3219, %v3217
    %v3280 = vpack.c.b16 %v3222, %v3220
    %v3281 = vpack.c.b16 %v3223, %v3221
    %v3282 = vpack.c.b16 %v3226, %v3224
    %v3283 = vpack.c.b16 %v3227, %v3225
    %v3284 = vpack.c.b16 %v3230, %v3228
    %v3285 = vpack.c.b16 %v3231, %v3229
    %v3286 = vpack.c.b16 %v3234, %v3232
    %v3287 = vpack.c.b16 %v3235, %v3233
    %v3288 = vpack.c.b16 %v3238, %v3236
    %v3289 = vpack.c.b16 %v3239, %v3237
    %v3290 = vpack.c.b16 %v3242, %v3240
    %v3291 = vpack.c.b16 %v3243, %v3241
    %v3292 = vpack.c.b16 %v3246, %v3244
    %v3293 = vpack.c.b16 %v3247, %v3245
    %v3294 = vpack.c.b16 %v3250, %v3248
    %v3295 = vpack.c.b16 %v3251, %v3249
    %v3296 = vpack.c.b16 %v3254, %v3252
    %v3297 = vpack.c.b16 %v3255, %v3253
    %v3298 = vpack.c.b16 %v3258, %v3256
    %v3299 = vpack.c.b16 %v3259, %v3257
    %v3300 = vpack.c.b16 %v3262, %v3260
    %v3301 = vpack.c.b16 %v3263, %v3261
    %v3302 = vpack.c.b16 %v3266, %v3264
    %v3303 = vpack.c.b16 %v3267, %v3265
    %v3304 = vpack.c.b16 %v3270, %v3268
    %v3305 = vpack.c.b16 %v3271, %v3269
    %v3306 = vpack.c.b16 %v3274, %v3272
    %v3307 = vpack.c.b16 %v3275, %v3273
    %3340 = vmatprep.subr.bf16.mxu0 %v3291
    %3341 = vmatpush1.bf16.msra.mxu0 %v3290
    %3342 = vmatprep.subr.bf16.mxu0 %v3289
    %3343 = vmatpush1.bf16.msra.mxu0 %v3288
    %3344 = vmatprep.subr.bf16.mxu0 %v3287
    %3345 = vmatpush1.bf16.msra.mxu0 %v3286
    %3346 = vmatprep.subr.bf16.mxu0 %v3285
    %3347 = vmatpush1.bf16.msra.mxu0 %v3284
    %3348 = vmatprep.subr.bf16.mxu0 %v3283
    %3349 = vmatpush1.bf16.msra.mxu0 %v3282
    %3350 = vmatprep.subr.bf16.mxu0 %v3281
    %3351 = vmatpush1.bf16.msra.mxu0 %v3280
    %3352 = vmatprep.subr.bf16.mxu0 %v3279
    %3353 = vmatpush1.bf16.msra.mxu0 %v3278
    %3354 = vmatprep.subr.bf16.mxu0 %v3277
    %3355 = vmatpush1.bf16.msra.mxu0 %v3276
    %3356 = vmatprep.subr.bf16.mxu0 %v3307
    %3357 = vmatpush2.bf16.msra.mxu0 %v3306
    %3358 = vmatprep.subr.bf16.mxu0 %v3305
    %3359 = vmatpush2.bf16.msra.mxu0 %v3304
    %3360 = vmatprep.subr.bf16.mxu0 %v3303
    %3361 = vmatpush2.bf16.msra.mxu0 %v3302
    %3362 = vmatprep.subr.bf16.mxu0 %v3301
    %3363 = vmatpush2.bf16.msra.mxu0 %v3300
    %3364 = vmatprep.subr.bf16.mxu0 %v3299
    %3365 = vmatpush2.bf16.msra.mxu0 %v3298
    %3366 = vmatprep.subr.bf16.mxu0 %v3297
    %3367 = vmatpush2.bf16.msra.mxu0 %v3296
    %3368 = vmatprep.subr.bf16.mxu0 %v3295
    %3369 = vmatpush2.bf16.msra.mxu0 %v3294
    %3370 = vmatprep.subr.bf16.mxu0 %v3293
    %3371 = vmatpush2.bf16.msra.mxu0 %v3292
    %3372 = vmatprep.mubr.bf16.mxu0 %v2890
    %3373 = vmatmul.mubr.bf16.gmra.mxu0 %v2889
    %v3374 = vpop.f32.mrf.mxu0
    %v3375 = vadd.f32 %v3174, %v3374
    %v3376 = vpop.f32.mrf.mxu0
    %v3377 = vadd.f32 %v3176, %v3376
    %v3378 = vpop.f32.mrf.mxu0
    %v3379 = vpop.f32.mrf.mxu0
    %3380 = vdwg.mxu0
    %v3381 = vld [vmem:[#allocation4] sm:$0xfc]
    %v3382 = vld [vmem:[#allocation4 + $0x8] sm:$0xfc]
    %v3383 = vld [vmem:[#allocation4 + $0x10] sm:$0x3]
    %v3384 = vld [vmem:[#allocation4 + $0x18] sm:$0x3]
    %v3385 = vpack.c.bf16 %v3383, %v3381
    %v3386 = vpack.c.bf16 %v3384, %v3382
    %s3387 = scalar_lea.vmem [#allocation9], 3072
    %v3388 = vld [vmem:[%s3387] sm:$0xff]
    %v3389 = vld [vmem:[%s3387 + $0x8] sm:$0xff]
    %v3390 = vld [vmem:[%s3387 + $0x10] sm:$0xff]
    %v3391 = vld [vmem:[%s3387 + $0x18] sm:$0xff]
    %v3392 = vld [vmem:[%s3387 + $0x20] sm:$0xff]
    %v3393 = vld [vmem:[%s3387 + $0x28] sm:$0xff]
    %v3394 = vld [vmem:[%s3387 + $0x30] sm:$0xff]
    %v3395 = vld [vmem:[%s3387 + $0x38] sm:$0xff]
    %v3396 = vld [vmem:[%s3387 + $0x40] sm:$0xff]
    %v3397 = vld [vmem:[%s3387 + $0x48] sm:$0xff]
    %v3398 = vld [vmem:[%s3387 + $0x50] sm:$0xff]
    %v3399 = vld [vmem:[%s3387 + $0x58] sm:$0xff]
    %v3400 = vld [vmem:[%s3387 + $0x60] sm:$0xff]
    %v3401 = vld [vmem:[%s3387 + $0x68] sm:$0xff]
    %v3402 = vld [vmem:[%s3387 + $0x70] sm:$0xff]
    %v3403 = vld [vmem:[%s3387 + $0x78] sm:$0xff]
    %v3404 = vld [vmem:[%s3387 + $0x80] sm:$0xff]
    %v3405 = vld [vmem:[%s3387 + $0x88] sm:$0xff]
    %v3406 = vld [vmem:[%s3387 + $0x90] sm:$0xff]
    %v3407 = vld [vmem:[%s3387 + $0x98] sm:$0xff]
    %v3408 = vld [vmem:[%s3387 + $0xa0] sm:$0xff]
    %v3409 = vld [vmem:[%s3387 + $0xa8] sm:$0xff]
    %v3410 = vld [vmem:[%s3387 + $0xb0] sm:$0xff]
    %v3411 = vld [vmem:[%s3387 + $0xb8] sm:$0xff]
    %v3412 = vld [vmem:[%s3387 + $0xc0] sm:$0xff]
    %v3413 = vld [vmem:[%s3387 + $0xc8] sm:$0xff]
    %v3414 = vld [vmem:[%s3387 + $0xd0] sm:$0xff]
    %v3415 = vld [vmem:[%s3387 + $0xd8] sm:$0xff]
    %v3416 = vld [vmem:[%s3387 + $0xe0] sm:$0xff]
    %v3417 = vld [vmem:[%s3387 + $0xe8] sm:$0xff]
    %v3418 = vld [vmem:[%s3387 + $0xf0] sm:$0xff]
    %v3419 = vld [vmem:[%s3387 + $0xf8] sm:$0xff]
    %v3422 = vrot.slane %v3385, 1
    %v3423 = vrot.slane %v3386, 1
    %v3458 = vunpack.c.l.b16 %v3388
    %v3459 = vunpack.c.h.b16 %v3388
    %v3460 = vunpack.c.l.b16 %v3389
    %v3461 = vunpack.c.h.b16 %v3389
    %v3462 = vunpack.c.l.b16 %v3390
    %v3463 = vunpack.c.h.b16 %v3390
    %v3464 = vunpack.c.l.b16 %v3391
    %v3465 = vunpack.c.h.b16 %v3391
    %v3466 = vunpack.c.l.b16 %v3392
    %v3467 = vunpack.c.h.b16 %v3392
    %v3468 = vunpack.c.l.b16 %v3393
    %v3469 = vunpack.c.h.b16 %v3393
    %v3470 = vunpack.c.l.b16 %v3394
    %v3471 = vunpack.c.h.b16 %v3394
    %v3472 = vunpack.c.l.b16 %v3395
    %v3473 = vunpack.c.h.b16 %v3395
    %v3474 = vunpack.c.l.b16 %v3396
    %v3475 = vunpack.c.h.b16 %v3396
    %v3476 = vunpack.c.l.b16 %v3397
    %v3477 = vunpack.c.h.b16 %v3397
    %v3478 = vunpack.c.l.b16 %v3398
    %v3479 = vunpack.c.h.b16 %v3398
    %v3480 = vunpack.c.l.b16 %v3399
    %v3481 = vunpack.c.h.b16 %v3399
    %v3482 = vunpack.c.l.b16 %v3400
    %v3483 = vunpack.c.h.b16 %v3400
    %v3484 = vunpack.c.l.b16 %v3401
    %v3485 = vunpack.c.h.b16 %v3401
    %v3486 = vunpack.c.l.b16 %v3402
    %v3487 = vunpack.c.h.b16 %v3402
    %v3488 = vunpack.c.l.b16 %v3403
    %v3489 = vunpack.c.h.b16 %v3403
    %v3490 = vunpack.c.l.b16 %v3404
    %v3491 = vunpack.c.h.b16 %v3404
    %v3492 = vunpack.c.l.b16 %v3405
    %v3493 = vunpack.c.h.b16 %v3405
    %v3494 = vunpack.c.l.b16 %v3406
    %v3495 = vunpack.c.h.b16 %v3406
    %v3496 = vunpack.c.l.b16 %v3407
    %v3497 = vunpack.c.h.b16 %v3407
    %v3498 = vunpack.c.l.b16 %v3408
    %v3499 = vunpack.c.h.b16 %v3408
    %v3500 = vunpack.c.l.b16 %v3409
    %v3501 = vunpack.c.h.b16 %v3409
    %v3502 = vunpack.c.l.b16 %v3410
    %v3503 = vunpack.c.h.b16 %v3410
    %v3504 = vunpack.c.l.b16 %v3411
    %v3505 = vunpack.c.h.b16 %v3411
    %v3506 = vunpack.c.l.b16 %v3412
    %v3507 = vunpack.c.h.b16 %v3412
    %v3508 = vunpack.c.l.b16 %v3413
    %v3509 = vunpack.c.h.b16 %v3413
    %v3510 = vunpack.c.l.b16 %v3414
    %v3511 = vunpack.c.h.b16 %v3414
    %v3512 = vunpack.c.l.b16 %v3415
    %v3513 = vunpack.c.h.b16 %v3415
    %v3514 = vunpack.c.l.b16 %v3416
    %v3515 = vunpack.c.h.b16 %v3416
    %v3516 = vunpack.c.l.b16 %v3417
    %v3517 = vunpack.c.h.b16 %v3417
    %v3518 = vunpack.c.l.b16 %v3418
    %v3519 = vunpack.c.h.b16 %v3418
    %v3520 = vunpack.c.l.b16 %v3419
    %v3521 = vunpack.c.h.b16 %v3419
    %v3522 = vpack.c.b16 %v3460, %v3458
    %v3523 = vpack.c.b16 %v3461, %v3459
    %v3524 = vpack.c.b16 %v3464, %v3462
    %v3525 = vpack.c.b16 %v3465, %v3463
    %v3526 = vpack.c.b16 %v3468, %v3466
    %v3527 = vpack.c.b16 %v3469, %v3467
    %v3528 = vpack.c.b16 %v3472, %v3470
    %v3529 = vpack.c.b16 %v3473, %v3471
    %v3530 = vpack.c.b16 %v3476, %v3474
    %v3531 = vpack.c.b16 %v3477, %v3475
    %v3532 = vpack.c.b16 %v3480, %v3478
    %v3533 = vpack.c.b16 %v3481, %v3479
    %v3534 = vpack.c.b16 %v3484, %v3482
    %v3535 = vpack.c.b16 %v3485, %v3483
    %v3536 = vpack.c.b16 %v3488, %v3486
    %v3537 = vpack.c.b16 %v3489, %v3487
    %v3538 = vpack.c.b16 %v3492, %v3490
    %v3539 = vpack.c.b16 %v3493, %v3491
    %v3540 = vpack.c.b16 %v3496, %v3494
    %v3541 = vpack.c.b16 %v3497, %v3495
    %v3542 = vpack.c.b16 %v3500, %v3498
    %v3543 = vpack.c.b16 %v3501, %v3499
    %v3544 = vpack.c.b16 %v3504, %v3502
    %v3545 = vpack.c.b16 %v3505, %v3503
    %v3546 = vpack.c.b16 %v3508, %v3506
    %v3547 = vpack.c.b16 %v3509, %v3507
    %v3548 = vpack.c.b16 %v3512, %v3510
    %v3549 = vpack.c.b16 %v3513, %v3511
    %v3550 = vpack.c.b16 %v3516, %v3514
    %v3551 = vpack.c.b16 %v3517, %v3515
    %v3552 = vpack.c.b16 %v3520, %v3518
    %v3553 = vpack.c.b16 %v3521, %v3519
    %3586 = vmatprep.subr.bf16.mxu0 %v3537
    %3587 = vmatpush1.bf16.msra.mxu0 %v3536
    %3588 = vmatprep.subr.bf16.mxu0 %v3535
    %3589 = vmatpush1.bf16.msra.mxu0 %v3534
    %3590 = vmatprep.subr.bf16.mxu0 %v3533
    %3591 = vmatpush1.bf16.msra.mxu0 %v3532
    %3592 = vmatprep.subr.bf16.mxu0 %v3531
    %3593 = vmatpush1.bf16.msra.mxu0 %v3530
    %3594 = vmatprep.subr.bf16.mxu0 %v3529
    %3595 = vmatpush1.bf16.msra.mxu0 %v3528
    %3596 = vmatprep.subr.bf16.mxu0 %v3527
    %3597 = vmatpush1.bf16.msra.mxu0 %v3526
    %3598 = vmatprep.subr.bf16.mxu0 %v3525
    %3599 = vmatpush1.bf16.msra.mxu0 %v3524
    %3600 = vmatprep.subr.bf16.mxu0 %v3523
    %3601 = vmatpush1.bf16.msra.mxu0 %v3522
    %3602 = vmatprep.subr.bf16.mxu0 %v3553
    %3603 = vmatpush2.bf16.msra.mxu0 %v3552
    %3604 = vmatprep.subr.bf16.mxu0 %v3551
    %3605 = vmatpush2.bf16.msra.mxu0 %v3550
    %3606 = vmatprep.subr.bf16.mxu0 %v3549
    %3607 = vmatpush2.bf16.msra.mxu0 %v3548
    %3608 = vmatprep.subr.bf16.mxu0 %v3547
    %3609 = vmatpush2.bf16.msra.mxu0 %v3546
    %3610 = vmatprep.subr.bf16.mxu0 %v3545
    %3611 = vmatpush2.bf16.msra.mxu0 %v3544
    %3612 = vmatprep.subr.bf16.mxu0 %v3543
    %3613 = vmatpush2.bf16.msra.mxu0 %v3542
    %3614 = vmatprep.subr.bf16.mxu0 %v3541
    %3615 = vmatpush2.bf16.msra.mxu0 %v3540
    %3616 = vmatprep.subr.bf16.mxu0 %v3539
    %3617 = vmatpush2.bf16.msra.mxu0 %v3538
    %3618 = vmatprep.mubr.bf16.mxu0 %v3423
    %3619 = vmatmul.mubr.bf16.gmra.mxu0 %v3422
    %v3620 = vpop.f32.mrf.mxu0
    %v3621 = vadd.f32 0.0, %v3620
    %v3622 = vpop.f32.mrf.mxu0
    %v3623 = vadd.f32 0.0, %v3622
    %v3624 = vpop.f32.mrf.mxu0
    %v3625 = vpop.f32.mrf.mxu0
    %3626 = vdwg.mxu0
    %v3627 = vadd.f32 %v3375, %v3621
    %v3628 = vadd.f32 %v3377, %v3623
    %v3629 = vld [vmem:[#allocation14 + $0x8] sm:$0x3]
    %v3631 = vlaneseq
    %v3632 = vshrl.u32 %v3631, 7
    %v3633 = vsub.s32 0, %v3632
    %v3634 = vrot.slane %v3629, %v3633
    %v3635 = vlaneseq
    %v3636 = vshrl.u32 %v3635, 7
    %v3637 = vsub.s32 1, %v3636
    %v3638 = vrot.slane %v3629, %v3637
    %v3641 = vadd.f32 %v3627, %v3634
    %v3642 = vadd.f32 %v3628, %v3638
    %v3643 = vmax.f32 %v3641, 0.0
    %v3644 = vmax.f32 %v3642, 0.0
    %v3647 = vrot.slane %v3643, 7
    %v3648 = vrot.slane %v3644, 7
    %3651 = vst [vmem:[#allocation3] sm:$0xfe] %v3647
    %3652 = vst [vmem:[#allocation3 + $0x8] sm:$0xfe] %v3648
    %3653 = vst [vmem:[#allocation3 + $0x10] sm:$0x1] %v3647
    %3654 = vst [vmem:[#allocation3 + $0x18] sm:$0x1] %v3648
    %v3655 = vld [vmem:[#allocation3] sm:$0xff]
    %v3656 = vld [vmem:[#allocation3 + $0x8] sm:$0xff]
    %v3657 = vpack.c.bf16 %v3655, %v3655
    %v3658 = vpack.c.bf16 %v3656, %v3656
    %s3659 = scalar_lea.vmem [#allocation9], 3328
    %v3660 = vld [vmem:[%s3659] sm:$0xff]
    %v3661 = vld [vmem:[%s3659 + $0x8] sm:$0xff]
    %v3662 = vld [vmem:[%s3659 + $0x10] sm:$0xff]
    %v3663 = vld [vmem:[%s3659 + $0x18] sm:$0xff]
    %v3664 = vld [vmem:[%s3659 + $0x20] sm:$0xff]
    %v3665 = vld [vmem:[%s3659 + $0x28] sm:$0xff]
    %v3666 = vld [vmem:[%s3659 + $0x30] sm:$0xff]
    %v3667 = vld [vmem:[%s3659 + $0x38] sm:$0xff]
    %v3668 = vld [vmem:[%s3659 + $0x40] sm:$0xff]
    %v3669 = vld [vmem:[%s3659 + $0x48] sm:$0xff]
    %v3670 = vld [vmem:[%s3659 + $0x50] sm:$0xff]
    %v3671 = vld [vmem:[%s3659 + $0x58] sm:$0xff]
    %v3672 = vld [vmem:[%s3659 + $0x60] sm:$0xff]
    %v3673 = vld [vmem:[%s3659 + $0x68] sm:$0xff]
    %v3674 = vld [vmem:[%s3659 + $0x70] sm:$0xff]
    %v3675 = vld [vmem:[%s3659 + $0x78] sm:$0xff]
    %v3676 = vld [vmem:[%s3659 + $0x80] sm:$0xff]
    %v3677 = vld [vmem:[%s3659 + $0x88] sm:$0xff]
    %v3678 = vld [vmem:[%s3659 + $0x90] sm:$0xff]
    %v3679 = vld [vmem:[%s3659 + $0x98] sm:$0xff]
    %v3680 = vld [vmem:[%s3659 + $0xa0] sm:$0xff]
    %v3681 = vld [vmem:[%s3659 + $0xa8] sm:$0xff]
    %v3682 = vld [vmem:[%s3659 + $0xb0] sm:$0xff]
    %v3683 = vld [vmem:[%s3659 + $0xb8] sm:$0xff]
    %v3684 = vld [vmem:[%s3659 + $0xc0] sm:$0xff]
    %v3685 = vld [vmem:[%s3659 + $0xc8] sm:$0xff]
    %v3686 = vld [vmem:[%s3659 + $0xd0] sm:$0xff]
    %v3687 = vld [vmem:[%s3659 + $0xd8] sm:$0xff]
    %v3688 = vld [vmem:[%s3659 + $0xe0] sm:$0xff]
    %v3689 = vld [vmem:[%s3659 + $0xe8] sm:$0xff]
    %v3690 = vld [vmem:[%s3659 + $0xf0] sm:$0xff]
    %v3691 = vld [vmem:[%s3659 + $0xf8] sm:$0xff]
    %v3692 = vld [vmem:[#allocation3] sm:$0xfe]
    %v3693 = vld [vmem:[#allocation3 + $0x8] sm:$0xfe]
    %v3694 = vld [vmem:[#allocation3 + $0x10] sm:$0x1]
    %v3695 = vld [vmem:[#allocation3 + $0x18] sm:$0x1]
    %v3696 = vpack.c.bf16 %v3694, %v3692
    %v3697 = vpack.c.bf16 %v3695, %v3693
    %s3698 = scalar_lea.vmem [#allocation9], 3584
    %v3699 = vld [vmem:[%s3698] sm:$0xff]
    %v3700 = vld [vmem:[%s3698 + $0x8] sm:$0xff]
    %v3701 = vld [vmem:[%s3698 + $0x10] sm:$0xff]
    %v3702 = vld [vmem:[%s3698 + $0x18] sm:$0xff]
    %v3703 = vld [vmem:[%s3698 + $0x20] sm:$0xff]
    %v3704 = vld [vmem:[%s3698 + $0x28] sm:$0xff]
    %v3705 = vld [vmem:[%s3698 + $0x30] sm:$0xff]
    %v3706 = vld [vmem:[%s3698 + $0x38] sm:$0xff]
    %v3707 = vld [vmem:[%s3698 + $0x40] sm:$0xff]
    %v3708 = vld [vmem:[%s3698 + $0x48] sm:$0xff]
    %v3709 = vld [vmem:[%s3698 + $0x50] sm:$0xff]
    %v3710 = vld [vmem:[%s3698 + $0x58] sm:$0xff]
    %v3711 = vld [vmem:[%s3698 + $0x60] sm:$0xff]
    %v3712 = vld [vmem:[%s3698 + $0x68] sm:$0xff]
    %v3713 = vld [vmem:[%s3698 + $0x70] sm:$0xff]
    %v3714 = vld [vmem:[%s3698 + $0x78] sm:$0xff]
    %v3715 = vld [vmem:[%s3698 + $0x80] sm:$0xff]
    %v3716 = vld [vmem:[%s3698 + $0x88] sm:$0xff]
    %v3717 = vld [vmem:[%s3698 + $0x90] sm:$0xff]
    %v3718 = vld [vmem:[%s3698 + $0x98] sm:$0xff]
    %v3719 = vld [vmem:[%s3698 + $0xa0] sm:$0xff]
    %v3720 = vld [vmem:[%s3698 + $0xa8] sm:$0xff]
    %v3721 = vld [vmem:[%s3698 + $0xb0] sm:$0xff]
    %v3722 = vld [vmem:[%s3698 + $0xb8] sm:$0xff]
    %v3723 = vld [vmem:[%s3698 + $0xc0] sm:$0xff]
    %v3724 = vld [vmem:[%s3698 + $0xc8] sm:$0xff]
    %v3725 = vld [vmem:[%s3698 + $0xd0] sm:$0xff]
    %v3726 = vld [vmem:[%s3698 + $0xd8] sm:$0xff]
    %v3727 = vld [vmem:[%s3698 + $0xe0] sm:$0xff]
    %v3728 = vld [vmem:[%s3698 + $0xe8] sm:$0xff]
    %v3729 = vld [vmem:[%s3698 + $0xf0] sm:$0xff]
    %v3730 = vld [vmem:[%s3698 + $0xf8] sm:$0xff]
    %v3732 = vshrl.u32 %v3696, 16
    %v3734 = vshll.u32 %v3696, 16
    %v3736 = vrot.slane %v3734, 1
    %v3737 = vor.u32 %v3732, %v3736
    %v3739 = vshrl.u32 %v3697, 16
    %v3741 = vshll.u32 %v3697, 16
    %v3743 = vrot.slane %v3741, 1
    %v3744 = vor.u32 %v3739, %v3743
    %v3779 = vunpack.c.l.b16 %v3699
    %v3780 = vunpack.c.h.b16 %v3699
    %v3781 = vunpack.c.l.b16 %v3700
    %v3782 = vunpack.c.h.b16 %v3700
    %v3783 = vunpack.c.l.b16 %v3701
    %v3784 = vunpack.c.h.b16 %v3701
    %v3785 = vunpack.c.l.b16 %v3702
    %v3786 = vunpack.c.h.b16 %v3702
    %v3787 = vunpack.c.l.b16 %v3703
    %v3788 = vunpack.c.h.b16 %v3703
    %v3789 = vunpack.c.l.b16 %v3704
    %v3790 = vunpack.c.h.b16 %v3704
    %v3791 = vunpack.c.l.b16 %v3705
    %v3792 = vunpack.c.h.b16 %v3705
    %v3793 = vunpack.c.l.b16 %v3706
    %v3794 = vunpack.c.h.b16 %v3706
    %v3795 = vunpack.c.l.b16 %v3707
    %v3796 = vunpack.c.h.b16 %v3707
    %v3797 = vunpack.c.l.b16 %v3708
    %v3798 = vunpack.c.h.b16 %v3708
    %v3799 = vunpack.c.l.b16 %v3709
    %v3800 = vunpack.c.h.b16 %v3709
    %v3801 = vunpack.c.l.b16 %v3710
    %v3802 = vunpack.c.h.b16 %v3710
    %v3803 = vunpack.c.l.b16 %v3711
    %v3804 = vunpack.c.h.b16 %v3711
    %v3805 = vunpack.c.l.b16 %v3712
    %v3806 = vunpack.c.h.b16 %v3712
    %v3807 = vunpack.c.l.b16 %v3713
    %v3808 = vunpack.c.h.b16 %v3713
    %v3809 = vunpack.c.l.b16 %v3714
    %v3810 = vunpack.c.h.b16 %v3714
    %v3811 = vunpack.c.l.b16 %v3715
    %v3812 = vunpack.c.h.b16 %v3715
    %v3813 = vunpack.c.l.b16 %v3716
    %v3814 = vunpack.c.h.b16 %v3716
    %v3815 = vunpack.c.l.b16 %v3717
    %v3816 = vunpack.c.h.b16 %v3717
    %v3817 = vunpack.c.l.b16 %v3718
    %v3818 = vunpack.c.h.b16 %v3718
    %v3819 = vunpack.c.l.b16 %v3719
    %v3820 = vunpack.c.h.b16 %v3719
    %v3821 = vunpack.c.l.b16 %v3720
    %v3822 = vunpack.c.h.b16 %v3720
    %v3823 = vunpack.c.l.b16 %v3721
    %v3824 = vunpack.c.h.b16 %v3721
    %v3825 = vunpack.c.l.b16 %v3722
    %v3826 = vunpack.c.h.b16 %v3722
    %v3827 = vunpack.c.l.b16 %v3723
    %v3828 = vunpack.c.h.b16 %v3723
    %v3829 = vunpack.c.l.b16 %v3724
    %v3830 = vunpack.c.h.b16 %v3724
    %v3831 = vunpack.c.l.b16 %v3725
    %v3832 = vunpack.c.h.b16 %v3725
    %v3833 = vunpack.c.l.b16 %v3726
    %v3834 = vunpack.c.h.b16 %v3726
    %v3835 = vunpack.c.l.b16 %v3727
    %v3836 = vunpack.c.h.b16 %v3727
    %v3837 = vunpack.c.l.b16 %v3728
    %v3838 = vunpack.c.h.b16 %v3728
    %v3839 = vunpack.c.l.b16 %v3729
    %v3840 = vunpack.c.h.b16 %v3729
    %v3841 = vunpack.c.l.b16 %v3730
    %v3842 = vunpack.c.h.b16 %v3730
    %v3843 = vpack.c.b16 %v3781, %v3779
    %v3844 = vpack.c.b16 %v3782, %v3780
    %v3845 = vpack.c.b16 %v3785, %v3783
    %v3846 = vpack.c.b16 %v3786, %v3784
    %v3847 = vpack.c.b16 %v3789, %v3787
    %v3848 = vpack.c.b16 %v3790, %v3788
    %v3849 = vpack.c.b16 %v3793, %v3791
    %v3850 = vpack.c.b16 %v3794, %v3792
    %v3851 = vpack.c.b16 %v3797, %v3795
    %v3852 = vpack.c.b16 %v3798, %v3796
    %v3853 = vpack.c.b16 %v3801, %v3799
    %v3854 = vpack.c.b16 %v3802, %v3800
    %v3855 = vpack.c.b16 %v3805, %v3803
    %v3856 = vpack.c.b16 %v3806, %v3804
    %v3857 = vpack.c.b16 %v3809, %v3807
    %v3858 = vpack.c.b16 %v3810, %v3808
    %v3859 = vpack.c.b16 %v3813, %v3811
    %v3860 = vpack.c.b16 %v3814, %v3812
    %v3861 = vpack.c.b16 %v3817, %v3815
    %v3862 = vpack.c.b16 %v3818, %v3816
    %v3863 = vpack.c.b16 %v3821, %v3819
    %v3864 = vpack.c.b16 %v3822, %v3820
    %v3865 = vpack.c.b16 %v3825, %v3823
    %v3866 = vpack.c.b16 %v3826, %v3824
    %v3867 = vpack.c.b16 %v3829, %v3827
    %v3868 = vpack.c.b16 %v3830, %v3828
    %v3869 = vpack.c.b16 %v3833, %v3831
    %v3870 = vpack.c.b16 %v3834, %v3832
    %v3871 = vpack.c.b16 %v3837, %v3835
    %v3872 = vpack.c.b16 %v3838, %v3836
    %v3873 = vpack.c.b16 %v3841, %v3839
    %v3874 = vpack.c.b16 %v3842, %v3840
    %3907 = vmatprep.subr.bf16.mxu0 %v3858
    %3908 = vmatpush1.bf16.msra.mxu0 %v3857
    %3909 = vmatprep.subr.bf16.mxu0 %v3856
    %3910 = vmatpush1.bf16.msra.mxu0 %v3855
    %3911 = vmatprep.subr.bf16.mxu0 %v3854
    %3912 = vmatpush1.bf16.msra.mxu0 %v3853
    %3913 = vmatprep.subr.bf16.mxu0 %v3852
    %3914 = vmatpush1.bf16.msra.mxu0 %v3851
    %3915 = vmatprep.subr.bf16.mxu0 %v3850
    %3916 = vmatpush1.bf16.msra.mxu0 %v3849
    %3917 = vmatprep.subr.bf16.mxu0 %v3848
    %3918 = vmatpush1.bf16.msra.mxu0 %v3847
    %3919 = vmatprep.subr.bf16.mxu0 %v3846
    %3920 = vmatpush1.bf16.msra.mxu0 %v3845
    %3921 = vmatprep.subr.bf16.mxu0 %v3844
    %3922 = vmatpush1.bf16.msra.mxu0 %v3843
    %3923 = vmatprep.subr.bf16.mxu0 %v3874
    %3924 = vmatpush2.bf16.msra.mxu0 %v3873
    %3925 = vmatprep.subr.bf16.mxu0 %v3872
    %3926 = vmatpush2.bf16.msra.mxu0 %v3871
    %3927 = vmatprep.subr.bf16.mxu0 %v3870
    %3928 = vmatpush2.bf16.msra.mxu0 %v3869
    %3929 = vmatprep.subr.bf16.mxu0 %v3868
    %3930 = vmatpush2.bf16.msra.mxu0 %v3867
    %3931 = vmatprep.subr.bf16.mxu0 %v3866
    %3932 = vmatpush2.bf16.msra.mxu0 %v3865
    %3933 = vmatprep.subr.bf16.mxu0 %v3864
    %3934 = vmatpush2.bf16.msra.mxu0 %v3863
    %3935 = vmatprep.subr.bf16.mxu0 %v3862
    %3936 = vmatpush2.bf16.msra.mxu0 %v3861
    %3937 = vmatprep.subr.bf16.mxu0 %v3860
    %3938 = vmatpush2.bf16.msra.mxu0 %v3859
    %3939 = vmatprep.mubr.bf16.mxu0 %v3744
    %3940 = vmatmul.mubr.bf16.gmra.mxu0 %v3737
    %v3941 = vpop.f32.mrf.mxu0
    %v3942 = vadd.f32 0.0, %v3941
    %v3943 = vpop.f32.mrf.mxu0
    %v3944 = vadd.f32 0.0, %v3943
    %v3945 = vpop.f32.mrf.mxu0
    %v3946 = vpop.f32.mrf.mxu0
    %3947 = vdwg.mxu0
    %v3980 = vunpack.c.l.b16 %v3660
    %v3981 = vunpack.c.h.b16 %v3660
    %v3982 = vunpack.c.l.b16 %v3661
    %v3983 = vunpack.c.h.b16 %v3661
    %v3984 = vunpack.c.l.b16 %v3662
    %v3985 = vunpack.c.h.b16 %v3662
    %v3986 = vunpack.c.l.b16 %v3663
    %v3987 = vunpack.c.h.b16 %v3663
    %v3988 = vunpack.c.l.b16 %v3664
    %v3989 = vunpack.c.h.b16 %v3664
    %v3990 = vunpack.c.l.b16 %v3665
    %v3991 = vunpack.c.h.b16 %v3665
    %v3992 = vunpack.c.l.b16 %v3666
    %v3993 = vunpack.c.h.b16 %v3666
    %v3994 = vunpack.c.l.b16 %v3667
    %v3995 = vunpack.c.h.b16 %v3667
    %v3996 = vunpack.c.l.b16 %v3668
    %v3997 = vunpack.c.h.b16 %v3668
    %v3998 = vunpack.c.l.b16 %v3669
    %v3999 = vunpack.c.h.b16 %v3669
    %v4000 = vunpack.c.l.b16 %v3670
    %v4001 = vunpack.c.h.b16 %v3670
    %v4002 = vunpack.c.l.b16 %v3671
    %v4003 = vunpack.c.h.b16 %v3671
    %v4004 = vunpack.c.l.b16 %v3672
    %v4005 = vunpack.c.h.b16 %v3672
    %v4006 = vunpack.c.l.b16 %v3673
    %v4007 = vunpack.c.h.b16 %v3673
    %v4008 = vunpack.c.l.b16 %v3674
    %v4009 = vunpack.c.h.b16 %v3674
    %v4010 = vunpack.c.l.b16 %v3675
    %v4011 = vunpack.c.h.b16 %v3675
    %v4012 = vunpack.c.l.b16 %v3676
    %v4013 = vunpack.c.h.b16 %v3676
    %v4014 = vunpack.c.l.b16 %v3677
    %v4015 = vunpack.c.h.b16 %v3677
    %v4016 = vunpack.c.l.b16 %v3678
    %v4017 = vunpack.c.h.b16 %v3678
    %v4018 = vunpack.c.l.b16 %v3679
    %v4019 = vunpack.c.h.b16 %v3679
    %v4020 = vunpack.c.l.b16 %v3680
    %v4021 = vunpack.c.h.b16 %v3680
    %v4022 = vunpack.c.l.b16 %v3681
    %v4023 = vunpack.c.h.b16 %v3681
    %v4024 = vunpack.c.l.b16 %v3682
    %v4025 = vunpack.c.h.b16 %v3682
    %v4026 = vunpack.c.l.b16 %v3683
    %v4027 = vunpack.c.h.b16 %v3683
    %v4028 = vunpack.c.l.b16 %v3684
    %v4029 = vunpack.c.h.b16 %v3684
    %v4030 = vunpack.c.l.b16 %v3685
    %v4031 = vunpack.c.h.b16 %v3685
    %v4032 = vunpack.c.l.b16 %v3686
    %v4033 = vunpack.c.h.b16 %v3686
    %v4034 = vunpack.c.l.b16 %v3687
    %v4035 = vunpack.c.h.b16 %v3687
    %v4036 = vunpack.c.l.b16 %v3688
    %v4037 = vunpack.c.h.b16 %v3688
    %v4038 = vunpack.c.l.b16 %v3689
    %v4039 = vunpack.c.h.b16 %v3689
    %v4040 = vunpack.c.l.b16 %v3690
    %v4041 = vunpack.c.h.b16 %v3690
    %v4042 = vunpack.c.l.b16 %v3691
    %v4043 = vunpack.c.h.b16 %v3691
    %v4044 = vpack.c.b16 %v3982, %v3980
    %v4045 = vpack.c.b16 %v3983, %v3981
    %v4046 = vpack.c.b16 %v3986, %v3984
    %v4047 = vpack.c.b16 %v3987, %v3985
    %v4048 = vpack.c.b16 %v3990, %v3988
    %v4049 = vpack.c.b16 %v3991, %v3989
    %v4050 = vpack.c.b16 %v3994, %v3992
    %v4051 = vpack.c.b16 %v3995, %v3993
    %v4052 = vpack.c.b16 %v3998, %v3996
    %v4053 = vpack.c.b16 %v3999, %v3997
    %v4054 = vpack.c.b16 %v4002, %v4000
    %v4055 = vpack.c.b16 %v4003, %v4001
    %v4056 = vpack.c.b16 %v4006, %v4004
    %v4057 = vpack.c.b16 %v4007, %v4005
    %v4058 = vpack.c.b16 %v4010, %v4008
    %v4059 = vpack.c.b16 %v4011, %v4009
    %v4060 = vpack.c.b16 %v4014, %v4012
    %v4061 = vpack.c.b16 %v4015, %v4013
    %v4062 = vpack.c.b16 %v4018, %v4016
    %v4063 = vpack.c.b16 %v4019, %v4017
    %v4064 = vpack.c.b16 %v4022, %v4020
    %v4065 = vpack.c.b16 %v4023, %v4021
    %v4066 = vpack.c.b16 %v4026, %v4024
    %v4067 = vpack.c.b16 %v4027, %v4025
    %v4068 = vpack.c.b16 %v4030, %v4028
    %v4069 = vpack.c.b16 %v4031, %v4029
    %v4070 = vpack.c.b16 %v4034, %v4032
    %v4071 = vpack.c.b16 %v4035, %v4033
    %v4072 = vpack.c.b16 %v4038, %v4036
    %v4073 = vpack.c.b16 %v4039, %v4037
    %v4074 = vpack.c.b16 %v4042, %v4040
    %v4075 = vpack.c.b16 %v4043, %v4041
    %4108 = vmatprep.subr.bf16.mxu0 %v4059
    %4109 = vmatpush1.bf16.msra.mxu0 %v4058
    %4110 = vmatprep.subr.bf16.mxu0 %v4057
    %4111 = vmatpush1.bf16.msra.mxu0 %v4056
    %4112 = vmatprep.subr.bf16.mxu0 %v4055
    %4113 = vmatpush1.bf16.msra.mxu0 %v4054
    %4114 = vmatprep.subr.bf16.mxu0 %v4053
    %4115 = vmatpush1.bf16.msra.mxu0 %v4052
    %4116 = vmatprep.subr.bf16.mxu0 %v4051
    %4117 = vmatpush1.bf16.msra.mxu0 %v4050
    %4118 = vmatprep.subr.bf16.mxu0 %v4049
    %4119 = vmatpush1.bf16.msra.mxu0 %v4048
    %4120 = vmatprep.subr.bf16.mxu0 %v4047
    %4121 = vmatpush1.bf16.msra.mxu0 %v4046
    %4122 = vmatprep.subr.bf16.mxu0 %v4045
    %4123 = vmatpush1.bf16.msra.mxu0 %v4044
    %4124 = vmatprep.subr.bf16.mxu0 %v4075
    %4125 = vmatpush2.bf16.msra.mxu0 %v4074
    %4126 = vmatprep.subr.bf16.mxu0 %v4073
    %4127 = vmatpush2.bf16.msra.mxu0 %v4072
    %4128 = vmatprep.subr.bf16.mxu0 %v4071
    %4129 = vmatpush2.bf16.msra.mxu0 %v4070
    %4130 = vmatprep.subr.bf16.mxu0 %v4069
    %4131 = vmatpush2.bf16.msra.mxu0 %v4068
    %4132 = vmatprep.subr.bf16.mxu0 %v4067
    %4133 = vmatpush2.bf16.msra.mxu0 %v4066
    %4134 = vmatprep.subr.bf16.mxu0 %v4065
    %4135 = vmatpush2.bf16.msra.mxu0 %v4064
    %4136 = vmatprep.subr.bf16.mxu0 %v4063
    %4137 = vmatpush2.bf16.msra.mxu0 %v4062
    %4138 = vmatprep.subr.bf16.mxu0 %v4061
    %4139 = vmatpush2.bf16.msra.mxu0 %v4060
    %4140 = vmatprep.mubr.bf16.mxu0 %v3658
    %4141 = vmatmul.mubr.bf16.gmra.mxu0 %v3657
    %v4142 = vpop.f32.mrf.mxu0
    %v4143 = vadd.f32 %v3942, %v4142
    %v4144 = vpop.f32.mrf.mxu0
    %v4145 = vadd.f32 %v3944, %v4144
    %v4146 = vpop.f32.mrf.mxu0
    %v4147 = vpop.f32.mrf.mxu0
    %4148 = vdwg.mxu0
    %v4149 = vld [vmem:[#allocation3] sm:$0xfc]
    %v4150 = vld [vmem:[#allocation3 + $0x8] sm:$0xfc]
    %v4151 = vld [vmem:[#allocation3 + $0x10] sm:$0x3]
    %v4152 = vld [vmem:[#allocation3 + $0x18] sm:$0x3]
    %v4153 = vpack.c.bf16 %v4151, %v4149
    %v4154 = vpack.c.bf16 %v4152, %v4150
    %s4155 = scalar_lea.vmem [#allocation9], 3840
    %v4156 = vld [vmem:[%s4155] sm:$0xff]
    %v4157 = vld [vmem:[%s4155 + $0x8] sm:$0xff]
    %v4158 = vld [vmem:[%s4155 + $0x10] sm:$0xff]
    %v4159 = vld [vmem:[%s4155 + $0x18] sm:$0xff]
    %v4160 = vld [vmem:[%s4155 + $0x20] sm:$0xff]
    %v4161 = vld [vmem:[%s4155 + $0x28] sm:$0xff]
    %v4162 = vld [vmem:[%s4155 + $0x30] sm:$0xff]
    %v4163 = vld [vmem:[%s4155 + $0x38] sm:$0xff]
    %v4164 = vld [vmem:[%s4155 + $0x40] sm:$0xff]
    %v4165 = vld [vmem:[%s4155 + $0x48] sm:$0xff]
    %v4166 = vld [vmem:[%s4155 + $0x50] sm:$0xff]
    %v4167 = vld [vmem:[%s4155 + $0x58] sm:$0xff]
    %v4168 = vld [vmem:[%s4155 + $0x60] sm:$0xff]
    %v4169 = vld [vmem:[%s4155 + $0x68] sm:$0xff]
    %v4170 = vld [vmem:[%s4155 + $0x70] sm:$0xff]
    %v4171 = vld [vmem:[%s4155 + $0x78] sm:$0xff]
    %v4172 = vld [vmem:[%s4155 + $0x80] sm:$0xff]
    %v4173 = vld [vmem:[%s4155 + $0x88] sm:$0xff]
    %v4174 = vld [vmem:[%s4155 + $0x90] sm:$0xff]
    %v4175 = vld [vmem:[%s4155 + $0x98] sm:$0xff]
    %v4176 = vld [vmem:[%s4155 + $0xa0] sm:$0xff]
    %v4177 = vld [vmem:[%s4155 + $0xa8] sm:$0xff]
    %v4178 = vld [vmem:[%s4155 + $0xb0] sm:$0xff]
    %v4179 = vld [vmem:[%s4155 + $0xb8] sm:$0xff]
    %v4180 = vld [vmem:[%s4155 + $0xc0] sm:$0xff]
    %v4181 = vld [vmem:[%s4155 + $0xc8] sm:$0xff]
    %v4182 = vld [vmem:[%s4155 + $0xd0] sm:$0xff]
    %v4183 = vld [vmem:[%s4155 + $0xd8] sm:$0xff]
    %v4184 = vld [vmem:[%s4155 + $0xe0] sm:$0xff]
    %v4185 = vld [vmem:[%s4155 + $0xe8] sm:$0xff]
    %v4186 = vld [vmem:[%s4155 + $0xf0] sm:$0xff]
    %v4187 = vld [vmem:[%s4155 + $0xf8] sm:$0xff]
    %v4190 = vrot.slane %v4153, 1
    %v4191 = vrot.slane %v4154, 1
    %v4226 = vunpack.c.l.b16 %v4156
    %v4227 = vunpack.c.h.b16 %v4156
    %v4228 = vunpack.c.l.b16 %v4157
    %v4229 = vunpack.c.h.b16 %v4157
    %v4230 = vunpack.c.l.b16 %v4158
    %v4231 = vunpack.c.h.b16 %v4158
    %v4232 = vunpack.c.l.b16 %v4159
    %v4233 = vunpack.c.h.b16 %v4159
    %v4234 = vunpack.c.l.b16 %v4160
    %v4235 = vunpack.c.h.b16 %v4160
    %v4236 = vunpack.c.l.b16 %v4161
    %v4237 = vunpack.c.h.b16 %v4161
    %v4238 = vunpack.c.l.b16 %v4162
    %v4239 = vunpack.c.h.b16 %v4162
    %v4240 = vunpack.c.l.b16 %v4163
    %v4241 = vunpack.c.h.b16 %v4163
    %v4242 = vunpack.c.l.b16 %v4164
    %v4243 = vunpack.c.h.b16 %v4164
    %v4244 = vunpack.c.l.b16 %v4165
    %v4245 = vunpack.c.h.b16 %v4165
    %v4246 = vunpack.c.l.b16 %v4166
    %v4247 = vunpack.c.h.b16 %v4166
    %v4248 = vunpack.c.l.b16 %v4167
    %v4249 = vunpack.c.h.b16 %v4167
    %v4250 = vunpack.c.l.b16 %v4168
    %v4251 = vunpack.c.h.b16 %v4168
    %v4252 = vunpack.c.l.b16 %v4169
    %v4253 = vunpack.c.h.b16 %v4169
    %v4254 = vunpack.c.l.b16 %v4170
    %v4255 = vunpack.c.h.b16 %v4170
    %v4256 = vunpack.c.l.b16 %v4171
    %v4257 = vunpack.c.h.b16 %v4171
    %v4258 = vunpack.c.l.b16 %v4172
    %v4259 = vunpack.c.h.b16 %v4172
    %v4260 = vunpack.c.l.b16 %v4173
    %v4261 = vunpack.c.h.b16 %v4173
    %v4262 = vunpack.c.l.b16 %v4174
    %v4263 = vunpack.c.h.b16 %v4174
    %v4264 = vunpack.c.l.b16 %v4175
    %v4265 = vunpack.c.h.b16 %v4175
    %v4266 = vunpack.c.l.b16 %v4176
    %v4267 = vunpack.c.h.b16 %v4176
    %v4268 = vunpack.c.l.b16 %v4177
    %v4269 = vunpack.c.h.b16 %v4177
    %v4270 = vunpack.c.l.b16 %v4178
    %v4271 = vunpack.c.h.b16 %v4178
    %v4272 = vunpack.c.l.b16 %v4179
    %v4273 = vunpack.c.h.b16 %v4179
    %v4274 = vunpack.c.l.b16 %v4180
    %v4275 = vunpack.c.h.b16 %v4180
    %v4276 = vunpack.c.l.b16 %v4181
    %v4277 = vunpack.c.h.b16 %v4181
    %v4278 = vunpack.c.l.b16 %v4182
    %v4279 = vunpack.c.h.b16 %v4182
    %v4280 = vunpack.c.l.b16 %v4183
    %v4281 = vunpack.c.h.b16 %v4183
    %v4282 = vunpack.c.l.b16 %v4184
    %v4283 = vunpack.c.h.b16 %v4184
    %v4284 = vunpack.c.l.b16 %v4185
    %v4285 = vunpack.c.h.b16 %v4185
    %v4286 = vunpack.c.l.b16 %v4186
    %v4287 = vunpack.c.h.b16 %v4186
    %v4288 = vunpack.c.l.b16 %v4187
    %v4289 = vunpack.c.h.b16 %v4187
    %v4290 = vpack.c.b16 %v4228, %v4226
    %v4291 = vpack.c.b16 %v4229, %v4227
    %v4292 = vpack.c.b16 %v4232, %v4230
    %v4293 = vpack.c.b16 %v4233, %v4231
    %v4294 = vpack.c.b16 %v4236, %v4234
    %v4295 = vpack.c.b16 %v4237, %v4235
    %v4296 = vpack.c.b16 %v4240, %v4238
    %v4297 = vpack.c.b16 %v4241, %v4239
    %v4298 = vpack.c.b16 %v4244, %v4242
    %v4299 = vpack.c.b16 %v4245, %v4243
    %v4300 = vpack.c.b16 %v4248, %v4246
    %v4301 = vpack.c.b16 %v4249, %v4247
    %v4302 = vpack.c.b16 %v4252, %v4250
    %v4303 = vpack.c.b16 %v4253, %v4251
    %v4304 = vpack.c.b16 %v4256, %v4254
    %v4305 = vpack.c.b16 %v4257, %v4255
    %v4306 = vpack.c.b16 %v4260, %v4258
    %v4307 = vpack.c.b16 %v4261, %v4259
    %v4308 = vpack.c.b16 %v4264, %v4262
    %v4309 = vpack.c.b16 %v4265, %v4263
    %v4310 = vpack.c.b16 %v4268, %v4266
    %v4311 = vpack.c.b16 %v4269, %v4267
    %v4312 = vpack.c.b16 %v4272, %v4270
    %v4313 = vpack.c.b16 %v4273, %v4271
    %v4314 = vpack.c.b16 %v4276, %v4274
    %v4315 = vpack.c.b16 %v4277, %v4275
    %v4316 = vpack.c.b16 %v4280, %v4278
    %v4317 = vpack.c.b16 %v4281, %v4279
    %v4318 = vpack.c.b16 %v4284, %v4282
    %v4319 = vpack.c.b16 %v4285, %v4283
    %v4320 = vpack.c.b16 %v4288, %v4286
    %v4321 = vpack.c.b16 %v4289, %v4287
    %4354 = vmatprep.subr.bf16.mxu0 %v4305
    %4355 = vmatpush1.bf16.msra.mxu0 %v4304
    %4356 = vmatprep.subr.bf16.mxu0 %v4303
    %4357 = vmatpush1.bf16.msra.mxu0 %v4302
    %4358 = vmatprep.subr.bf16.mxu0 %v4301
    %4359 = vmatpush1.bf16.msra.mxu0 %v4300
    %4360 = vmatprep.subr.bf16.mxu0 %v4299
    %4361 = vmatpush1.bf16.msra.mxu0 %v4298
    %4362 = vmatprep.subr.bf16.mxu0 %v4297
    %4363 = vmatpush1.bf16.msra.mxu0 %v4296
    %4364 = vmatprep.subr.bf16.mxu0 %v4295
    %4365 = vmatpush1.bf16.msra.mxu0 %v4294
    %4366 = vmatprep.subr.bf16.mxu0 %v4293
    %4367 = vmatpush1.bf16.msra.mxu0 %v4292
    %4368 = vmatprep.subr.bf16.mxu0 %v4291
    %4369 = vmatpush1.bf16.msra.mxu0 %v4290
    %4370 = vmatprep.subr.bf16.mxu0 %v4321
    %4371 = vmatpush2.bf16.msra.mxu0 %v4320
    %4372 = vmatprep.subr.bf16.mxu0 %v4319
    %4373 = vmatpush2.bf16.msra.mxu0 %v4318
    %4374 = vmatprep.subr.bf16.mxu0 %v4317
    %4375 = vmatpush2.bf16.msra.mxu0 %v4316
    %4376 = vmatprep.subr.bf16.mxu0 %v4315
    %4377 = vmatpush2.bf16.msra.mxu0 %v4314
    %4378 = vmatprep.subr.bf16.mxu0 %v4313
    %4379 = vmatpush2.bf16.msra.mxu0 %v4312
    %4380 = vmatprep.subr.bf16.mxu0 %v4311
    %4381 = vmatpush2.bf16.msra.mxu0 %v4310
    %4382 = vmatprep.subr.bf16.mxu0 %v4309
    %4383 = vmatpush2.bf16.msra.mxu0 %v4308
    %4384 = vmatprep.subr.bf16.mxu0 %v4307
    %4385 = vmatpush2.bf16.msra.mxu0 %v4306
    %4386 = vmatprep.mubr.bf16.mxu0 %v4191
    %4387 = vmatmul.mubr.bf16.gmra.mxu0 %v4190
    %v4388 = vpop.f32.mrf.mxu0
    %v4389 = vadd.f32 0.0, %v4388
    %v4390 = vpop.f32.mrf.mxu0
    %v4391 = vadd.f32 0.0, %v4390
    %v4392 = vpop.f32.mrf.mxu0
    %v4393 = vpop.f32.mrf.mxu0
    %4394 = vdwg.mxu0
    %v4395 = vadd.f32 %v4143, %v4389
    %v4396 = vadd.f32 %v4145, %v4391
    %v4397 = vld [vmem:[#allocation14 + $0xa] sm:$0x3]
    %v4399 = vlaneseq
    %v4400 = vshrl.u32 %v4399, 7
    %v4401 = vsub.s32 0, %v4400
    %v4402 = vrot.slane %v4397, %v4401
    %v4403 = vlaneseq
    %v4404 = vshrl.u32 %v4403, 7
    %v4405 = vsub.s32 1, %v4404
    %v4406 = vrot.slane %v4397, %v4405
    %v4409 = vadd.f32 %v4395, %v4402
    %v4410 = vadd.f32 %v4396, %v4406
    %v4411 = vadd.f32 %v4409, %v2875
    %v4412 = vadd.f32 %v4410, %v2876
    %v4413 = vmax.f32 %v4411, 0.0
    %v4414 = vmax.f32 %v4412, 0.0
    %v4417 = vrot.slane %v4413, 7
    %v4418 = vrot.slane %v4414, 7
    %4421 = vst [vmem:[#allocation4] sm:$0xfe] %v4417
    %4422 = vst [vmem:[#allocation4 + $0x8] sm:$0xfe] %v4418
    %4423 = vst [vmem:[#allocation4 + $0x10] sm:$0x1] %v4417
    %4424 = vst [vmem:[#allocation4 + $0x18] sm:$0x1] %v4418
    %v4425 = vld [vmem:[#allocation4] sm:$0xff]
    %v4426 = vld [vmem:[#allocation4 + $0x8] sm:$0xff]
    %v4427 = vld [vmem:[#allocation4 + $0x10] sm:$0x3]
    %v4428 = vld [vmem:[#allocation4 + $0x18] sm:$0x3]
    %v4429 = vpack.c.bf16 %v4427, %v4425
    %v4430 = vpack.c.bf16 %v4428, %v4426
    %s4431 = scalar_lea.vmem [#allocation7], 96
    %v4432 = vld [vmem:[%s4431] sm:$0xf]
    %vm4433 = vcmask 80896
    %v4435 = vsel %vm4433, %v4432, 0
    %vm4437 = vcmask 1044480
    %v4439 = vsel %vm4437, %v4429, 0
    %v4442 = vsel %vm4437, %v4430, 0
    %4444 = vmatprep.subr.bf16.mxu0 0
    %4445 = vmatpush1.bf16.msra.mxu0 0
    %4446 = vmatprep.subr.bf16.mxu0 0
    %4447 = vmatpush1.bf16.msra.mxu0 0
    %4448 = vmatprep.subr.bf16.mxu0 0
    %4449 = vmatpush1.bf16.msra.mxu0 0
    %4450 = vmatprep.subr.bf16.mxu0 0
    %4451 = vmatpush1.bf16.msra.mxu0 0
    %4452 = vmatprep.subr.bf16.mxu0 0
    %4453 = vmatpush1.bf16.msra.mxu0 0
    %4454 = vmatprep.subr.bf16.mxu0 0
    %4455 = vmatpush1.bf16.msra.mxu0 0
    %4456 = vmatprep.subr.bf16.mxu0 0
    %4457 = vmatpush1.bf16.msra.mxu0 0
    %4458 = vmatprep.subr.bf16.mxu0 %v4442
    %4459 = vmatpush1.bf16.msra.mxu0 %v4439
    %4460 = vmatprep.subr.bf16.mxu0 0
    %4461 = vmatpush2.bf16.msra.mxu0 0
    %4462 = vmatprep.subr.bf16.mxu0 0
    %4463 = vmatpush2.bf16.msra.mxu0 0
    %4464 = vmatprep.subr.bf16.mxu0 0
    %4465 = vmatpush2.bf16.msra.mxu0 0
    %4466 = vmatprep.subr.bf16.mxu0 0
    %4467 = vmatpush2.bf16.msra.mxu0 0
    %4468 = vmatprep.subr.bf16.mxu0 0
    %4469 = vmatpush2.bf16.msra.mxu0 0
    %4470 = vmatprep.subr.bf16.mxu0 0
    %4471 = vmatpush2.bf16.msra.mxu0 0
    %4472 = vmatprep.subr.bf16.mxu0 0
    %4473 = vmatpush2.bf16.msra.mxu0 0
    %4474 = vmatprep.subr.bf16.mxu0 0
    %4475 = vmatpush2.bf16.msra.mxu0 0
    %4476 = vmatprep.mubr.bf16.mxu0 0
    %4477 = vmatmul.mubr.bf16.gmra.mxu0 %v4435
    %v4478 = vpop.f32.mrf.mxu0
    %v4479 = vadd.f32 0.0, %v4478
    %v4480 = vpop.f32.mrf.mxu0
    %v4481 = vadd.f32 0.0, %v4480
    %v4482 = vpop.f32.mrf.mxu0
    %v4483 = vpop.f32.mrf.mxu0
    %4484 = vdwg.mxu0
    %v4485 = vpack.c.bf16 %v4479, %v4479
    %v4486 = vpack.c.bf16 %v4481, %v4481
    %s4487 = scalar_lea.vmem [#allocation11], 384
    %v4488 = vld [vmem:[%s4487] sm:$0xf]
    %v4489 = vld [vmem:[%s4487 + $0x4] sm:$0xf]
    %v4490 = vld [vmem:[%s4487 + $0x8] sm:$0xf]
    %v4491 = vld [vmem:[%s4487 + $0xc] sm:$0xf]
    %v4492 = vld [vmem:[%s4487 + $0x10] sm:$0xf]
    %v4493 = vld [vmem:[%s4487 + $0x14] sm:$0xf]
    %v4494 = vld [vmem:[%s4487 + $0x18] sm:$0xf]
    %v4495 = vld [vmem:[%s4487 + $0x1c] sm:$0xf]
    %v4496 = vld [vmem:[%s4487 + $0x20] sm:$0xf]
    %v4497 = vld [vmem:[%s4487 + $0x24] sm:$0xf]
    %v4498 = vld [vmem:[%s4487 + $0x28] sm:$0xf]
    %v4499 = vld [vmem:[%s4487 + $0x2c] sm:$0xf]
    %v4500 = vld [vmem:[%s4487 + $0x30] sm:$0xf]
    %v4501 = vld [vmem:[%s4487 + $0x34] sm:$0xf]
    %v4502 = vld [vmem:[%s4487 + $0x38] sm:$0xf]
    %v4503 = vld [vmem:[%s4487 + $0x3c] sm:$0xf]
    %v4504 = vld [vmem:[%s4487 + $0x40] sm:$0xf]
    %v4505 = vld [vmem:[%s4487 + $0x44] sm:$0xf]
    %v4506 = vld [vmem:[%s4487 + $0x48] sm:$0xf]
    %v4507 = vld [vmem:[%s4487 + $0x4c] sm:$0xf]
    %v4508 = vld [vmem:[%s4487 + $0x50] sm:$0xf]
    %v4509 = vld [vmem:[%s4487 + $0x54] sm:$0xf]
    %v4510 = vld [vmem:[%s4487 + $0x58] sm:$0xf]
    %v4511 = vld [vmem:[%s4487 + $0x5c] sm:$0xf]
    %v4512 = vld [vmem:[%s4487 + $0x60] sm:$0xf]
    %v4513 = vld [vmem:[%s4487 + $0x64] sm:$0xf]
    %v4514 = vld [vmem:[%s4487 + $0x68] sm:$0xf]
    %v4515 = vld [vmem:[%s4487 + $0x6c] sm:$0xf]
    %v4516 = vld [vmem:[%s4487 + $0x70] sm:$0xf]
    %v4517 = vld [vmem:[%s4487 + $0x74] sm:$0xf]
    %v4518 = vld [vmem:[%s4487 + $0x78] sm:$0xf]
    %v4519 = vld [vmem:[%s4487 + $0x7c] sm:$0xf]
    %v4520 = vld [vmem:[#allocation14 + $0xd] sm:$0x1]
    %v4522 = vlaneseq
    %v4523 = vshrl.u32 %v4522, 7
    %v4524 = vsub.s32 0, %v4523
    %v4525 = vrot.slane %v4520, %v4524
    %v4559 = vunpack.c.l.b16 %v4488
    %v4560 = vunpack.c.l.b16 %v4489
    %v4561 = vunpack.c.l.b16 %v4490
    %v4562 = vunpack.c.l.b16 %v4491
    %v4563 = vunpack.c.l.b16 %v4492
    %v4564 = vunpack.c.l.b16 %v4493
    %v4565 = vunpack.c.l.b16 %v4494
    %v4566 = vunpack.c.l.b16 %v4495
    %v4567 = vunpack.c.l.b16 %v4496
    %v4568 = vunpack.c.l.b16 %v4497
    %v4569 = vunpack.c.l.b16 %v4498
    %v4570 = vunpack.c.l.b16 %v4499
    %v4571 = vunpack.c.l.b16 %v4500
    %v4572 = vunpack.c.l.b16 %v4501
    %v4573 = vunpack.c.l.b16 %v4502
    %v4574 = vunpack.c.l.b16 %v4503
    %v4575 = vunpack.c.l.b16 %v4504
    %v4576 = vunpack.c.l.b16 %v4505
    %v4577 = vunpack.c.l.b16 %v4506
    %v4578 = vunpack.c.l.b16 %v4507
    %v4579 = vunpack.c.l.b16 %v4508
    %v4580 = vunpack.c.l.b16 %v4509
    %v4581 = vunpack.c.l.b16 %v4510
    %v4582 = vunpack.c.l.b16 %v4511
    %v4583 = vunpack.c.l.b16 %v4512
    %v4584 = vunpack.c.l.b16 %v4513
    %v4585 = vunpack.c.l.b16 %v4514
    %v4586 = vunpack.c.l.b16 %v4515
    %v4587 = vunpack.c.l.b16 %v4516
    %v4588 = vunpack.c.l.b16 %v4517
    %v4589 = vunpack.c.l.b16 %v4518
    %v4590 = vunpack.c.l.b16 %v4519
    %v4591 = vpack.c.b16 %v4560, %v4559
    %v4592 = vpack.c.b16 %v4562, %v4561
    %v4593 = vpack.c.b16 %v4564, %v4563
    %v4594 = vpack.c.b16 %v4566, %v4565
    %v4595 = vpack.c.b16 %v4568, %v4567
    %v4596 = vpack.c.b16 %v4570, %v4569
    %v4597 = vpack.c.b16 %v4572, %v4571
    %v4598 = vpack.c.b16 %v4574, %v4573
    %v4599 = vpack.c.b16 %v4576, %v4575
    %v4600 = vpack.c.b16 %v4578, %v4577
    %v4601 = vpack.c.b16 %v4580, %v4579
    %v4602 = vpack.c.b16 %v4582, %v4581
    %v4603 = vpack.c.b16 %v4584, %v4583
    %v4604 = vpack.c.b16 %v4586, %v4585
    %v4605 = vpack.c.b16 %v4588, %v4587
    %v4606 = vpack.c.b16 %v4590, %v4589
    %4623 = vmatprep.subr.bf16.mxu0 0
    %4624 = vmatpush1.bf16.msra.mxu0 %v4598
    %4625 = vmatprep.subr.bf16.mxu0 0
    %4626 = vmatpush1.bf16.msra.mxu0 %v4597
    %4627 = vmatprep.subr.bf16.mxu0 0
    %4628 = vmatpush1.bf16.msra.mxu0 %v4596
    %4629 = vmatprep.subr.bf16.mxu0 0
    %4630 = vmatpush1.bf16.msra.mxu0 %v4595
    %4631 = vmatprep.subr.bf16.mxu0 0
    %4632 = vmatpush1.bf16.msra.mxu0 %v4594
    %4633 = vmatprep.subr.bf16.mxu0 0
    %4634 = vmatpush1.bf16.msra.mxu0 %v4593
    %4635 = vmatprep.subr.bf16.mxu0 0
    %4636 = vmatpush1.bf16.msra.mxu0 %v4592
    %4637 = vmatprep.subr.bf16.mxu0 0
    %4638 = vmatpush1.bf16.msra.mxu0 %v4591
    %4639 = vmatprep.subr.bf16.mxu0 0
    %4640 = vmatpush2.bf16.msra.mxu0 %v4606
    %4641 = vmatprep.subr.bf16.mxu0 0
    %4642 = vmatpush2.bf16.msra.mxu0 %v4605
    %4643 = vmatprep.subr.bf16.mxu0 0
    %4644 = vmatpush2.bf16.msra.mxu0 %v4604
    %4645 = vmatprep.subr.bf16.mxu0 0
    %4646 = vmatpush2.bf16.msra.mxu0 %v4603
    %4647 = vmatprep.subr.bf16.mxu0 0
    %4648 = vmatpush2.bf16.msra.mxu0 %v4602
    %4649 = vmatprep.subr.bf16.mxu0 0
    %4650 = vmatpush2.bf16.msra.mxu0 %v4601
    %4651 = vmatprep.subr.bf16.mxu0 0
    %4652 = vmatpush2.bf16.msra.mxu0 %v4600
    %4653 = vmatprep.subr.bf16.mxu0 0
    %4654 = vmatpush2.bf16.msra.mxu0 %v4599
    %4655 = vmatprep.mubr.bf16.mxu0 %v4486
    %4656 = vmatmul.mubr.bf16.gmra.mxu0 %v4485
    %v4657 = vpop.f32.mrf.mxu0
    %v4658 = vadd.f32 %v4525, %v4657
    %v4659 = vpop.f32.mrf.mxu0
    %v4660 = vpop.f32.mrf.mxu0
    %v4661 = vpop.f32.mrf.mxu0
    %4662 = vdwg.mxu0
    %s4663 = scalar_lea.vmem [#allocation7], 72
    %v4664 = vld [vmem:[%s4663] sm:$0xf]
    %v4665 = vld [vmem:[%s4663 + $0x4] sm:$0xf]
    %v4668 = vunpack.c.l.b16 %v4664
    %v4669 = vunpack.c.l.b16 %v4665
    %v4670 = vpack.c.b16 %v4669, %v4668
    %v4672 = vsel %vm4433, %v4670, 0
    %4674 = vmatprep.subr.bf16.mxu0 0
    %4675 = vmatpush1.bf16.msra.mxu0 0
    %4676 = vmatprep.subr.bf16.mxu0 0
    %4677 = vmatpush1.bf16.msra.mxu0 0
    %4678 = vmatprep.subr.bf16.mxu0 0
    %4679 = vmatpush1.bf16.msra.mxu0 0
    %4680 = vmatprep.subr.bf16.mxu0 0
    %4681 = vmatpush1.bf16.msra.mxu0 0
    %4682 = vmatprep.subr.bf16.mxu0 0
    %4683 = vmatpush1.bf16.msra.mxu0 0
    %4684 = vmatprep.subr.bf16.mxu0 0
    %4685 = vmatpush1.bf16.msra.mxu0 0
    %4686 = vmatprep.subr.bf16.mxu0 0
    %4687 = vmatpush1.bf16.msra.mxu0 0
    %4688 = vmatprep.subr.bf16.mxu0 %v4442
    %4689 = vmatpush1.bf16.msra.mxu0 %v4439
    %4690 = vmatprep.subr.bf16.mxu0 0
    %4691 = vmatpush2.bf16.msra.mxu0 0
    %4692 = vmatprep.subr.bf16.mxu0 0
    %4693 = vmatpush2.bf16.msra.mxu0 0
    %4694 = vmatprep.subr.bf16.mxu0 0
    %4695 = vmatpush2.bf16.msra.mxu0 0
    %4696 = vmatprep.subr.bf16.mxu0 0
    %4697 = vmatpush2.bf16.msra.mxu0 0
    %4698 = vmatprep.subr.bf16.mxu0 0
    %4699 = vmatpush2.bf16.msra.mxu0 0
    %4700 = vmatprep.subr.bf16.mxu0 0
    %4701 = vmatpush2.bf16.msra.mxu0 0
    %4702 = vmatprep.subr.bf16.mxu0 0
    %4703 = vmatpush2.bf16.msra.mxu0 0
    %4704 = vmatprep.subr.bf16.mxu0 0
    %4705 = vmatpush2.bf16.msra.mxu0 0
    %4706 = vmatprep.mubr.bf16.mxu0 0
    %4707 = vmatmul.mubr.bf16.gmra.mxu0 %v4672
    %v4708 = vpop.f32.mrf.mxu0
    %v4709 = vadd.f32 0.0, %v4708
    %v4710 = vpop.f32.mrf.mxu0
    %v4711 = vadd.f32 0.0, %v4710
    %v4712 = vpop.f32.mrf.mxu0
    %v4713 = vadd.f32 0.0, %v4712
    %v4714 = vpop.f32.mrf.mxu0
    %v4715 = vadd.f32 0.0, %v4714
    %4716 = vdwg.mxu0
    %v4717 = vpack.c.bf16 %v4713, %v4709
    %v4718 = vpack.c.bf16 %v4715, %v4711
    %v4719 = vld [vmem:[#allocation11] sm:$0xf]
    %v4720 = vld [vmem:[#allocation11 + $0x4] sm:$0xf]
    %v4721 = vld [vmem:[#allocation11 + $0x8] sm:$0xf]
    %v4722 = vld [vmem:[#allocation11 + $0xc] sm:$0xf]
    %v4723 = vld [vmem:[#allocation11 + $0x10] sm:$0xf]
    %v4724 = vld [vmem:[#allocation11 + $0x14] sm:$0xf]
    %v4725 = vld [vmem:[#allocation11 + $0x18] sm:$0xf]
    %v4726 = vld [vmem:[#allocation11 + $0x1c] sm:$0xf]
    %v4727 = vld [vmem:[#allocation11 + $0x20] sm:$0xf]
    %v4728 = vld [vmem:[#allocation11 + $0x24] sm:$0xf]
    %v4729 = vld [vmem:[#allocation11 + $0x28] sm:$0xf]
    %v4730 = vld [vmem:[#allocation11 + $0x2c] sm:$0xf]
    %v4731 = vld [vmem:[#allocation11 + $0x30] sm:$0xf]
    %v4732 = vld [vmem:[#allocation11 + $0x34] sm:$0xf]
    %v4733 = vld [vmem:[#allocation11 + $0x38] sm:$0xf]
    %v4734 = vld [vmem:[#allocation11 + $0x3c] sm:$0xf]
    %v4735 = vld [vmem:[#allocation11 + $0x40] sm:$0xf]
    %v4736 = vld [vmem:[#allocation11 + $0x44] sm:$0xf]
    %v4737 = vld [vmem:[#allocation11 + $0x48] sm:$0xf]
    %v4738 = vld [vmem:[#allocation11 + $0x4c] sm:$0xf]
    %v4739 = vld [vmem:[#allocation11 + $0x50] sm:$0xf]
    %v4740 = vld [vmem:[#allocation11 + $0x54] sm:$0xf]
    %v4741 = vld [vmem:[#allocation11 + $0x58] sm:$0xf]
    %v4742 = vld [vmem:[#allocation11 + $0x5c] sm:$0xf]
    %v4743 = vld [vmem:[#allocation11 + $0x60] sm:$0xf]
    %v4744 = vld [vmem:[#allocation11 + $0x64] sm:$0xf]
    %v4745 = vld [vmem:[#allocation11 + $0x68] sm:$0xf]
    %v4746 = vld [vmem:[#allocation11 + $0x6c] sm:$0xf]
    %v4747 = vld [vmem:[#allocation11 + $0x70] sm:$0xf]
    %v4748 = vld [vmem:[#allocation11 + $0x74] sm:$0xf]
    %v4749 = vld [vmem:[#allocation11 + $0x78] sm:$0xf]
    %v4750 = vld [vmem:[#allocation11 + $0x7c] sm:$0xf]
    %s4751 = scalar_lea.vmem [#allocation11], 128
    %v4752 = vld [vmem:[%s4751] sm:$0xf]
    %v4753 = vld [vmem:[%s4751 + $0x4] sm:$0xf]
    %v4754 = vld [vmem:[%s4751 + $0x8] sm:$0xf]
    %v4755 = vld [vmem:[%s4751 + $0xc] sm:$0xf]
    %v4756 = vld [vmem:[%s4751 + $0x10] sm:$0xf]
    %v4757 = vld [vmem:[%s4751 + $0x14] sm:$0xf]
    %v4758 = vld [vmem:[%s4751 + $0x18] sm:$0xf]
    %v4759 = vld [vmem:[%s4751 + $0x1c] sm:$0xf]
    %v4760 = vld [vmem:[%s4751 + $0x20] sm:$0xf]
    %v4761 = vld [vmem:[%s4751 + $0x24] sm:$0xf]
    %v4762 = vld [vmem:[%s4751 + $0x28] sm:$0xf]
    %v4763 = vld [vmem:[%s4751 + $0x2c] sm:$0xf]
    %v4764 = vld [vmem:[%s4751 + $0x30] sm:$0xf]
    %v4765 = vld [vmem:[%s4751 + $0x34] sm:$0xf]
    %v4766 = vld [vmem:[%s4751 + $0x38] sm:$0xf]
    %v4767 = vld [vmem:[%s4751 + $0x3c] sm:$0xf]
    %v4768 = vld [vmem:[%s4751 + $0x40] sm:$0xf]
    %v4769 = vld [vmem:[%s4751 + $0x44] sm:$0xf]
    %v4770 = vld [vmem:[%s4751 + $0x48] sm:$0xf]
    %v4771 = vld [vmem:[%s4751 + $0x4c] sm:$0xf]
    %v4772 = vld [vmem:[%s4751 + $0x50] sm:$0xf]
    %v4773 = vld [vmem:[%s4751 + $0x54] sm:$0xf]
    %v4774 = vld [vmem:[%s4751 + $0x58] sm:$0xf]
    %v4775 = vld [vmem:[%s4751 + $0x5c] sm:$0xf]
    %v4776 = vld [vmem:[%s4751 + $0x60] sm:$0xf]
    %v4777 = vld [vmem:[%s4751 + $0x64] sm:$0xf]
    %v4778 = vld [vmem:[%s4751 + $0x68] sm:$0xf]
    %v4779 = vld [vmem:[%s4751 + $0x6c] sm:$0xf]
    %v4780 = vld [vmem:[%s4751 + $0x70] sm:$0xf]
    %v4781 = vld [vmem:[%s4751 + $0x74] sm:$0xf]
    %v4782 = vld [vmem:[%s4751 + $0x78] sm:$0xf]
    %v4783 = vld [vmem:[%s4751 + $0x7c] sm:$0xf]
    %v4786 = vrot.slane %v4717, 2
    %v4787 = vrot.slane %v4718, 2
    %v4822 = vunpack.c.l.b16 %v4752
    %v4823 = vunpack.c.l.b16 %v4753
    %v4824 = vunpack.c.l.b16 %v4754
    %v4825 = vunpack.c.l.b16 %v4755
    %v4826 = vunpack.c.l.b16 %v4756
    %v4827 = vunpack.c.l.b16 %v4757
    %v4828 = vunpack.c.l.b16 %v4758
    %v4829 = vunpack.c.l.b16 %v4759
    %v4830 = vunpack.c.l.b16 %v4760
    %v4831 = vunpack.c.l.b16 %v4761
    %v4832 = vunpack.c.l.b16 %v4762
    %v4833 = vunpack.c.l.b16 %v4763
    %v4834 = vunpack.c.l.b16 %v4764
    %v4835 = vunpack.c.l.b16 %v4765
    %v4836 = vunpack.c.l.b16 %v4766
    %v4837 = vunpack.c.l.b16 %v4767
    %v4838 = vunpack.c.l.b16 %v4768
    %v4839 = vunpack.c.l.b16 %v4769
    %v4840 = vunpack.c.l.b16 %v4770
    %v4841 = vunpack.c.l.b16 %v4771
    %v4842 = vunpack.c.l.b16 %v4772
    %v4843 = vunpack.c.l.b16 %v4773
    %v4844 = vunpack.c.l.b16 %v4774
    %v4845 = vunpack.c.l.b16 %v4775
    %v4846 = vunpack.c.l.b16 %v4776
    %v4847 = vunpack.c.l.b16 %v4777
    %v4848 = vunpack.c.l.b16 %v4778
    %v4849 = vunpack.c.l.b16 %v4779
    %v4850 = vunpack.c.l.b16 %v4780
    %v4851 = vunpack.c.l.b16 %v4781
    %v4852 = vunpack.c.l.b16 %v4782
    %v4853 = vunpack.c.l.b16 %v4783
    %v4854 = vpack.c.b16 %v4823, %v4822
    %v4855 = vpack.c.b16 %v4825, %v4824
    %v4856 = vpack.c.b16 %v4827, %v4826
    %v4857 = vpack.c.b16 %v4829, %v4828
    %v4858 = vpack.c.b16 %v4831, %v4830
    %v4859 = vpack.c.b16 %v4833, %v4832
    %v4860 = vpack.c.b16 %v4835, %v4834
    %v4861 = vpack.c.b16 %v4837, %v4836
    %v4862 = vpack.c.b16 %v4839, %v4838
    %v4863 = vpack.c.b16 %v4841, %v4840
    %v4864 = vpack.c.b16 %v4843, %v4842
    %v4865 = vpack.c.b16 %v4845, %v4844
    %v4866 = vpack.c.b16 %v4847, %v4846
    %v4867 = vpack.c.b16 %v4849, %v4848
    %v4868 = vpack.c.b16 %v4851, %v4850
    %v4869 = vpack.c.b16 %v4853, %v4852
    %4886 = vmatprep.subr.bf16.mxu0 0
    %4887 = vmatpush1.bf16.msra.mxu0 %v4861
    %4888 = vmatprep.subr.bf16.mxu0 0
    %4889 = vmatpush1.bf16.msra.mxu0 %v4860
    %4890 = vmatprep.subr.bf16.mxu0 0
    %4891 = vmatpush1.bf16.msra.mxu0 %v4859
    %4892 = vmatprep.subr.bf16.mxu0 0
    %4893 = vmatpush1.bf16.msra.mxu0 %v4858
    %4894 = vmatprep.subr.bf16.mxu0 0
    %4895 = vmatpush1.bf16.msra.mxu0 %v4857
    %4896 = vmatprep.subr.bf16.mxu0 0
    %4897 = vmatpush1.bf16.msra.mxu0 %v4856
    %4898 = vmatprep.subr.bf16.mxu0 0
    %4899 = vmatpush1.bf16.msra.mxu0 %v4855
    %4900 = vmatprep.subr.bf16.mxu0 0
    %4901 = vmatpush1.bf16.msra.mxu0 %v4854
    %4902 = vmatprep.subr.bf16.mxu0 0
    %4903 = vmatpush2.bf16.msra.mxu0 %v4869
    %4904 = vmatprep.subr.bf16.mxu0 0
    %4905 = vmatpush2.bf16.msra.mxu0 %v4868
    %4906 = vmatprep.subr.bf16.mxu0 0
    %4907 = vmatpush2.bf16.msra.mxu0 %v4867
    %4908 = vmatprep.subr.bf16.mxu0 0
    %4909 = vmatpush2.bf16.msra.mxu0 %v4866
    %4910 = vmatprep.subr.bf16.mxu0 0
    %4911 = vmatpush2.bf16.msra.mxu0 %v4865
    %4912 = vmatprep.subr.bf16.mxu0 0
    %4913 = vmatpush2.bf16.msra.mxu0 %v4864
    %4914 = vmatprep.subr.bf16.mxu0 0
    %4915 = vmatpush2.bf16.msra.mxu0 %v4863
    %4916 = vmatprep.subr.bf16.mxu0 0
    %4917 = vmatpush2.bf16.msra.mxu0 %v4862
    %4918 = vmatprep.mubr.bf16.mxu0 %v4787
    %4919 = vmatmul.mubr.bf16.gmra.mxu0 %v4786
    %v4920 = vpop.f32.mrf.mxu0
    %v4921 = vadd.f32 0.0, %v4920
    %v4922 = vpop.f32.mrf.mxu0
    %v4923 = vpop.f32.mrf.mxu0
    %v4924 = vpop.f32.mrf.mxu0
    %4925 = vdwg.mxu0
    %v4958 = vunpack.c.l.b16 %v4719
    %v4959 = vunpack.c.l.b16 %v4720
    %v4960 = vunpack.c.l.b16 %v4721
    %v4961 = vunpack.c.l.b16 %v4722
    %v4962 = vunpack.c.l.b16 %v4723
    %v4963 = vunpack.c.l.b16 %v4724
    %v4964 = vunpack.c.l.b16 %v4725
    %v4965 = vunpack.c.l.b16 %v4726
    %v4966 = vunpack.c.l.b16 %v4727
    %v4967 = vunpack.c.l.b16 %v4728
    %v4968 = vunpack.c.l.b16 %v4729
    %v4969 = vunpack.c.l.b16 %v4730
    %v4970 = vunpack.c.l.b16 %v4731
    %v4971 = vunpack.c.l.b16 %v4732
    %v4972 = vunpack.c.l.b16 %v4733
    %v4973 = vunpack.c.l.b16 %v4734
    %v4974 = vunpack.c.l.b16 %v4735
    %v4975 = vunpack.c.l.b16 %v4736
    %v4976 = vunpack.c.l.b16 %v4737
    %v4977 = vunpack.c.l.b16 %v4738
    %v4978 = vunpack.c.l.b16 %v4739
    %v4979 = vunpack.c.l.b16 %v4740
    %v4980 = vunpack.c.l.b16 %v4741
    %v4981 = vunpack.c.l.b16 %v4742
    %v4982 = vunpack.c.l.b16 %v4743
    %v4983 = vunpack.c.l.b16 %v4744
    %v4984 = vunpack.c.l.b16 %v4745
    %v4985 = vunpack.c.l.b16 %v4746
    %v4986 = vunpack.c.l.b16 %v4747
    %v4987 = vunpack.c.l.b16 %v4748
    %v4988 = vunpack.c.l.b16 %v4749
    %v4989 = vunpack.c.l.b16 %v4750
    %v4990 = vpack.c.b16 %v4959, %v4958
    %v4991 = vpack.c.b16 %v4961, %v4960
    %v4992 = vpack.c.b16 %v4963, %v4962
    %v4993 = vpack.c.b16 %v4965, %v4964
    %v4994 = vpack.c.b16 %v4967, %v4966
    %v4995 = vpack.c.b16 %v4969, %v4968
    %v4996 = vpack.c.b16 %v4971, %v4970
    %v4997 = vpack.c.b16 %v4973, %v4972
    %v4998 = vpack.c.b16 %v4975, %v4974
    %v4999 = vpack.c.b16 %v4977, %v4976
    %v5000 = vpack.c.b16 %v4979, %v4978
    %v5001 = vpack.c.b16 %v4981, %v4980
    %v5002 = vpack.c.b16 %v4983, %v4982
    %v5003 = vpack.c.b16 %v4985, %v4984
    %v5004 = vpack.c.b16 %v4987, %v4986
    %v5005 = vpack.c.b16 %v4989, %v4988
    %5022 = vmatprep.subr.bf16.mxu0 0
    %5023 = vmatpush1.bf16.msra.mxu0 %v4997
    %5024 = vmatprep.subr.bf16.mxu0 0
    %5025 = vmatpush1.bf16.msra.mxu0 %v4996
    %5026 = vmatprep.subr.bf16.mxu0 0
    %5027 = vmatpush1.bf16.msra.mxu0 %v4995
    %5028 = vmatprep.subr.bf16.mxu0 0
    %5029 = vmatpush1.bf16.msra.mxu0 %v4994
    %5030 = vmatprep.subr.bf16.mxu0 0
    %5031 = vmatpush1.bf16.msra.mxu0 %v4993
    %5032 = vmatprep.subr.bf16.mxu0 0
    %5033 = vmatpush1.bf16.msra.mxu0 %v4992
    %5034 = vmatprep.subr.bf16.mxu0 0
    %5035 = vmatpush1.bf16.msra.mxu0 %v4991
    %5036 = vmatprep.subr.bf16.mxu0 0
    %5037 = vmatpush1.bf16.msra.mxu0 %v4990
    %5038 = vmatprep.subr.bf16.mxu0 0
    %5039 = vmatpush2.bf16.msra.mxu0 %v5005
    %5040 = vmatprep.subr.bf16.mxu0 0
    %5041 = vmatpush2.bf16.msra.mxu0 %v5004
    %5042 = vmatprep.subr.bf16.mxu0 0
    %5043 = vmatpush2.bf16.msra.mxu0 %v5003
    %5044 = vmatprep.subr.bf16.mxu0 0
    %5045 = vmatpush2.bf16.msra.mxu0 %v5002
    %5046 = vmatprep.subr.bf16.mxu0 0
    %5047 = vmatpush2.bf16.msra.mxu0 %v5001
    %5048 = vmatprep.subr.bf16.mxu0 0
    %5049 = vmatpush2.bf16.msra.mxu0 %v5000
    %5050 = vmatprep.subr.bf16.mxu0 0
    %5051 = vmatpush2.bf16.msra.mxu0 %v4999
    %5052 = vmatprep.subr.bf16.mxu0 0
    %5053 = vmatpush2.bf16.msra.mxu0 %v4998
    %5054 = vmatprep.mubr.bf16.mxu0 %v4718
    %5055 = vmatmul.mubr.bf16.gmra.mxu0 %v4717
    %v5056 = vpop.f32.mrf.mxu0
    %v5057 = vadd.f32 %v4921, %v5056
    %v5058 = vpop.f32.mrf.mxu0
    %v5059 = vpop.f32.mrf.mxu0
    %v5060 = vpop.f32.mrf.mxu0
    %5061 = vdwg.mxu0
    %s5062 = scalar_lea.vmem [#allocation11], 256
    %v5063 = vld [vmem:[%s5062] sm:$0xf]
    %v5064 = vld [vmem:[%s5062 + $0x4] sm:$0xf]
    %v5065 = vld [vmem:[%s5062 + $0x8] sm:$0xf]
    %v5066 = vld [vmem:[%s5062 + $0xc] sm:$0xf]
    %v5067 = vld [vmem:[%s5062 + $0x10] sm:$0xf]
    %v5068 = vld [vmem:[%s5062 + $0x14] sm:$0xf]
    %v5069 = vld [vmem:[%s5062 + $0x18] sm:$0xf]
    %v5070 = vld [vmem:[%s5062 + $0x1c] sm:$0xf]
    %v5071 = vld [vmem:[%s5062 + $0x20] sm:$0xf]
    %v5072 = vld [vmem:[%s5062 + $0x24] sm:$0xf]
    %v5073 = vld [vmem:[%s5062 + $0x28] sm:$0xf]
    %v5074 = vld [vmem:[%s5062 + $0x2c] sm:$0xf]
    %v5075 = vld [vmem:[%s5062 + $0x30] sm:$0xf]
    %v5076 = vld [vmem:[%s5062 + $0x34] sm:$0xf]
    %v5077 = vld [vmem:[%s5062 + $0x38] sm:$0xf]
    %v5078 = vld [vmem:[%s5062 + $0x3c] sm:$0xf]
    %v5079 = vld [vmem:[%s5062 + $0x40] sm:$0xf]
    %v5080 = vld [vmem:[%s5062 + $0x44] sm:$0xf]
    %v5081 = vld [vmem:[%s5062 + $0x48] sm:$0xf]
    %v5082 = vld [vmem:[%s5062 + $0x4c] sm:$0xf]
    %v5083 = vld [vmem:[%s5062 + $0x50] sm:$0xf]
    %v5084 = vld [vmem:[%s5062 + $0x54] sm:$0xf]
    %v5085 = vld [vmem:[%s5062 + $0x58] sm:$0xf]
    %v5086 = vld [vmem:[%s5062 + $0x5c] sm:$0xf]
    %v5087 = vld [vmem:[%s5062 + $0x60] sm:$0xf]
    %v5088 = vld [vmem:[%s5062 + $0x64] sm:$0xf]
    %v5089 = vld [vmem:[%s5062 + $0x68] sm:$0xf]
    %v5090 = vld [vmem:[%s5062 + $0x6c] sm:$0xf]
    %v5091 = vld [vmem:[%s5062 + $0x70] sm:$0xf]
    %v5092 = vld [vmem:[%s5062 + $0x74] sm:$0xf]
    %v5093 = vld [vmem:[%s5062 + $0x78] sm:$0xf]
    %v5094 = vld [vmem:[%s5062 + $0x7c] sm:$0xf]
    %v5095 = vrot.slane %v4717, 4
    %v5096 = vrot.slane %v4718, 4
    %v5131 = vunpack.c.l.b16 %v5063
    %v5132 = vunpack.c.l.b16 %v5064
    %v5133 = vunpack.c.l.b16 %v5065
    %v5134 = vunpack.c.l.b16 %v5066
    %v5135 = vunpack.c.l.b16 %v5067
    %v5136 = vunpack.c.l.b16 %v5068
    %v5137 = vunpack.c.l.b16 %v5069
    %v5138 = vunpack.c.l.b16 %v5070
    %v5139 = vunpack.c.l.b16 %v5071
    %v5140 = vunpack.c.l.b16 %v5072
    %v5141 = vunpack.c.l.b16 %v5073
    %v5142 = vunpack.c.l.b16 %v5074
    %v5143 = vunpack.c.l.b16 %v5075
    %v5144 = vunpack.c.l.b16 %v5076
    %v5145 = vunpack.c.l.b16 %v5077
    %v5146 = vunpack.c.l.b16 %v5078
    %v5147 = vunpack.c.l.b16 %v5079
    %v5148 = vunpack.c.l.b16 %v5080
    %v5149 = vunpack.c.l.b16 %v5081
    %v5150 = vunpack.c.l.b16 %v5082
    %v5151 = vunpack.c.l.b16 %v5083
    %v5152 = vunpack.c.l.b16 %v5084
    %v5153 = vunpack.c.l.b16 %v5085
    %v5154 = vunpack.c.l.b16 %v5086
    %v5155 = vunpack.c.l.b16 %v5087
    %v5156 = vunpack.c.l.b16 %v5088
    %v5157 = vunpack.c.l.b16 %v5089
    %v5158 = vunpack.c.l.b16 %v5090
    %v5159 = vunpack.c.l.b16 %v5091
    %v5160 = vunpack.c.l.b16 %v5092
    %v5161 = vunpack.c.l.b16 %v5093
    %v5162 = vunpack.c.l.b16 %v5094
    %v5163 = vpack.c.b16 %v5132, %v5131
    %v5164 = vpack.c.b16 %v5134, %v5133
    %v5165 = vpack.c.b16 %v5136, %v5135
    %v5166 = vpack.c.b16 %v5138, %v5137
    %v5167 = vpack.c.b16 %v5140, %v5139
    %v5168 = vpack.c.b16 %v5142, %v5141
    %v5169 = vpack.c.b16 %v5144, %v5143
    %v5170 = vpack.c.b16 %v5146, %v5145
    %v5171 = vpack.c.b16 %v5148, %v5147
    %v5172 = vpack.c.b16 %v5150, %v5149
    %v5173 = vpack.c.b16 %v5152, %v5151
    %v5174 = vpack.c.b16 %v5154, %v5153
    %v5175 = vpack.c.b16 %v5156, %v5155
    %v5176 = vpack.c.b16 %v5158, %v5157
    %v5177 = vpack.c.b16 %v5160, %v5159
    %v5178 = vpack.c.b16 %v5162, %v5161
    %5195 = vmatprep.subr.bf16.mxu0 0
    %5196 = vmatpush1.bf16.msra.mxu0 %v5170
    %5197 = vmatprep.subr.bf16.mxu0 0
    %5198 = vmatpush1.bf16.msra.mxu0 %v5169
    %5199 = vmatprep.subr.bf16.mxu0 0
    %5200 = vmatpush1.bf16.msra.mxu0 %v5168
    %5201 = vmatprep.subr.bf16.mxu0 0
    %5202 = vmatpush1.bf16.msra.mxu0 %v5167
    %5203 = vmatprep.subr.bf16.mxu0 0
    %5204 = vmatpush1.bf16.msra.mxu0 %v5166
    %5205 = vmatprep.subr.bf16.mxu0 0
    %5206 = vmatpush1.bf16.msra.mxu0 %v5165
    %5207 = vmatprep.subr.bf16.mxu0 0
    %5208 = vmatpush1.bf16.msra.mxu0 %v5164
    %5209 = vmatprep.subr.bf16.mxu0 0
    %5210 = vmatpush1.bf16.msra.mxu0 %v5163
    %5211 = vmatprep.subr.bf16.mxu0 0
    %5212 = vmatpush2.bf16.msra.mxu0 %v5178
    %5213 = vmatprep.subr.bf16.mxu0 0
    %5214 = vmatpush2.bf16.msra.mxu0 %v5177
    %5215 = vmatprep.subr.bf16.mxu0 0
    %5216 = vmatpush2.bf16.msra.mxu0 %v5176
    %5217 = vmatprep.subr.bf16.mxu0 0
    %5218 = vmatpush2.bf16.msra.mxu0 %v5175
    %5219 = vmatprep.subr.bf16.mxu0 0
    %5220 = vmatpush2.bf16.msra.mxu0 %v5174
    %5221 = vmatprep.subr.bf16.mxu0 0
    %5222 = vmatpush2.bf16.msra.mxu0 %v5173
    %5223 = vmatprep.subr.bf16.mxu0 0
    %5224 = vmatpush2.bf16.msra.mxu0 %v5172
    %5225 = vmatprep.subr.bf16.mxu0 0
    %5226 = vmatpush2.bf16.msra.mxu0 %v5171
    %5227 = vmatprep.mubr.bf16.mxu0 %v5096
    %5228 = vmatmul.mubr.bf16.gmra.mxu0 %v5095
    %v5229 = vpop.f32.mrf.mxu0
    %v5230 = vadd.f32 0.0, %v5229
    %v5231 = vpop.f32.mrf.mxu0
    %v5232 = vpop.f32.mrf.mxu0
    %v5233 = vpop.f32.mrf.mxu0
    %5234 = vdwg.mxu0
    %v5235 = vadd.f32 %v5057, %v5230
    %v5236 = vld [vmem:[#allocation14 + $0xc] sm:$0x1]
    %v5238 = vlaneseq
    %v5239 = vshrl.u32 %v5238, 7
    %v5240 = vsub.s32 0, %v5239
    %v5241 = vrot.slane %v5236, %v5240
    %v5243 = vadd.f32 %v5235, %v5241
    %v5244 = vmax.f32 %v5243, 0.0
    %5245 = vst [vmem:[#allocation5 + $0x1] sm:$0xf] %v5244
    %v5246 = vld [vmem:[#allocation5] sm:$0xf]
    %v5247 = vpack.c.bf16 %v5246, %v5246
    %v5248 = vld [vmem:[#allocation12] sm:$0xf]
    %v5249 = vld [vmem:[#allocation12 + $0x4] sm:$0xf]
    %v5250 = vld [vmem:[#allocation12 + $0x8] sm:$0xf]
    %v5251 = vld [vmem:[#allocation12 + $0xc] sm:$0xf]
    %v5252 = vld [vmem:[#allocation12 + $0x10] sm:$0xf]
    %v5253 = vld [vmem:[#allocation12 + $0x14] sm:$0xf]
    %v5254 = vld [vmem:[#allocation12 + $0x18] sm:$0xf]
    %v5255 = vld [vmem:[#allocation12 + $0x1c] sm:$0xf]
    %v5256 = vld [vmem:[#allocation12 + $0x20] sm:$0xf]
    %v5257 = vld [vmem:[#allocation12 + $0x24] sm:$0xf]
    %v5258 = vld [vmem:[#allocation12 + $0x28] sm:$0xf]
    %v5259 = vld [vmem:[#allocation12 + $0x2c] sm:$0xf]
    %v5260 = vld [vmem:[#allocation12 + $0x30] sm:$0xf]
    %v5261 = vld [vmem:[#allocation12 + $0x34] sm:$0xf]
    %v5262 = vld [vmem:[#allocation12 + $0x38] sm:$0xf]
    %v5263 = vld [vmem:[#allocation12 + $0x3c] sm:$0xf]
    %v5264 = vld [vmem:[#allocation5 + $0x1] sm:$0xf]
    %v5265 = vpack.c.bf16 %v5264, %v5264
    %s5266 = scalar_lea.vmem [#allocation12], 64
    %v5267 = vld [vmem:[%s5266] sm:$0xf]
    %v5268 = vld [vmem:[%s5266 + $0x4] sm:$0xf]
    %v5269 = vld [vmem:[%s5266 + $0x8] sm:$0xf]
    %v5270 = vld [vmem:[%s5266 + $0xc] sm:$0xf]
    %v5271 = vld [vmem:[%s5266 + $0x10] sm:$0xf]
    %v5272 = vld [vmem:[%s5266 + $0x14] sm:$0xf]
    %v5273 = vld [vmem:[%s5266 + $0x18] sm:$0xf]
    %v5274 = vld [vmem:[%s5266 + $0x1c] sm:$0xf]
    %v5275 = vld [vmem:[%s5266 + $0x20] sm:$0xf]
    %v5276 = vld [vmem:[%s5266 + $0x24] sm:$0xf]
    %v5277 = vld [vmem:[%s5266 + $0x28] sm:$0xf]
    %v5278 = vld [vmem:[%s5266 + $0x2c] sm:$0xf]
    %v5279 = vld [vmem:[%s5266 + $0x30] sm:$0xf]
    %v5280 = vld [vmem:[%s5266 + $0x34] sm:$0xf]
    %v5281 = vld [vmem:[%s5266 + $0x38] sm:$0xf]
    %v5282 = vld [vmem:[%s5266 + $0x3c] sm:$0xf]
    %v5299 = vunpack.c.l.b16 %v5267
    %v5300 = vunpack.c.l.b16 %v5268
    %v5301 = vunpack.c.l.b16 %v5269
    %v5302 = vunpack.c.l.b16 %v5270
    %v5303 = vunpack.c.l.b16 %v5271
    %v5304 = vunpack.c.l.b16 %v5272
    %v5305 = vunpack.c.l.b16 %v5273
    %v5306 = vunpack.c.l.b16 %v5274
    %v5307 = vunpack.c.l.b16 %v5275
    %v5308 = vunpack.c.l.b16 %v5276
    %v5309 = vunpack.c.l.b16 %v5277
    %v5310 = vunpack.c.l.b16 %v5278
    %v5311 = vunpack.c.l.b16 %v5279
    %v5312 = vunpack.c.l.b16 %v5280
    %v5313 = vunpack.c.l.b16 %v5281
    %v5314 = vunpack.c.l.b16 %v5282
    %v5315 = vpack.c.b16 %v5300, %v5299
    %v5316 = vpack.c.b16 %v5302, %v5301
    %v5317 = vpack.c.b16 %v5304, %v5303
    %v5318 = vpack.c.b16 %v5306, %v5305
    %v5319 = vpack.c.b16 %v5308, %v5307
    %v5320 = vpack.c.b16 %v5310, %v5309
    %v5321 = vpack.c.b16 %v5312, %v5311
    %v5322 = vpack.c.b16 %v5314, %v5313
    %5331 = vmatprep.subr.bf16.mxu0 0
    %5332 = vmatpush1.bf16.msra.mxu0 %v5322
    %5333 = vmatprep.subr.bf16.mxu0 0
    %5334 = vmatpush1.bf16.msra.mxu0 %v5321
    %5335 = vmatprep.subr.bf16.mxu0 0
    %5336 = vmatpush1.bf16.msra.mxu0 %v5320
    %5337 = vmatprep.subr.bf16.mxu0 0
    %5338 = vmatpush1.bf16.msra.mxu0 %v5319
    %5339 = vmatprep.subr.bf16.mxu0 0
    %5340 = vmatpush1.bf16.msra.mxu0 %v5318
    %5341 = vmatprep.subr.bf16.mxu0 0
    %5342 = vmatpush1.bf16.msra.mxu0 %v5317
    %5343 = vmatprep.subr.bf16.mxu0 0
    %5344 = vmatpush1.bf16.msra.mxu0 %v5316
    %5345 = vmatprep.subr.bf16.mxu0 0
    %5346 = vmatpush1.bf16.msra.mxu0 %v5315
    %5347 = vmatprep.subr.bf16.mxu0 0
    %5348 = vmatpush2.bf16.msra.mxu0 0
    %5349 = vmatprep.subr.bf16.mxu0 0
    %5350 = vmatpush2.bf16.msra.mxu0 0
    %5351 = vmatprep.subr.bf16.mxu0 0
    %5352 = vmatpush2.bf16.msra.mxu0 0
    %5353 = vmatprep.subr.bf16.mxu0 0
    %5354 = vmatpush2.bf16.msra.mxu0 0
    %5355 = vmatprep.subr.bf16.mxu0 0
    %5356 = vmatpush2.bf16.msra.mxu0 0
    %5357 = vmatprep.subr.bf16.mxu0 0
    %5358 = vmatpush2.bf16.msra.mxu0 0
    %5359 = vmatprep.subr.bf16.mxu0 0
    %5360 = vmatpush2.bf16.msra.mxu0 0
    %5361 = vmatprep.subr.bf16.mxu0 0
    %5362 = vmatpush2.bf16.msra.mxu0 0
    %5363 = vmatprep.mubr.bf16.mxu0 0
    %5364 = vmatmul.mubr.bf16.gmra.mxu0 %v5265
    %v5365 = vpop.f32.mrf.mxu0
    %v5366 = vadd.f32 0.0, %v5365
    %v5367 = vpop.f32.mrf.mxu0
    %v5368 = vpop.f32.mrf.mxu0
    %v5369 = vpop.f32.mrf.mxu0
    %5370 = vdwg.mxu0
    %v5387 = vunpack.c.l.b16 %v5248
    %v5388 = vunpack.c.l.b16 %v5249
    %v5389 = vunpack.c.l.b16 %v5250
    %v5390 = vunpack.c.l.b16 %v5251
    %v5391 = vunpack.c.l.b16 %v5252
    %v5392 = vunpack.c.l.b16 %v5253
    %v5393 = vunpack.c.l.b16 %v5254
    %v5394 = vunpack.c.l.b16 %v5255
    %v5395 = vunpack.c.l.b16 %v5256
    %v5396 = vunpack.c.l.b16 %v5257
    %v5397 = vunpack.c.l.b16 %v5258
    %v5398 = vunpack.c.l.b16 %v5259
    %v5399 = vunpack.c.l.b16 %v5260
    %v5400 = vunpack.c.l.b16 %v5261
    %v5401 = vunpack.c.l.b16 %v5262
    %v5402 = vunpack.c.l.b16 %v5263
    %v5403 = vpack.c.b16 %v5388, %v5387
    %v5404 = vpack.c.b16 %v5390, %v5389
    %v5405 = vpack.c.b16 %v5392, %v5391
    %v5406 = vpack.c.b16 %v5394, %v5393
    %v5407 = vpack.c.b16 %v5396, %v5395
    %v5408 = vpack.c.b16 %v5398, %v5397
    %v5409 = vpack.c.b16 %v5400, %v5399
    %v5410 = vpack.c.b16 %v5402, %v5401
    %5419 = vmatprep.subr.bf16.mxu0 0
    %5420 = vmatpush1.bf16.msra.mxu0 %v5410
    %5421 = vmatprep.subr.bf16.mxu0 0
    %5422 = vmatpush1.bf16.msra.mxu0 %v5409
    %5423 = vmatprep.subr.bf16.mxu0 0
    %5424 = vmatpush1.bf16.msra.mxu0 %v5408
    %5425 = vmatprep.subr.bf16.mxu0 0
    %5426 = vmatpush1.bf16.msra.mxu0 %v5407
    %5427 = vmatprep.subr.bf16.mxu0 0
    %5428 = vmatpush1.bf16.msra.mxu0 %v5406
    %5429 = vmatprep.subr.bf16.mxu0 0
    %5430 = vmatpush1.bf16.msra.mxu0 %v5405
    %5431 = vmatprep.subr.bf16.mxu0 0
    %5432 = vmatpush1.bf16.msra.mxu0 %v5404
    %5433 = vmatprep.subr.bf16.mxu0 0
    %5434 = vmatpush1.bf16.msra.mxu0 %v5403
    %5435 = vmatprep.subr.bf16.mxu0 0
    %5436 = vmatpush2.bf16.msra.mxu0 0
    %5437 = vmatprep.subr.bf16.mxu0 0
    %5438 = vmatpush2.bf16.msra.mxu0 0
    %5439 = vmatprep.subr.bf16.mxu0 0
    %5440 = vmatpush2.bf16.msra.mxu0 0
    %5441 = vmatprep.subr.bf16.mxu0 0
    %5442 = vmatpush2.bf16.msra.mxu0 0
    %5443 = vmatprep.subr.bf16.mxu0 0
    %5444 = vmatpush2.bf16.msra.mxu0 0
    %5445 = vmatprep.subr.bf16.mxu0 0
    %5446 = vmatpush2.bf16.msra.mxu0 0
    %5447 = vmatprep.subr.bf16.mxu0 0
    %5448 = vmatpush2.bf16.msra.mxu0 0
    %5449 = vmatprep.subr.bf16.mxu0 0
    %5450 = vmatpush2.bf16.msra.mxu0 0
    %5451 = vmatprep.mubr.bf16.mxu0 0
    %5452 = vmatmul.mubr.bf16.gmra.mxu0 %v5247
    %v5453 = vpop.f32.mrf.mxu0
    %v5454 = vadd.f32 %v5366, %v5453
    %v5455 = vpop.f32.mrf.mxu0
    %v5456 = vpop.f32.mrf.mxu0
    %v5457 = vpop.f32.mrf.mxu0
    %5458 = vdwg.mxu0
    %v5459 = vld [vmem:[#allocation5 + $0x2] sm:$0xf]
    %v5460 = vpack.c.bf16 %v5459, %v5459
    %s5461 = scalar_lea.vmem [#allocation12], 128
    %v5462 = vld [vmem:[%s5461] sm:$0xf]
    %v5463 = vld [vmem:[%s5461 + $0x4] sm:$0xf]
    %v5464 = vld [vmem:[%s5461 + $0x8] sm:$0xf]
    %v5465 = vld [vmem:[%s5461 + $0xc] sm:$0xf]
    %v5466 = vld [vmem:[%s5461 + $0x10] sm:$0xf]
    %v5467 = vld [vmem:[%s5461 + $0x14] sm:$0xf]
    %v5468 = vld [vmem:[%s5461 + $0x18] sm:$0xf]
    %v5469 = vld [vmem:[%s5461 + $0x1c] sm:$0xf]
    %v5470 = vld [vmem:[%s5461 + $0x20] sm:$0xf]
    %v5471 = vld [vmem:[%s5461 + $0x24] sm:$0xf]
    %v5472 = vld [vmem:[%s5461 + $0x28] sm:$0xf]
    %v5473 = vld [vmem:[%s5461 + $0x2c] sm:$0xf]
    %v5474 = vld [vmem:[%s5461 + $0x30] sm:$0xf]
    %v5475 = vld [vmem:[%s5461 + $0x34] sm:$0xf]
    %v5476 = vld [vmem:[%s5461 + $0x38] sm:$0xf]
    %v5477 = vld [vmem:[%s5461 + $0x3c] sm:$0xf]
    %v5494 = vunpack.c.l.b16 %v5462
    %v5495 = vunpack.c.l.b16 %v5463
    %v5496 = vunpack.c.l.b16 %v5464
    %v5497 = vunpack.c.l.b16 %v5465
    %v5498 = vunpack.c.l.b16 %v5466
    %v5499 = vunpack.c.l.b16 %v5467
    %v5500 = vunpack.c.l.b16 %v5468
    %v5501 = vunpack.c.l.b16 %v5469
    %v5502 = vunpack.c.l.b16 %v5470
    %v5503 = vunpack.c.l.b16 %v5471
    %v5504 = vunpack.c.l.b16 %v5472
    %v5505 = vunpack.c.l.b16 %v5473
    %v5506 = vunpack.c.l.b16 %v5474
    %v5507 = vunpack.c.l.b16 %v5475
    %v5508 = vunpack.c.l.b16 %v5476
    %v5509 = vunpack.c.l.b16 %v5477
    %v5510 = vpack.c.b16 %v5495, %v5494
    %v5511 = vpack.c.b16 %v5497, %v5496
    %v5512 = vpack.c.b16 %v5499, %v5498
    %v5513 = vpack.c.b16 %v5501, %v5500
    %v5514 = vpack.c.b16 %v5503, %v5502
    %v5515 = vpack.c.b16 %v5505, %v5504
    %v5516 = vpack.c.b16 %v5507, %v5506
    %v5517 = vpack.c.b16 %v5509, %v5508
    %5526 = vmatprep.subr.bf16.mxu0 0
    %5527 = vmatpush1.bf16.msra.mxu0 %v5517
    %5528 = vmatprep.subr.bf16.mxu0 0
    %5529 = vmatpush1.bf16.msra.mxu0 %v5516
    %5530 = vmatprep.subr.bf16.mxu0 0
    %5531 = vmatpush1.bf16.msra.mxu0 %v5515
    %5532 = vmatprep.subr.bf16.mxu0 0
    %5533 = vmatpush1.bf16.msra.mxu0 %v5514
    %5534 = vmatprep.subr.bf16.mxu0 0
    %5535 = vmatpush1.bf16.msra.mxu0 %v5513
    %5536 = vmatprep.subr.bf16.mxu0 0
    %5537 = vmatpush1.bf16.msra.mxu0 %v5512
    %5538 = vmatprep.subr.bf16.mxu0 0
    %5539 = vmatpush1.bf16.msra.mxu0 %v5511
    %5540 = vmatprep.subr.bf16.mxu0 0
    %5541 = vmatpush1.bf16.msra.mxu0 %v5510
    %5542 = vmatprep.subr.bf16.mxu0 0
    %5543 = vmatpush2.bf16.msra.mxu0 0
    %5544 = vmatprep.subr.bf16.mxu0 0
    %5545 = vmatpush2.bf16.msra.mxu0 0
    %5546 = vmatprep.subr.bf16.mxu0 0
    %5547 = vmatpush2.bf16.msra.mxu0 0
    %5548 = vmatprep.subr.bf16.mxu0 0
    %5549 = vmatpush2.bf16.msra.mxu0 0
    %5550 = vmatprep.subr.bf16.mxu0 0
    %5551 = vmatpush2.bf16.msra.mxu0 0
    %5552 = vmatprep.subr.bf16.mxu0 0
    %5553 = vmatpush2.bf16.msra.mxu0 0
    %5554 = vmatprep.subr.bf16.mxu0 0
    %5555 = vmatpush2.bf16.msra.mxu0 0
    %5556 = vmatprep.subr.bf16.mxu0 0
    %5557 = vmatpush2.bf16.msra.mxu0 0
    %5558 = vmatprep.mubr.bf16.mxu0 0
    %5559 = vmatmul.mubr.bf16.gmra.mxu0 %v5460
    %v5560 = vpop.f32.mrf.mxu0
    %v5561 = vadd.f32 0.0, %v5560
    %v5562 = vpop.f32.mrf.mxu0
    %v5563 = vpop.f32.mrf.mxu0
    %v5564 = vpop.f32.mrf.mxu0
    %5565 = vdwg.mxu0
    %v5566 = vadd.f32 %v5454, %v5561
    %v5567 = vld [vmem:[#allocation14 + $0xe] sm:$0x1]
    %v5569 = vlaneseq
    %v5570 = vshrl.u32 %v5569, 7
    %v5571 = vsub.s32 0, %v5570
    %v5572 = vrot.slane %v5567, %v5571
    %v5574 = vadd.f32 %v5566, %v5572
    %v5575 = vadd.f32 %v5574, %v4658
    %v5576 = vmax.f32 %v5575, 0.0
    %5577 = vst [vmem:[#allocation6 + $0x1] sm:$0xf] %v5576
    %v5578 = vld [vmem:[#allocation6] sm:$0xf]
    %v5579 = vpack.c.bf16 %v5578, %v5578
    %s5580 = scalar_lea.vmem [#allocation12], 192
    %v5581 = vld [vmem:[%s5580] sm:$0xf]
    %v5582 = vld [vmem:[%s5580 + $0x4] sm:$0xf]
    %v5583 = vld [vmem:[%s5580 + $0x8] sm:$0xf]
    %v5584 = vld [vmem:[%s5580 + $0xc] sm:$0xf]
    %v5585 = vld [vmem:[%s5580 + $0x10] sm:$0xf]
    %v5586 = vld [vmem:[%s5580 + $0x14] sm:$0xf]
    %v5587 = vld [vmem:[%s5580 + $0x18] sm:$0xf]
    %v5588 = vld [vmem:[%s5580 + $0x1c] sm:$0xf]
    %v5589 = vld [vmem:[%s5580 + $0x20] sm:$0xf]
    %v5590 = vld [vmem:[%s5580 + $0x24] sm:$0xf]
    %v5591 = vld [vmem:[%s5580 + $0x28] sm:$0xf]
    %v5592 = vld [vmem:[%s5580 + $0x2c] sm:$0xf]
    %v5593 = vld [vmem:[%s5580 + $0x30] sm:$0xf]
    %v5594 = vld [vmem:[%s5580 + $0x34] sm:$0xf]
    %v5595 = vld [vmem:[%s5580 + $0x38] sm:$0xf]
    %v5596 = vld [vmem:[%s5580 + $0x3c] sm:$0xf]
    %v5597 = vld [vmem:[#allocation6 + $0x1] sm:$0xf]
    %v5598 = vpack.c.bf16 %v5597, %v5597
    %s5599 = scalar_lea.vmem [#allocation12], 256
    %v5600 = vld [vmem:[%s5599] sm:$0xf]
    %v5601 = vld [vmem:[%s5599 + $0x4] sm:$0xf]
    %v5602 = vld [vmem:[%s5599 + $0x8] sm:$0xf]
    %v5603 = vld [vmem:[%s5599 + $0xc] sm:$0xf]
    %v5604 = vld [vmem:[%s5599 + $0x10] sm:$0xf]
    %v5605 = vld [vmem:[%s5599 + $0x14] sm:$0xf]
    %v5606 = vld [vmem:[%s5599 + $0x18] sm:$0xf]
    %v5607 = vld [vmem:[%s5599 + $0x1c] sm:$0xf]
    %v5608 = vld [vmem:[%s5599 + $0x20] sm:$0xf]
    %v5609 = vld [vmem:[%s5599 + $0x24] sm:$0xf]
    %v5610 = vld [vmem:[%s5599 + $0x28] sm:$0xf]
    %v5611 = vld [vmem:[%s5599 + $0x2c] sm:$0xf]
    %v5612 = vld [vmem:[%s5599 + $0x30] sm:$0xf]
    %v5613 = vld [vmem:[%s5599 + $0x34] sm:$0xf]
    %v5614 = vld [vmem:[%s5599 + $0x38] sm:$0xf]
    %v5615 = vld [vmem:[%s5599 + $0x3c] sm:$0xf]
    %v5632 = vunpack.c.l.b16 %v5600
    %v5633 = vunpack.c.l.b16 %v5601
    %v5634 = vunpack.c.l.b16 %v5602
    %v5635 = vunpack.c.l.b16 %v5603
    %v5636 = vunpack.c.l.b16 %v5604
    %v5637 = vunpack.c.l.b16 %v5605
    %v5638 = vunpack.c.l.b16 %v5606
    %v5639 = vunpack.c.l.b16 %v5607
    %v5640 = vunpack.c.l.b16 %v5608
    %v5641 = vunpack.c.l.b16 %v5609
    %v5642 = vunpack.c.l.b16 %v5610
    %v5643 = vunpack.c.l.b16 %v5611
    %v5644 = vunpack.c.l.b16 %v5612
    %v5645 = vunpack.c.l.b16 %v5613
    %v5646 = vunpack.c.l.b16 %v5614
    %v5647 = vunpack.c.l.b16 %v5615
    %v5648 = vpack.c.b16 %v5633, %v5632
    %v5649 = vpack.c.b16 %v5635, %v5634
    %v5650 = vpack.c.b16 %v5637, %v5636
    %v5651 = vpack.c.b16 %v5639, %v5638
    %v5652 = vpack.c.b16 %v5641, %v5640
    %v5653 = vpack.c.b16 %v5643, %v5642
    %v5654 = vpack.c.b16 %v5645, %v5644
    %v5655 = vpack.c.b16 %v5647, %v5646
    %5664 = vmatprep.subr.bf16.mxu0 0
    %5665 = vmatpush1.bf16.msra.mxu0 %v5655
    %5666 = vmatprep.subr.bf16.mxu0 0
    %5667 = vmatpush1.bf16.msra.mxu0 %v5654
    %5668 = vmatprep.subr.bf16.mxu0 0
    %5669 = vmatpush1.bf16.msra.mxu0 %v5653
    %5670 = vmatprep.subr.bf16.mxu0 0
    %5671 = vmatpush1.bf16.msra.mxu0 %v5652
    %5672 = vmatprep.subr.bf16.mxu0 0
    %5673 = vmatpush1.bf16.msra.mxu0 %v5651
    %5674 = vmatprep.subr.bf16.mxu0 0
    %5675 = vmatpush1.bf16.msra.mxu0 %v5650
    %5676 = vmatprep.subr.bf16.mxu0 0
    %5677 = vmatpush1.bf16.msra.mxu0 %v5649
    %5678 = vmatprep.subr.bf16.mxu0 0
    %5679 = vmatpush1.bf16.msra.mxu0 %v5648
    %5680 = vmatprep.subr.bf16.mxu0 0
    %5681 = vmatpush2.bf16.msra.mxu0 0
    %5682 = vmatprep.subr.bf16.mxu0 0
    %5683 = vmatpush2.bf16.msra.mxu0 0
    %5684 = vmatprep.subr.bf16.mxu0 0
    %5685 = vmatpush2.bf16.msra.mxu0 0
    %5686 = vmatprep.subr.bf16.mxu0 0
    %5687 = vmatpush2.bf16.msra.mxu0 0
    %5688 = vmatprep.subr.bf16.mxu0 0
    %5689 = vmatpush2.bf16.msra.mxu0 0
    %5690 = vmatprep.subr.bf16.mxu0 0
    %5691 = vmatpush2.bf16.msra.mxu0 0
    %5692 = vmatprep.subr.bf16.mxu0 0
    %5693 = vmatpush2.bf16.msra.mxu0 0
    %5694 = vmatprep.subr.bf16.mxu0 0
    %5695 = vmatpush2.bf16.msra.mxu0 0
    %5696 = vmatprep.mubr.bf16.mxu0 0
    %5697 = vmatmul.mubr.bf16.gmra.mxu0 %v5598
    %v5698 = vpop.f32.mrf.mxu0
    %v5699 = vadd.f32 0.0, %v5698
    %v5700 = vpop.f32.mrf.mxu0
    %v5701 = vpop.f32.mrf.mxu0
    %v5702 = vpop.f32.mrf.mxu0
    %5703 = vdwg.mxu0
    %v5720 = vunpack.c.l.b16 %v5581
    %v5721 = vunpack.c.l.b16 %v5582
    %v5722 = vunpack.c.l.b16 %v5583
    %v5723 = vunpack.c.l.b16 %v5584
    %v5724 = vunpack.c.l.b16 %v5585
    %v5725 = vunpack.c.l.b16 %v5586
    %v5726 = vunpack.c.l.b16 %v5587
    %v5727 = vunpack.c.l.b16 %v5588
    %v5728 = vunpack.c.l.b16 %v5589
    %v5729 = vunpack.c.l.b16 %v5590
    %v5730 = vunpack.c.l.b16 %v5591
    %v5731 = vunpack.c.l.b16 %v5592
    %v5732 = vunpack.c.l.b16 %v5593
    %v5733 = vunpack.c.l.b16 %v5594
    %v5734 = vunpack.c.l.b16 %v5595
    %v5735 = vunpack.c.l.b16 %v5596
    %v5736 = vpack.c.b16 %v5721, %v5720
    %v5737 = vpack.c.b16 %v5723, %v5722
    %v5738 = vpack.c.b16 %v5725, %v5724
    %v5739 = vpack.c.b16 %v5727, %v5726
    %v5740 = vpack.c.b16 %v5729, %v5728
    %v5741 = vpack.c.b16 %v5731, %v5730
    %v5742 = vpack.c.b16 %v5733, %v5732
    %v5743 = vpack.c.b16 %v5735, %v5734
    %5752 = vmatprep.subr.bf16.mxu0 0
    %5753 = vmatpush1.bf16.msra.mxu0 %v5743
    %5754 = vmatprep.subr.bf16.mxu0 0
    %5755 = vmatpush1.bf16.msra.mxu0 %v5742
    %5756 = vmatprep.subr.bf16.mxu0 0
    %5757 = vmatpush1.bf16.msra.mxu0 %v5741
    %5758 = vmatprep.subr.bf16.mxu0 0
    %5759 = vmatpush1.bf16.msra.mxu0 %v5740
    %5760 = vmatprep.subr.bf16.mxu0 0
    %5761 = vmatpush1.bf16.msra.mxu0 %v5739
    %5762 = vmatprep.subr.bf16.mxu0 0
    %5763 = vmatpush1.bf16.msra.mxu0 %v5738
    %5764 = vmatprep.subr.bf16.mxu0 0
    %5765 = vmatpush1.bf16.msra.mxu0 %v5737
    %5766 = vmatprep.subr.bf16.mxu0 0
    %5767 = vmatpush1.bf16.msra.mxu0 %v5736
    %5768 = vmatprep.subr.bf16.mxu0 0
    %5769 = vmatpush2.bf16.msra.mxu0 0
    %5770 = vmatprep.subr.bf16.mxu0 0
    %5771 = vmatpush2.bf16.msra.mxu0 0
    %5772 = vmatprep.subr.bf16.mxu0 0
    %5773 = vmatpush2.bf16.msra.mxu0 0
    %5774 = vmatprep.subr.bf16.mxu0 0
    %5775 = vmatpush2.bf16.msra.mxu0 0
    %5776 = vmatprep.subr.bf16.mxu0 0
    %5777 = vmatpush2.bf16.msra.mxu0 0
    %5778 = vmatprep.subr.bf16.mxu0 0
    %5779 = vmatpush2.bf16.msra.mxu0 0
    %5780 = vmatprep.subr.bf16.mxu0 0
    %5781 = vmatpush2.bf16.msra.mxu0 0
    %5782 = vmatprep.subr.bf16.mxu0 0
    %5783 = vmatpush2.bf16.msra.mxu0 0
    %5784 = vmatprep.mubr.bf16.mxu0 0
    %5785 = vmatmul.mubr.bf16.gmra.mxu0 %v5579
    %v5786 = vpop.f32.mrf.mxu0
    %v5787 = vadd.f32 %v5699, %v5786
    %v5788 = vpop.f32.mrf.mxu0
    %v5789 = vpop.f32.mrf.mxu0
    %v5790 = vpop.f32.mrf.mxu0
    %5791 = vdwg.mxu0
    %v5792 = vld [vmem:[#allocation6 + $0x2] sm:$0xf]
    %v5793 = vpack.c.bf16 %v5792, %v5792
    %s5794 = scalar_lea.vmem [#allocation12], 320
    %v5795 = vld [vmem:[%s5794] sm:$0xf]
    %v5796 = vld [vmem:[%s5794 + $0x4] sm:$0xf]
    %v5797 = vld [vmem:[%s5794 + $0x8] sm:$0xf]
    %v5798 = vld [vmem:[%s5794 + $0xc] sm:$0xf]
    %v5799 = vld [vmem:[%s5794 + $0x10] sm:$0xf]
    %v5800 = vld [vmem:[%s5794 + $0x14] sm:$0xf]
    %v5801 = vld [vmem:[%s5794 + $0x18] sm:$0xf]
    %v5802 = vld [vmem:[%s5794 + $0x1c] sm:$0xf]
    %v5803 = vld [vmem:[%s5794 + $0x20] sm:$0xf]
    %v5804 = vld [vmem:[%s5794 + $0x24] sm:$0xf]
    %v5805 = vld [vmem:[%s5794 + $0x28] sm:$0xf]
    %v5806 = vld [vmem:[%s5794 + $0x2c] sm:$0xf]
    %v5807 = vld [vmem:[%s5794 + $0x30] sm:$0xf]
    %v5808 = vld [vmem:[%s5794 + $0x34] sm:$0xf]
    %v5809 = vld [vmem:[%s5794 + $0x38] sm:$0xf]
    %v5810 = vld [vmem:[%s5794 + $0x3c] sm:$0xf]
    %v5827 = vunpack.c.l.b16 %v5795
    %v5828 = vunpack.c.l.b16 %v5796
    %v5829 = vunpack.c.l.b16 %v5797
    %v5830 = vunpack.c.l.b16 %v5798
    %v5831 = vunpack.c.l.b16 %v5799
    %v5832 = vunpack.c.l.b16 %v5800
    %v5833 = vunpack.c.l.b16 %v5801
    %v5834 = vunpack.c.l.b16 %v5802
    %v5835 = vunpack.c.l.b16 %v5803
    %v5836 = vunpack.c.l.b16 %v5804
    %v5837 = vunpack.c.l.b16 %v5805
    %v5838 = vunpack.c.l.b16 %v5806
    %v5839 = vunpack.c.l.b16 %v5807
    %v5840 = vunpack.c.l.b16 %v5808
    %v5841 = vunpack.c.l.b16 %v5809
    %v5842 = vunpack.c.l.b16 %v5810
    %v5843 = vpack.c.b16 %v5828, %v5827
    %v5844 = vpack.c.b16 %v5830, %v5829
    %v5845 = vpack.c.b16 %v5832, %v5831
    %v5846 = vpack.c.b16 %v5834, %v5833
    %v5847 = vpack.c.b16 %v5836, %v5835
    %v5848 = vpack.c.b16 %v5838, %v5837
    %v5849 = vpack.c.b16 %v5840, %v5839
    %v5850 = vpack.c.b16 %v5842, %v5841
    %5859 = vmatprep.subr.bf16.mxu0 0
    %5860 = vmatpush1.bf16.msra.mxu0 %v5850
    %5861 = vmatprep.subr.bf16.mxu0 0
    %5862 = vmatpush1.bf16.msra.mxu0 %v5849
    %5863 = vmatprep.subr.bf16.mxu0 0
    %5864 = vmatpush1.bf16.msra.mxu0 %v5848
    %5865 = vmatprep.subr.bf16.mxu0 0
    %5866 = vmatpush1.bf16.msra.mxu0 %v5847
    %5867 = vmatprep.subr.bf16.mxu0 0
    %5868 = vmatpush1.bf16.msra.mxu0 %v5846
    %5869 = vmatprep.subr.bf16.mxu0 0
    %5870 = vmatpush1.bf16.msra.mxu0 %v5845
    %5871 = vmatprep.subr.bf16.mxu0 0
    %5872 = vmatpush1.bf16.msra.mxu0 %v5844
    %5873 = vmatprep.subr.bf16.mxu0 0
    %5874 = vmatpush1.bf16.msra.mxu0 %v5843
    %5875 = vmatprep.subr.bf16.mxu0 0
    %5876 = vmatpush2.bf16.msra.mxu0 0
    %5877 = vmatprep.subr.bf16.mxu0 0
    %5878 = vmatpush2.bf16.msra.mxu0 0
    %5879 = vmatprep.subr.bf16.mxu0 0
    %5880 = vmatpush2.bf16.msra.mxu0 0
    %5881 = vmatprep.subr.bf16.mxu0 0
    %5882 = vmatpush2.bf16.msra.mxu0 0
    %5883 = vmatprep.subr.bf16.mxu0 0
    %5884 = vmatpush2.bf16.msra.mxu0 0
    %5885 = vmatprep.subr.bf16.mxu0 0
    %5886 = vmatpush2.bf16.msra.mxu0 0
    %5887 = vmatprep.subr.bf16.mxu0 0
    %5888 = vmatpush2.bf16.msra.mxu0 0
    %5889 = vmatprep.subr.bf16.mxu0 0
    %5890 = vmatpush2.bf16.msra.mxu0 0
    %5891 = vmatprep.mubr.bf16.mxu0 0
    %5892 = vmatmul.mubr.bf16.gmra.mxu0 %v5793
    %v5893 = vpop.f32.mrf.mxu0
    %v5894 = vadd.f32 0.0, %v5893
    %v5895 = vpop.f32.mrf.mxu0
    %v5896 = vpop.f32.mrf.mxu0
    %v5897 = vpop.f32.mrf.mxu0
    %5898 = vdwg.mxu0
    %v5899 = vadd.f32 %v5787, %v5894
    %v5900 = vld [vmem:[#allocation14 + $0xf] sm:$0x1]
    %v5902 = vlaneseq
    %v5903 = vshrl.u32 %v5902, 7
    %v5904 = vsub.s32 0, %v5903
    %v5905 = vrot.slane %v5900, %v5904
    %v5907 = vadd.f32 %v5899, %v5905
    %v5908 = vmax.f32 %v5907, 0.0
    %5909 = vst [vmem:[#allocation5 + $0x1] sm:$0xf] %v5908
    %v5910 = vld [vmem:[#allocation5] sm:$0xf]
    %v5911 = vpack.c.bf16 %v5910, %v5910
    %s5912 = scalar_lea.vmem [#allocation12], 384
    %v5913 = vld [vmem:[%s5912] sm:$0xf]
    %v5914 = vld [vmem:[%s5912 + $0x4] sm:$0xf]
    %v5915 = vld [vmem:[%s5912 + $0x8] sm:$0xf]
    %v5916 = vld [vmem:[%s5912 + $0xc] sm:$0xf]
    %v5917 = vld [vmem:[%s5912 + $0x10] sm:$0xf]
    %v5918 = vld [vmem:[%s5912 + $0x14] sm:$0xf]
    %v5919 = vld [vmem:[%s5912 + $0x18] sm:$0xf]
    %v5920 = vld [vmem:[%s5912 + $0x1c] sm:$0xf]
    %v5921 = vld [vmem:[%s5912 + $0x20] sm:$0xf]
    %v5922 = vld [vmem:[%s5912 + $0x24] sm:$0xf]
    %v5923 = vld [vmem:[%s5912 + $0x28] sm:$0xf]
    %v5924 = vld [vmem:[%s5912 + $0x2c] sm:$0xf]
    %v5925 = vld [vmem:[%s5912 + $0x30] sm:$0xf]
    %v5926 = vld [vmem:[%s5912 + $0x34] sm:$0xf]
    %v5927 = vld [vmem:[%s5912 + $0x38] sm:$0xf]
    %v5928 = vld [vmem:[%s5912 + $0x3c] sm:$0xf]
    %v5929 = vld [vmem:[#allocation5 + $0x1] sm:$0xf]
    %v5930 = vpack.c.bf16 %v5929, %v5929
    %s5931 = scalar_lea.vmem [#allocation12], 448
    %v5932 = vld [vmem:[%s5931] sm:$0xf]
    %v5933 = vld [vmem:[%s5931 + $0x4] sm:$0xf]
    %v5934 = vld [vmem:[%s5931 + $0x8] sm:$0xf]
    %v5935 = vld [vmem:[%s5931 + $0xc] sm:$0xf]
    %v5936 = vld [vmem:[%s5931 + $0x10] sm:$0xf]
    %v5937 = vld [vmem:[%s5931 + $0x14] sm:$0xf]
    %v5938 = vld [vmem:[%s5931 + $0x18] sm:$0xf]
    %v5939 = vld [vmem:[%s5931 + $0x1c] sm:$0xf]
    %v5940 = vld [vmem:[%s5931 + $0x20] sm:$0xf]
    %v5941 = vld [vmem:[%s5931 + $0x24] sm:$0xf]
    %v5942 = vld [vmem:[%s5931 + $0x28] sm:$0xf]
    %v5943 = vld [vmem:[%s5931 + $0x2c] sm:$0xf]
    %v5944 = vld [vmem:[%s5931 + $0x30] sm:$0xf]
    %v5945 = vld [vmem:[%s5931 + $0x34] sm:$0xf]
    %v5946 = vld [vmem:[%s5931 + $0x38] sm:$0xf]
    %v5947 = vld [vmem:[%s5931 + $0x3c] sm:$0xf]
    %v5964 = vunpack.c.l.b16 %v5932
    %v5965 = vunpack.c.l.b16 %v5933
    %v5966 = vunpack.c.l.b16 %v5934
    %v5967 = vunpack.c.l.b16 %v5935
    %v5968 = vunpack.c.l.b16 %v5936
    %v5969 = vunpack.c.l.b16 %v5937
    %v5970 = vunpack.c.l.b16 %v5938
    %v5971 = vunpack.c.l.b16 %v5939
    %v5972 = vunpack.c.l.b16 %v5940
    %v5973 = vunpack.c.l.b16 %v5941
    %v5974 = vunpack.c.l.b16 %v5942
    %v5975 = vunpack.c.l.b16 %v5943
    %v5976 = vunpack.c.l.b16 %v5944
    %v5977 = vunpack.c.l.b16 %v5945
    %v5978 = vunpack.c.l.b16 %v5946
    %v5979 = vunpack.c.l.b16 %v5947
    %v5980 = vpack.c.b16 %v5965, %v5964
    %v5981 = vpack.c.b16 %v5967, %v5966
    %v5982 = vpack.c.b16 %v5969, %v5968
    %v5983 = vpack.c.b16 %v5971, %v5970
    %v5984 = vpack.c.b16 %v5973, %v5972
    %v5985 = vpack.c.b16 %v5975, %v5974
    %v5986 = vpack.c.b16 %v5977, %v5976
    %v5987 = vpack.c.b16 %v5979, %v5978
    %5996 = vmatprep.subr.bf16.mxu0 0
    %5997 = vmatpush1.bf16.msra.mxu0 %v5987
    %5998 = vmatprep.subr.bf16.mxu0 0
    %5999 = vmatpush1.bf16.msra.mxu0 %v5986
    %6000 = vmatprep.subr.bf16.mxu0 0
    %6001 = vmatpush1.bf16.msra.mxu0 %v5985
    %6002 = vmatprep.subr.bf16.mxu0 0
    %6003 = vmatpush1.bf16.msra.mxu0 %v5984
    %6004 = vmatprep.subr.bf16.mxu0 0
    %6005 = vmatpush1.bf16.msra.mxu0 %v5983
    %6006 = vmatprep.subr.bf16.mxu0 0
    %6007 = vmatpush1.bf16.msra.mxu0 %v5982
    %6008 = vmatprep.subr.bf16.mxu0 0
    %6009 = vmatpush1.bf16.msra.mxu0 %v5981
    %6010 = vmatprep.subr.bf16.mxu0 0
    %6011 = vmatpush1.bf16.msra.mxu0 %v5980
    %6012 = vmatprep.subr.bf16.mxu0 0
    %6013 = vmatpush2.bf16.msra.mxu0 0
    %6014 = vmatprep.subr.bf16.mxu0 0
    %6015 = vmatpush2.bf16.msra.mxu0 0
    %6016 = vmatprep.subr.bf16.mxu0 0
    %6017 = vmatpush2.bf16.msra.mxu0 0
    %6018 = vmatprep.subr.bf16.mxu0 0
    %6019 = vmatpush2.bf16.msra.mxu0 0
    %6020 = vmatprep.subr.bf16.mxu0 0
    %6021 = vmatpush2.bf16.msra.mxu0 0
    %6022 = vmatprep.subr.bf16.mxu0 0
    %6023 = vmatpush2.bf16.msra.mxu0 0
    %6024 = vmatprep.subr.bf16.mxu0 0
    %6025 = vmatpush2.bf16.msra.mxu0 0
    %6026 = vmatprep.subr.bf16.mxu0 0
    %6027 = vmatpush2.bf16.msra.mxu0 0
    %6028 = vmatprep.mubr.bf16.mxu0 0
    %6029 = vmatmul.mubr.bf16.gmra.mxu0 %v5930
    %v6030 = vpop.f32.mrf.mxu0
    %v6031 = vadd.f32 0.0, %v6030
    %v6032 = vpop.f32.mrf.mxu0
    %v6033 = vpop.f32.mrf.mxu0
    %v6034 = vpop.f32.mrf.mxu0
    %6035 = vdwg.mxu0
    %v6052 = vunpack.c.l.b16 %v5913
    %v6053 = vunpack.c.l.b16 %v5914
    %v6054 = vunpack.c.l.b16 %v5915
    %v6055 = vunpack.c.l.b16 %v5916
    %v6056 = vunpack.c.l.b16 %v5917
    %v6057 = vunpack.c.l.b16 %v5918
    %v6058 = vunpack.c.l.b16 %v5919
    %v6059 = vunpack.c.l.b16 %v5920
    %v6060 = vunpack.c.l.b16 %v5921
    %v6061 = vunpack.c.l.b16 %v5922
    %v6062 = vunpack.c.l.b16 %v5923
    %v6063 = vunpack.c.l.b16 %v5924
    %v6064 = vunpack.c.l.b16 %v5925
    %v6065 = vunpack.c.l.b16 %v5926
    %v6066 = vunpack.c.l.b16 %v5927
    %v6067 = vunpack.c.l.b16 %v5928
    %v6068 = vpack.c.b16 %v6053, %v6052
    %v6069 = vpack.c.b16 %v6055, %v6054
    %v6070 = vpack.c.b16 %v6057, %v6056
    %v6071 = vpack.c.b16 %v6059, %v6058
    %v6072 = vpack.c.b16 %v6061, %v6060
    %v6073 = vpack.c.b16 %v6063, %v6062
    %v6074 = vpack.c.b16 %v6065, %v6064
    %v6075 = vpack.c.b16 %v6067, %v6066
    %6084 = vmatprep.subr.bf16.mxu0 0
    %6085 = vmatpush1.bf16.msra.mxu0 %v6075
    %6086 = vmatprep.subr.bf16.mxu0 0
    %6087 = vmatpush1.bf16.msra.mxu0 %v6074
    %6088 = vmatprep.subr.bf16.mxu0 0
    %6089 = vmatpush1.bf16.msra.mxu0 %v6073
    %6090 = vmatprep.subr.bf16.mxu0 0
    %6091 = vmatpush1.bf16.msra.mxu0 %v6072
    %6092 = vmatprep.subr.bf16.mxu0 0
    %6093 = vmatpush1.bf16.msra.mxu0 %v6071
    %6094 = vmatprep.subr.bf16.mxu0 0
    %6095 = vmatpush1.bf16.msra.mxu0 %v6070
    %6096 = vmatprep.subr.bf16.mxu0 0
    %6097 = vmatpush1.bf16.msra.mxu0 %v6069
    %6098 = vmatprep.subr.bf16.mxu0 0
    %6099 = vmatpush1.bf16.msra.mxu0 %v6068
    %6100 = vmatprep.subr.bf16.mxu0 0
    %6101 = vmatpush2.bf16.msra.mxu0 0
    %6102 = vmatprep.subr.bf16.mxu0 0
    %6103 = vmatpush2.bf16.msra.mxu0 0
    %6104 = vmatprep.subr.bf16.mxu0 0
    %6105 = vmatpush2.bf16.msra.mxu0 0
    %6106 = vmatprep.subr.bf16.mxu0 0
    %6107 = vmatpush2.bf16.msra.mxu0 0
    %6108 = vmatprep.subr.bf16.mxu0 0
    %6109 = vmatpush2.bf16.msra.mxu0 0
    %6110 = vmatprep.subr.bf16.mxu0 0
    %6111 = vmatpush2.bf16.msra.mxu0 0
    %6112 = vmatprep.subr.bf16.mxu0 0
    %6113 = vmatpush2.bf16.msra.mxu0 0
    %6114 = vmatprep.subr.bf16.mxu0 0
    %6115 = vmatpush2.bf16.msra.mxu0 0
    %6116 = vmatprep.mubr.bf16.mxu0 0
    %6117 = vmatmul.mubr.bf16.gmra.mxu0 %v5911
    %v6118 = vpop.f32.mrf.mxu0
    %v6119 = vadd.f32 %v6031, %v6118
    %v6120 = vpop.f32.mrf.mxu0
    %v6121 = vpop.f32.mrf.mxu0
    %v6122 = vpop.f32.mrf.mxu0
    %6123 = vdwg.mxu0
    %v6124 = vld [vmem:[#allocation5 + $0x2] sm:$0xf]
    %v6125 = vpack.c.bf16 %v6124, %v6124
    %s6126 = scalar_lea.vmem [#allocation12], 512
    %v6127 = vld [vmem:[%s6126] sm:$0xf]
    %v6128 = vld [vmem:[%s6126 + $0x4] sm:$0xf]
    %v6129 = vld [vmem:[%s6126 + $0x8] sm:$0xf]
    %v6130 = vld [vmem:[%s6126 + $0xc] sm:$0xf]
    %v6131 = vld [vmem:[%s6126 + $0x10] sm:$0xf]
    %v6132 = vld [vmem:[%s6126 + $0x14] sm:$0xf]
    %v6133 = vld [vmem:[%s6126 + $0x18] sm:$0xf]
    %v6134 = vld [vmem:[%s6126 + $0x1c] sm:$0xf]
    %v6135 = vld [vmem:[%s6126 + $0x20] sm:$0xf]
    %v6136 = vld [vmem:[%s6126 + $0x24] sm:$0xf]
    %v6137 = vld [vmem:[%s6126 + $0x28] sm:$0xf]
    %v6138 = vld [vmem:[%s6126 + $0x2c] sm:$0xf]
    %v6139 = vld [vmem:[%s6126 + $0x30] sm:$0xf]
    %v6140 = vld [vmem:[%s6126 + $0x34] sm:$0xf]
    %v6141 = vld [vmem:[%s6126 + $0x38] sm:$0xf]
    %v6142 = vld [vmem:[%s6126 + $0x3c] sm:$0xf]
    %v6159 = vunpack.c.l.b16 %v6127
    %v6160 = vunpack.c.l.b16 %v6128
    %v6161 = vunpack.c.l.b16 %v6129
    %v6162 = vunpack.c.l.b16 %v6130
    %v6163 = vunpack.c.l.b16 %v6131
    %v6164 = vunpack.c.l.b16 %v6132
    %v6165 = vunpack.c.l.b16 %v6133
    %v6166 = vunpack.c.l.b16 %v6134
    %v6167 = vunpack.c.l.b16 %v6135
    %v6168 = vunpack.c.l.b16 %v6136
    %v6169 = vunpack.c.l.b16 %v6137
    %v6170 = vunpack.c.l.b16 %v6138
    %v6171 = vunpack.c.l.b16 %v6139
    %v6172 = vunpack.c.l.b16 %v6140
    %v6173 = vunpack.c.l.b16 %v6141
    %v6174 = vunpack.c.l.b16 %v6142
    %v6175 = vpack.c.b16 %v6160, %v6159
    %v6176 = vpack.c.b16 %v6162, %v6161
    %v6177 = vpack.c.b16 %v6164, %v6163
    %v6178 = vpack.c.b16 %v6166, %v6165
    %v6179 = vpack.c.b16 %v6168, %v6167
    %v6180 = vpack.c.b16 %v6170, %v6169
    %v6181 = vpack.c.b16 %v6172, %v6171
    %v6182 = vpack.c.b16 %v6174, %v6173
    %6191 = vmatprep.subr.bf16.mxu0 0
    %6192 = vmatpush1.bf16.msra.mxu0 %v6182
    %6193 = vmatprep.subr.bf16.mxu0 0
    %6194 = vmatpush1.bf16.msra.mxu0 %v6181
    %6195 = vmatprep.subr.bf16.mxu0 0
    %6196 = vmatpush1.bf16.msra.mxu0 %v6180
    %6197 = vmatprep.subr.bf16.mxu0 0
    %6198 = vmatpush1.bf16.msra.mxu0 %v6179
    %6199 = vmatprep.subr.bf16.mxu0 0
    %6200 = vmatpush1.bf16.msra.mxu0 %v6178
    %6201 = vmatprep.subr.bf16.mxu0 0
    %6202 = vmatpush1.bf16.msra.mxu0 %v6177
    %6203 = vmatprep.subr.bf16.mxu0 0
    %6204 = vmatpush1.bf16.msra.mxu0 %v6176
    %6205 = vmatprep.subr.bf16.mxu0 0
    %6206 = vmatpush1.bf16.msra.mxu0 %v6175
    %6207 = vmatprep.subr.bf16.mxu0 0
    %6208 = vmatpush2.bf16.msra.mxu0 0
    %6209 = vmatprep.subr.bf16.mxu0 0
    %6210 = vmatpush2.bf16.msra.mxu0 0
    %6211 = vmatprep.subr.bf16.mxu0 0
    %6212 = vmatpush2.bf16.msra.mxu0 0
    %6213 = vmatprep.subr.bf16.mxu0 0
    %6214 = vmatpush2.bf16.msra.mxu0 0
    %6215 = vmatprep.subr.bf16.mxu0 0
    %6216 = vmatpush2.bf16.msra.mxu0 0
    %6217 = vmatprep.subr.bf16.mxu0 0
    %6218 = vmatpush2.bf16.msra.mxu0 0
    %6219 = vmatprep.subr.bf16.mxu0 0
    %6220 = vmatpush2.bf16.msra.mxu0 0
    %6221 = vmatprep.subr.bf16.mxu0 0
    %6222 = vmatpush2.bf16.msra.mxu0 0
    %6223 = vmatprep.mubr.bf16.mxu0 0
    %6224 = vmatmul.mubr.bf16.gmra.mxu0 %v6125
    %v6225 = vpop.f32.mrf.mxu0
    %v6226 = vadd.f32 0.0, %v6225
    %v6227 = vpop.f32.mrf.mxu0
    %v6228 = vpop.f32.mrf.mxu0
    %v6229 = vpop.f32.mrf.mxu0
    %6230 = vdwg.mxu0
    %v6231 = vadd.f32 %v6119, %v6226
    %v6232 = vld [vmem:[#allocation14 + $0x10] sm:$0x1]
    %v6234 = vlaneseq
    %v6235 = vshrl.u32 %v6234, 7
    %v6236 = vsub.s32 0, %v6235
    %v6237 = vrot.slane %v6232, %v6236
    %v6239 = vadd.f32 %v6231, %v6237
    %v6240 = vadd.f32 %v6239, %v5576
    %v6241 = vmax.f32 %v6240, 0.0
    %v6242 = vpack.c.bf16 %v6241, %v6241
    %vm6243 = vcmask 31744
    %v6245 = vsel %vm6243, 1065369472, 0
    %vm6247 = vcmask 1041408
    %v6249 = vsel %vm6247, %v6242, 0
    %6251 = vmatprep.subr.bf16.mxu0 0
    %6252 = vmatpush1.bf16.msra.mxu0 0
    %6253 = vmatprep.subr.bf16.mxu0 0
    %6254 = vmatpush1.bf16.msra.mxu0 0
    %6255 = vmatprep.subr.bf16.mxu0 0
    %6256 = vmatpush1.bf16.msra.mxu0 0
    %6257 = vmatprep.subr.bf16.mxu0 0
    %6258 = vmatpush1.bf16.msra.mxu0 0
    %6259 = vmatprep.subr.bf16.mxu0 0
    %6260 = vmatpush1.bf16.msra.mxu0 0
    %6261 = vmatprep.subr.bf16.mxu0 0
    %6262 = vmatpush1.bf16.msra.mxu0 0
    %6263 = vmatprep.subr.bf16.mxu0 0
    %6264 = vmatpush1.bf16.msra.mxu0 0
    %6265 = vmatprep.subr.bf16.mxu0 0
    %6266 = vmatpush1.bf16.msra.mxu0 %v6249
    %6267 = vmatprep.subr.bf16.mxu0 0
    %6268 = vmatpush2.bf16.msra.mxu0 0
    %6269 = vmatprep.subr.bf16.mxu0 0
    %6270 = vmatpush2.bf16.msra.mxu0 0
    %6271 = vmatprep.subr.bf16.mxu0 0
    %6272 = vmatpush2.bf16.msra.mxu0 0
    %6273 = vmatprep.subr.bf16.mxu0 0
    %6274 = vmatpush2.bf16.msra.mxu0 0
    %6275 = vmatprep.subr.bf16.mxu0 0
    %6276 = vmatpush2.bf16.msra.mxu0 0
    %6277 = vmatprep.subr.bf16.mxu0 0
    %6278 = vmatpush2.bf16.msra.mxu0 0
    %6279 = vmatprep.subr.bf16.mxu0 0
    %6280 = vmatpush2.bf16.msra.mxu0 0
    %6281 = vmatprep.subr.bf16.mxu0 0
    %6282 = vmatpush2.bf16.msra.mxu0 0
    %6283 = vmatprep.mubr.bf16.mxu0 0
    %6284 = vmatmul.mubr.bf16.gmra.mxu0 %v6245
    %v6285 = vpop.f32.mrf.mxu0
    %v6286 = vadd.f32 0.0, %v6285
    %v6287 = vpop.f32.mrf.mxu0
    %v6288 = vpop.f32.mrf.mxu0
    %v6289 = vpop.f32.mrf.mxu0
    %6290 = vdwg.mxu0
    %v6291 = vpack.c.bf16 %v6286, %v6286
    %s6292 = scalar_lea.vmem [#allocation12], 576
    %v6293 = vld [vmem:[%s6292] sm:$0xf]
    %v6294 = vld [vmem:[%s6292 + $0x4] sm:$0xf]
    %v6295 = vld [vmem:[%s6292 + $0x8] sm:$0xf]
    %v6296 = vld [vmem:[%s6292 + $0xc] sm:$0xf]
    %v6297 = vld [vmem:[%s6292 + $0x10] sm:$0xf]
    %v6298 = vld [vmem:[%s6292 + $0x14] sm:$0xf]
    %v6299 = vld [vmem:[%s6292 + $0x18] sm:$0xf]
    %v6300 = vld [vmem:[%s6292 + $0x1c] sm:$0xf]
    %v6301 = vld [vmem:[%s6292 + $0x20] sm:$0xf]
    %v6302 = vld [vmem:[%s6292 + $0x24] sm:$0xf]
    %v6303 = vld [vmem:[%s6292 + $0x28] sm:$0xf]
    %v6304 = vld [vmem:[%s6292 + $0x2c] sm:$0xf]
    %v6305 = vld [vmem:[%s6292 + $0x30] sm:$0xf]
    %v6306 = vld [vmem:[%s6292 + $0x34] sm:$0xf]
    %v6307 = vld [vmem:[%s6292 + $0x38] sm:$0xf]
    %v6308 = vld [vmem:[%s6292 + $0x3c] sm:$0xf]
    %v6325 = vunpack.c.l.b16 %v6293
    %v6326 = vunpack.c.l.b16 %v6294
    %v6327 = vunpack.c.l.b16 %v6295
    %v6328 = vunpack.c.l.b16 %v6296
    %v6329 = vunpack.c.l.b16 %v6297
    %v6330 = vunpack.c.l.b16 %v6298
    %v6331 = vunpack.c.l.b16 %v6299
    %v6332 = vunpack.c.l.b16 %v6300
    %v6333 = vunpack.c.l.b16 %v6301
    %v6334 = vunpack.c.l.b16 %v6302
    %v6335 = vunpack.c.l.b16 %v6303
    %v6336 = vunpack.c.l.b16 %v6304
    %v6337 = vunpack.c.l.b16 %v6305
    %v6338 = vunpack.c.l.b16 %v6306
    %v6339 = vunpack.c.l.b16 %v6307
    %v6340 = vunpack.c.l.b16 %v6308
    %v6341 = vpack.c.b16 %v6326, %v6325
    %v6342 = vpack.c.b16 %v6328, %v6327
    %v6343 = vpack.c.b16 %v6330, %v6329
    %v6344 = vpack.c.b16 %v6332, %v6331
    %v6345 = vpack.c.b16 %v6334, %v6333
    %v6346 = vpack.c.b16 %v6336, %v6335
    %v6347 = vpack.c.b16 %v6338, %v6337
    %v6348 = vpack.c.b16 %v6340, %v6339
    %6357 = vmatprep.subr.bf16.mxu0 0
    %6358 = vmatpush1.bf16.msra.mxu0 %v6348
    %6359 = vmatprep.subr.bf16.mxu0 0
    %6360 = vmatpush1.bf16.msra.mxu0 %v6347
    %6361 = vmatprep.subr.bf16.mxu0 0
    %6362 = vmatpush1.bf16.msra.mxu0 %v6346
    %6363 = vmatprep.subr.bf16.mxu0 0
    %6364 = vmatpush1.bf16.msra.mxu0 %v6345
    %6365 = vmatprep.subr.bf16.mxu0 0
    %6366 = vmatpush1.bf16.msra.mxu0 %v6344
    %6367 = vmatprep.subr.bf16.mxu0 0
    %6368 = vmatpush1.bf16.msra.mxu0 %v6343
    %6369 = vmatprep.subr.bf16.mxu0 0
    %6370 = vmatpush1.bf16.msra.mxu0 %v6342
    %6371 = vmatprep.subr.bf16.mxu0 0
    %6372 = vmatpush1.bf16.msra.mxu0 %v6341
    %6373 = vmatprep.subr.bf16.mxu0 0
    %6374 = vmatpush2.bf16.msra.mxu0 0
    %6375 = vmatprep.subr.bf16.mxu0 0
    %6376 = vmatpush2.bf16.msra.mxu0 0
    %6377 = vmatprep.subr.bf16.mxu0 0
    %6378 = vmatpush2.bf16.msra.mxu0 0
    %6379 = vmatprep.subr.bf16.mxu0 0
    %6380 = vmatpush2.bf16.msra.mxu0 0
    %6381 = vmatprep.subr.bf16.mxu0 0
    %6382 = vmatpush2.bf16.msra.mxu0 0
    %6383 = vmatprep.subr.bf16.mxu0 0
    %6384 = vmatpush2.bf16.msra.mxu0 0
    %6385 = vmatprep.subr.bf16.mxu0 0
    %6386 = vmatpush2.bf16.msra.mxu0 0
    %6387 = vmatprep.subr.bf16.mxu0 0
    %6388 = vmatpush2.bf16.msra.mxu0 0
    %6389 = vmatprep.mubr.bf16.mxu0 0
    %6390 = vmatmul.mubr.bf16.gmra.mxu0 %v6291
    %v6391 = vpop.f32.mrf.mxu0
    %v6392 = vadd.f32 0.0, %v6391
    %v6393 = vpop.f32.mrf.mxu0
    %v6394 = vpop.f32.mrf.mxu0
    %v6395 = vpop.f32.mrf.mxu0
    %6396 = vdwg.mxu0
    %v6397 = vld [vmem:[#allocation14 + $0x11] sm:$0x1]
    %v6398 = vadd.f32 %v6392, %v6397
    %vm6399 = vcmask 155648
    %6400 = vst.msk [vmem:[%s6] sm:$0x1] %vm6399, %v6398
    // Predicated region
    $region46: #{forward.1} parent=1 // pred_check
      _
    $region47: #{forward.1} parent=1 // pred_check_branch
      %6402 = sbr.rel (0) target = $region49
    $region48: #{forward.1} parent=1 // pred_region
      _
    $region49: #{forward.1} parent=1 // pred_fallthru
      _
    // Predicated region
    $region50: #{forward.1} parent=1 // pred_check
      _
    $region51: #{forward.1} parent=1 // pred_check_branch
      %6404 = sbr.rel (0) target = $region53
    $region52: #{forward.1} parent=1 // pred_region
      _
    $region53: #{forward.1} parent=1 // pred_fallthru
      _
    %6405 = vsyncpa [#allocation8], 1
    %6406 = vsyncpa [#allocation10], 1
    %6407 = vsyncpa [#allocation13], 1

</llo_original>
